<compile_context>
chip_gen: v7x
topology: tpu7x:2x2x1
jax: 0.10.0
libtpu: 0.0.40
codegen_flags: <defaults>
</compile_context>

<pallas_src>
import math

import jax
import jax.numpy as jnp
from jax.experimental import pallas as pl
from jax.experimental.pallas import tpu as pltpu

# ----- synthetic config -----
B = 2          # batch
C_IN = 32      # recurrent_read_dim
C_OUT = 16     # recurrent_write_dim == RNN sequence length
L = 128        # spatial length == RNN input_size == hidden_size
NUM_LAYERS = 2 # forced by h_0 = stack([mean, var])


def query_block_kernel(x_ref, w_in2_ref, b_in2_ref, m_sel_ref,
                       w_ih1_ref, w_hh1_ref, b1_ref,
                       w_ih2_ref, w_hh2_ref, b2_ref,
                       w_out_ref, b_out_ref,
                       o_ref, h1_buf, h2_buf):
    f32, bf16 = jnp.float32, jnp.bfloat16
    bsz = m_sel_ref.shape[0]
    c_out = m_sel_ref.shape[1] // bsz
    seq_l = x_ref.shape[1]

    # ---- in_layer, whole batch in one MXU push; rows ordered (t, b) -> t*B + b ----
    x_flat = (jnp.dot(w_in2_ref[...], x_ref[...], preferred_element_type=f32)
              + b_in2_ref[...])                                          # (C_OUT*B, L) f32

    # ---- h_0: per-(b, l) mean and biased variance over the C_OUT axis (two-pass, f32) ----
    mu = jnp.dot(m_sel_ref[...], x_flat, preferred_element_type=f32)     # (B, L)
    centered = x_flat - jnp.tile(mu, (c_out, 1))
    var = jnp.dot(m_sel_ref[...], centered * centered,
                  preferred_element_type=f32)                            # (B, L)

    # ---- RNN layer 1: input projection batched over all time steps, then serial tanh ----
    u1 = (jnp.dot(x_flat.astype(bf16), w_ih1_ref[...], preferred_element_type=f32)
          + b1_ref[...])                                                 # (C_OUT*B, L)
    w_hh1 = w_hh1_ref[...]                                               # (L, L) f32
    h = mu                                                               # h_0[0]
    for t in range(c_out):                                               # short fixed trip count: unrolled
        h = jnp.tanh(u1[t * bsz:(t + 1) * bsz, :]
                     + jnp.dot(h, w_hh1, preferred_element_type=f32))
        h1_buf[t * bsz:(t + 1) * bsz, :] = h.astype(bf16)

    # ---- RNN layer 2 ----
    u2 = (jnp.dot(h1_buf[...], w_ih2_ref[...], preferred_element_type=f32)
          + b2_ref[...])
    w_hh2 = w_hh2_ref[...]
    h = var                                                              # h_0[1]
    for t in range(c_out):
        h = jnp.tanh(u2[t * bsz:(t + 1) * bsz, :]
                     + jnp.dot(h, w_hh2, preferred_element_type=f32))
        for b in range(bsz):
            h2_buf[t:t + 1, b * seq_l:(b + 1) * seq_l] = h[b:b + 1, :].astype(bf16)

    # ---- out_layer on the (C_OUT, B*L) slab: one matmul, lane-dense 256-wide output ----
    o_ref[...] = (jnp.dot(w_out_ref[...], h2_buf[...], preferred_element_type=f32)
                  + b_out_ref[...])                                      # (C_IN, B*L)


@jax.jit
def query_block_forward(x, params):
    """query_block.forward (Is_Recurrent=True, eval mode).  x: (B, C_IN, L) -> (B, L, C_IN)."""
    bsz, c_in, seq_l = x.shape
    c_out = params["w_in"].shape[0]
    f32, bf16 = jnp.float32, jnp.bfloat16

    # --- host-side layout plumbing (tiny XLA ops, outside the kernel) ---
    # in_layer fused over the batch: X[t*B+b, :] = sum_c W_in[t,c] x[b,c,:] + b_in[t]
    w_in2 = jnp.kron(params["w_in"], jnp.eye(bsz, dtype=f32)).astype(bf16)  # (C_OUT*B, C_IN*B)
    b_in2 = jnp.repeat(params["b_in"], bsz)[:, None]                        # (C_OUT*B, 1)
    x_stack = jnp.transpose(x, (1, 0, 2)).reshape(c_in * bsz, seq_l).astype(bf16)

    # per-batch mean selector over the interleaved rows (also used for the biased variance)
    m_sel = jnp.kron(jnp.ones((1, c_out), f32), jnp.eye(bsz, dtype=f32)) / c_out  # (B, C_OUT*B)

    # RNN weights pre-transposed (kernel never transposes); b_ih + b_hh fused host-side.
    w_ih1_t = params["w_ih1"].T.astype(bf16)
    w_ih2_t = params["w_ih2"].T.astype(bf16)
    w_hh1_t = params["w_hh1"].T.astype(f32)   # recurrent path kept f32 (error compounding)
    w_hh2_t = params["w_hh2"].T.astype(f32)
    b1 = (params["b_ih1"] + params["b_hh1"])[None, :].astype(f32)           # (1, L)
    b2 = (params["b_ih2"] + params["b_hh2"])[None, :].astype(f32)

    w_out = params["w_out"].astype(bf16)                                    # (C_IN, C_OUT)
    b_out = params["b_out"][:, None].astype(f32)                            # (C_IN, 1)

    vmem = pl.BlockSpec(memory_space=pltpu.MemorySpace.VMEM)
    y2d = pl.pallas_call(
        query_block_kernel,
        out_shape=jax.ShapeDtypeStruct((c_in, bsz * seq_l), jnp.float32),
        in_specs=[vmem] * 12,
        out_specs=vmem,
        scratch_shapes=[
            pltpu.VMEM((c_out * bsz, seq_l), bf16),   # layer-1 hidden states (input to layer 2)
            pltpu.VMEM((c_out, bsz * seq_l), bf16),   # layer-2 hidden states (out_layer operand)
        ],
    )(x_stack, w_in2, b_in2, m_sel,
      w_ih1_t, w_hh1_t, b1,
      w_ih2_t, w_hh2_t, b2,
      w_out, b_out)

    # dropout(query_block_pdrop): inference mode -> identity.
    # present the lane-dense (C_IN, B*L) slab in the module's (B, L, C_IN) layout.
    return jnp.transpose(y2d.reshape(c_in, bsz, seq_l), (1, 2, 0))


def init_params(key):
    ks = jax.random.split(key, 10)

    def rnd(k, shape, scale):
        return jax.random.normal(k, shape, jnp.float32) * scale

    s_rnn = 0.04  # ~PyTorch U(-1/sqrt(H), 1/sqrt(H)) scale for H=128, kept modest (tanh unsaturated)
    return {
        "w_in": rnd(ks[0], (C_OUT, C_IN), 1.0 / math.sqrt(C_IN)),
        "b_in": rnd(ks[1], (C_OUT,), 0.02),
        "w_ih1": rnd(ks[2], (L, L), s_rnn), "b_ih1": rnd(ks[3], (L,), 0.02),
        "w_hh1": rnd(ks[4], (L, L), s_rnn), "b_hh1": jnp.zeros((L,), jnp.float32),
        "w_ih2": rnd(ks[5], (L, L), s_rnn), "b_ih2": rnd(ks[6], (L,), 0.02),
        "w_hh2": rnd(ks[7], (L, L), s_rnn), "b_hh2": jnp.zeros((L,), jnp.float32),
        "w_out": rnd(ks[8], (C_IN, C_OUT), 1.0 / math.sqrt(C_OUT)),
        "b_out": rnd(ks[9], (C_IN,), 0.02),
    }


def query_block_reference(x, p):
    """Pure-JAX float32 mirror of query_block.forward (Is_Recurrent=True, eval mode)."""
    with jax.default_matmul_precision("float32"):
        h = jnp.swapaxes(x, 1, 2) @ p["w_in"].T + p["b_in"]          # (B, L, C_OUT)
        h = jnp.swapaxes(h, 1, 2)                                    # (B, C_OUT, L)
        mean = jnp.mean(h, axis=1)                                   # (B, L)
        var = jnp.mean((h - jnp.mean(h, axis=1, keepdims=True)) ** 2, axis=1)  # biased
        seq = jnp.transpose(h, (1, 0, 2))                            # (C_OUT, B, L)

        def layer(inp, h0, w_ih, b_ih, w_hh, b_hh):
            def step(hp, xt):
                hn = jnp.tanh(xt @ w_ih.T + b_ih + hp @ w_hh.T + b_hh)
                return hn, hn
            _, outs = jax.lax.scan(step, h0, inp)
            return outs                                              # (C_OUT, B, L)

        o1 = layer(seq, mean, p["w_ih1"], p["b_ih1"], p["w_hh1"], p["b_hh1"])
        o2 = layer(o1, var, p["w_ih2"], p["b_ih2"], p["w_hh2"], p["b_hh2"])
        y = jnp.transpose(o2, (1, 2, 0)) @ p["w_out"].T + p["b_out"]  # (B, L, C_IN)
        return y


if __name__ == "__main__":
    key = jax.random.PRNGKey(0)
    kx, kp = jax.random.split(key)
    x = jax.random.normal(kx, (B, C_IN, L), jnp.float32)
    params = init_params(kp)

    out = query_block_forward(x, params)
    out = jax.block_until_ready(out)
    assert out.shape == (B, L, C_IN), out.shape

    ref = query_block_reference(x, params)
    max_err = float(jnp.max(jnp.abs(out - ref)))
    assert max_err < 5e-2, f"max abs err {max_err}"
    print("KERNEL_OK")
</pallas_src>

<mosaic_0001>
module attributes {stable_mosaic.version = 11 : i64} {
  func.func @query_block_kernel(%arg0: memref<64x128xbf16, #tpu.memory_space<vmem>>, %arg1: memref<32x64xbf16, #tpu.memory_space<vmem>>, %arg2: memref<32x1xf32, #tpu.memory_space<vmem>>, %arg3: memref<2x32xf32, #tpu.memory_space<vmem>>, %arg4: memref<128x128xbf16, #tpu.memory_space<vmem>>, %arg5: memref<128x128xf32, #tpu.memory_space<vmem>>, %arg6: memref<1x128xf32, #tpu.memory_space<vmem>>, %arg7: memref<128x128xbf16, #tpu.memory_space<vmem>>, %arg8: memref<128x128xf32, #tpu.memory_space<vmem>>, %arg9: memref<1x128xf32, #tpu.memory_space<vmem>>, %arg10: memref<32x16xbf16, #tpu.memory_space<vmem>>, %arg11: memref<32x1xf32, #tpu.memory_space<vmem>>, %arg12: memref<32x256xf32, #tpu.memory_space<vmem>>, %arg13: memref<32x128xbf16, #tpu.memory_space<vmem>>, %arg14: memref<16x256xbf16, #tpu.memory_space<vmem>>) attributes {dimension_semantics = [], scalar_prefetch = 0 : i64, scratch_operands = 2 : i64, tpu.core_type = #tpu.core_type<tc>} {
    %c0 = arith.constant 0 : index
    %c0_0 = arith.constant 0 : index
    %0 = vector.load %arg1[%c0, %c0_0] : memref<32x64xbf16, #tpu.memory_space<vmem>>, vector<32x64xbf16>
    %c0_1 = arith.constant 0 : index
    %c0_2 = arith.constant 0 : index
    %1 = vector.load %arg0[%c0_1, %c0_2] : memref<64x128xbf16, #tpu.memory_space<vmem>>, vector<64x128xbf16>
    %cst = arith.constant dense<0.000000e+00> : vector<32x128xf32>
    %2 = tpu.matmul %0, %1, %cst {dimension_numbers = #tpu.dot_dimension_numbers<[1], [0], [0], [1], [0, 0, 1, 1], [], []>} : vector<32x64xbf16>, vector<64x128xbf16>, vector<32x128xf32> -> vector<32x128xf32>
    %c0_3 = arith.constant 0 : index
    %c0_4 = arith.constant 0 : index
    %3 = vector.load %arg2[%c0_3, %c0_4] : memref<32x1xf32, #tpu.memory_space<vmem>>, vector<32x1xf32>
    %4 = vector.broadcast %3 : vector<32x1xf32> to vector<32x128xf32>
    %5 = arith.addf %2, %4 : vector<32x128xf32>
    %c0_5 = arith.constant 0 : index
    %c0_6 = arith.constant 0 : index
    %6 = vector.load %arg3[%c0_5, %c0_6] : memref<2x32xf32, #tpu.memory_space<vmem>>, vector<2x32xf32>
    %cst_7 = arith.constant dense<0.000000e+00> : vector<2x128xf32>
    %7 = tpu.matmul %6, %5, %cst_7 {dimension_numbers = #tpu.dot_dimension_numbers<[1], [0], [0], [1], [0, 0, 1, 1], [], []>} : vector<2x32xf32>, vector<32x128xf32>, vector<2x128xf32> -> vector<2x128xf32>
    %8 = tpu.concatenate %7, %7, %7, %7, %7, %7, %7, %7, %7, %7, %7, %7, %7, %7, %7, %7 in 0 : vector<2x128xf32>, vector<2x128xf32>, vector<2x128xf32>, vector<2x128xf32>, vector<2x128xf32>, vector<2x128xf32>, vector<2x128xf32>, vector<2x128xf32>, vector<2x128xf32>, vector<2x128xf32>, vector<2x128xf32>, vector<2x128xf32>, vector<2x128xf32>, vector<2x128xf32>, vector<2x128xf32>, vector<2x128xf32> -> vector<32x128xf32>
    %9 = arith.subf %5, %8 : vector<32x128xf32>
    %c0_8 = arith.constant 0 : index
    %c0_9 = arith.constant 0 : index
    %10 = vector.load %arg3[%c0_8, %c0_9] : memref<2x32xf32, #tpu.memory_space<vmem>>, vector<2x32xf32>
    %11 = arith.mulf %9, %9 : vector<32x128xf32>
    %cst_10 = arith.constant dense<0.000000e+00> : vector<2x128xf32>
    %12 = tpu.matmul %10, %11, %cst_10 {dimension_numbers = #tpu.dot_dimension_numbers<[1], [0], [0], [1], [0, 0, 1, 1], [], []>} : vector<2x32xf32>, vector<32x128xf32>, vector<2x128xf32> -> vector<2x128xf32>
    %13 = arith.truncf %5 : vector<32x128xf32> to vector<32x128xbf16>
    %c0_11 = arith.constant 0 : index
    %c0_12 = arith.constant 0 : index
    %14 = vector.load %arg4[%c0_11, %c0_12] : memref<128x128xbf16, #tpu.memory_space<vmem>>, vector<128x128xbf16>
    %cst_13 = arith.constant dense<0.000000e+00> : vector<32x128xf32>
    %15 = tpu.matmul %13, %14, %cst_13 {dimension_numbers = #tpu.dot_dimension_numbers<[1], [0], [0], [1], [0, 0, 1, 1], [], []>} : vector<32x128xbf16>, vector<128x128xbf16>, vector<32x128xf32> -> vector<32x128xf32>
    %c0_14 = arith.constant 0 : index
    %c0_15 = arith.constant 0 : index
    %16 = vector.load %arg6[%c0_14, %c0_15] : memref<1x128xf32, #tpu.memory_space<vmem>>, vector<1x128xf32>
    %17 = vector.broadcast %16 : vector<1x128xf32> to vector<32x128xf32>
    %18 = arith.addf %15, %17 : vector<32x128xf32>
    %c0_16 = arith.constant 0 : index
    %c0_17 = arith.constant 0 : index
    %19 = vector.load %arg5[%c0_16, %c0_17] : memref<128x128xf32, #tpu.memory_space<vmem>>, vector<128x128xf32>
    %20 = vector.extract_strided_slice %18 {offsets = [0, 0], sizes = [2, 128], strides = [1, 1]} : vector<32x128xf32> to vector<2x128xf32>
    %cst_18 = arith.constant dense<0.000000e+00> : vector<2x128xf32>
    %21 = tpu.matmul %7, %19, %cst_18 {dimension_numbers = #tpu.dot_dimension_numbers<[1], [0], [0], [1], [0, 0, 1, 1], [], []>} : vector<2x128xf32>, vector<128x128xf32>, vector<2x128xf32> -> vector<2x128xf32>
    %22 = arith.addf %20, %21 : vector<2x128xf32>
    %23 = math.tanh %22 : vector<2x128xf32>
    %24 = arith.truncf %23 : vector<2x128xf32> to vector<2x128xbf16>
    %c0_19 = arith.constant 0 : index
    %c0_20 = arith.constant 0 : index
    %25 = vector.load %arg13[%c0_19, %c0_20] : memref<32x128xbf16, #tpu.memory_space<vmem>>, vector<2x128xbf16>
    tpu.vector_store %arg13[%c0_19, %c0_20], %24 {strides = array<i32>} : memref<32x128xbf16, #tpu.memory_space<vmem>>, vector<2x128xbf16>,
    %26 = vector.extract_strided_slice %18 {offsets = [2, 0], sizes = [2, 128], strides = [1, 1]} : vector<32x128xf32> to vector<2x128xf32>
    %cst_21 = arith.constant dense<0.000000e+00> : vector<2x128xf32>
    %27 = tpu.matmul %23, %19, %cst_21 {dimension_numbers = #tpu.dot_dimension_numbers<[1], [0], [0], [1], [0, 0, 1, 1], [], []>} : vector<2x128xf32>, vector<128x128xf32>, vector<2x128xf32> -> vector<2x128xf32>
    %28 = arith.addf %26, %27 : vector<2x128xf32>
    %29 = math.tanh %28 : vector<2x128xf32>
    %30 = arith.truncf %29 : vector<2x128xf32> to vector<2x128xbf16>
    %c2 = arith.constant 2 : index
    %c0_22 = arith.constant 0 : index
    %31 = vector.load %arg13[%c2, %c0_22] : memref<32x128xbf16, #tpu.memory_space<vmem>>, vector<2x128xbf16>
    tpu.vector_store %arg13[%c2, %c0_22], %30 {strides = array<i32>} : memref<32x128xbf16, #tpu.memory_space<vmem>>, vector<2x128xbf16>,
    %32 = vector.extract_strided_slice %18 {offsets = [4, 0], sizes = [2, 128], strides = [1, 1]} : vector<32x128xf32> to vector<2x128xf32>
    %cst_23 = arith.constant dense<0.000000e+00> : vector<2x128xf32>
    %33 = tpu.matmul %29, %19, %cst_23 {dimension_numbers = #tpu.dot_dimension_numbers<[1], [0], [0], [1], [0, 0, 1, 1], [], []>} : vector<2x128xf32>, vector<128x128xf32>, vector<2x128xf32> -> vector<2x128xf32>
    %34 = arith.addf %32, %33 : vector<2x128xf32>
    %35 = math.tanh %34 : vector<2x128xf32>
    %36 = arith.truncf %35 : vector<2x128xf32> to vector<2x128xbf16>
    %c4 = arith.constant 4 : index
    %c0_24 = arith.constant 0 : index
    %37 = vector.load %arg13[%c4, %c0_24] : memref<32x128xbf16, #tpu.memory_space<vmem>>, vector<2x128xbf16>
    tpu.vector_store %arg13[%c4, %c0_24], %36 {strides = array<i32>} : memref<32x128xbf16, #tpu.memory_space<vmem>>, vector<2x128xbf16>,
    %38 = vector.extract_strided_slice %18 {offsets = [6, 0], sizes = [2, 128], strides = [1, 1]} : vector<32x128xf32> to vector<2x128xf32>
    %cst_25 = arith.constant dense<0.000000e+00> : vector<2x128xf32>
    %39 = tpu.matmul %35, %19, %cst_25 {dimension_numbers = #tpu.dot_dimension_numbers<[1], [0], [0], [1], [0, 0, 1, 1], [], []>} : vector<2x128xf32>, vector<128x128xf32>, vector<2x128xf32> -> vector<2x128xf32>
    %40 = arith.addf %38, %39 : vector<2x128xf32>
    %41 = math.tanh %40 : vector<2x128xf32>
    %42 = arith.truncf %41 : vector<2x128xf32> to vector<2x128xbf16>
    %c6 = arith.constant 6 : index
    %c0_26 = arith.constant 0 : index
    %43 = vector.load %arg13[%c6, %c0_26] : memref<32x128xbf16, #tpu.memory_space<vmem>>, vector<2x128xbf16>
    tpu.vector_store %arg13[%c6, %c0_26], %42 {strides = array<i32>} : memref<32x128xbf16, #tpu.memory_space<vmem>>, vector<2x128xbf16>,
    %44 = vector.extract_strided_slice %18 {offsets = [8, 0], sizes = [2, 128], strides = [1, 1]} : vector<32x128xf32> to vector<2x128xf32>
    %cst_27 = arith.constant dense<0.000000e+00> : vector<2x128xf32>
    %45 = tpu.matmul %41, %19, %cst_27 {dimension_numbers = #tpu.dot_dimension_numbers<[1], [0], [0], [1], [0, 0, 1, 1], [], []>} : vector<2x128xf32>, vector<128x128xf32>, vector<2x128xf32> -> vector<2x128xf32>
    %46 = arith.addf %44, %45 : vector<2x128xf32>
    %47 = math.tanh %46 : vector<2x128xf32>
    %48 = arith.truncf %47 : vector<2x128xf32> to vector<2x128xbf16>
    %c8 = arith.constant 8 : index
    %c0_28 = arith.constant 0 : index
    %49 = vector.load %arg13[%c8, %c0_28] : memref<32x128xbf16, #tpu.memory_space<vmem>>, vector<2x128xbf16>
    tpu.vector_store %arg13[%c8, %c0_28], %48 {strides = array<i32>} : memref<32x128xbf16, #tpu.memory_space<vmem>>, vector<2x128xbf16>,
    %50 = vector.extract_strided_slice %18 {offsets = [10, 0], sizes = [2, 128], strides = [1, 1]} : vector<32x128xf32> to vector<2x128xf32>
    %cst_29 = arith.constant dense<0.000000e+00> : vector<2x128xf32>
    %51 = tpu.matmul %47, %19, %cst_29 {dimension_numbers = #tpu.dot_dimension_numbers<[1], [0], [0], [1], [0, 0, 1, 1], [], []>} : vector<2x128xf32>, vector<128x128xf32>, vector<2x128xf32> -> vector<2x128xf32>
    %52 = arith.addf %50, %51 : vector<2x128xf32>
    %53 = math.tanh %52 : vector<2x128xf32>
    %54 = arith.truncf %53 : vector<2x128xf32> to vector<2x128xbf16>
    %c10 = arith.constant 10 : index
    %c0_30 = arith.constant 0 : index
    %55 = vector.load %arg13[%c10, %c0_30] : memref<32x128xbf16, #tpu.memory_space<vmem>>, vector<2x128xbf16>
    tpu.vector_store %arg13[%c10, %c0_30], %54 {strides = array<i32>} : memref<32x128xbf16, #tpu.memory_space<vmem>>, vector<2x128xbf16>,
    %56 = vector.extract_strided_slice %18 {offsets = [12, 0], sizes = [2, 128], strides = [1, 1]} : vector<32x128xf32> to vector<2x128xf32>
    %cst_31 = arith.constant dense<0.000000e+00> : vector<2x128xf32>
    %57 = tpu.matmul %53, %19, %cst_31 {dimension_numbers = #tpu.dot_dimension_numbers<[1], [0], [0], [1], [0, 0, 1, 1], [], []>} : vector<2x128xf32>, vector<128x128xf32>, vector<2x128xf32> -> vector<2x128xf32>
    %58 = arith.addf %56, %57 : vector<2x128xf32>
    %59 = math.tanh %58 : vector<2x128xf32>
    %60 = arith.truncf %59 : vector<2x128xf32> to vector<2x128xbf16>
    %c12 = arith.constant 12 : index
    %c0_32 = arith.constant 0 : index
    %61 = vector.load %arg13[%c12, %c0_32] : memref<32x128xbf16, #tpu.memory_space<vmem>>, vector<2x128xbf16>
    tpu.vector_store %arg13[%c12, %c0_32], %60 {strides = array<i32>} : memref<32x128xbf16, #tpu.memory_space<vmem>>, vector<2x128xbf16>,
    %62 = vector.extract_strided_slice %18 {offsets = [14, 0], sizes = [2, 128], strides = [1, 1]} : vector<32x128xf32> to vector<2x128xf32>
    %cst_33 = arith.constant dense<0.000000e+00> : vector<2x128xf32>
    %63 = tpu.matmul %59, %19, %cst_33 {dimension_numbers = #tpu.dot_dimension_numbers<[1], [0], [0], [1], [0, 0, 1, 1], [], []>} : vector<2x128xf32>, vector<128x128xf32>, vector<2x128xf32> -> vector<2x128xf32>
    %64 = arith.addf %62, %63 : vector<2x128xf32>
    %65 = math.tanh %64 : vector<2x128xf32>
    %66 = arith.truncf %65 : vector<2x128xf32> to vector<2x128xbf16>
    %c14 = arith.constant 14 : index
    %c0_34 = arith.constant 0 : index
    %67 = vector.load %arg13[%c14, %c0_34] : memref<32x128xbf16, #tpu.memory_space<vmem>>, vector<2x128xbf16>
    tpu.vector_store %arg13[%c14, %c0_34], %66 {strides = array<i32>} : memref<32x128xbf16, #tpu.memory_space<vmem>>, vector<2x128xbf16>,
    %68 = vector.extract_strided_slice %18 {offsets = [16, 0], sizes = [2, 128], strides = [1, 1]} : vector<32x128xf32> to vector<2x128xf32>
    %cst_35 = arith.constant dense<0.000000e+00> : vector<2x128xf32>
    %69 = tpu.matmul %65, %19, %cst_35 {dimension_numbers = #tpu.dot_dimension_numbers<[1], [0], [0], [1], [0, 0, 1, 1], [], []>} : vector<2x128xf32>, vector<128x128xf32>, vector<2x128xf32> -> vector<2x128xf32>
    %70 = arith.addf %68, %69 : vector<2x128xf32>
    %71 = math.tanh %70 : vector<2x128xf32>
    %72 = arith.truncf %71 : vector<2x128xf32> to vector<2x128xbf16>
    %c16 = arith.constant 16 : index
    %c0_36 = arith.constant 0 : index
    %73 = vector.load %arg13[%c16, %c0_36] : memref<32x128xbf16, #tpu.memory_space<vmem>>, vector<2x128xbf16>
    tpu.vector_store %arg13[%c16, %c0_36], %72 {strides = array<i32>} : memref<32x128xbf16, #tpu.memory_space<vmem>>, vector<2x128xbf16>,
    %74 = vector.extract_strided_slice %18 {offsets = [18, 0], sizes = [2, 128], strides = [1, 1]} : vector<32x128xf32> to vector<2x128xf32>
    %cst_37 = arith.constant dense<0.000000e+00> : vector<2x128xf32>
    %75 = tpu.matmul %71, %19, %cst_37 {dimension_numbers = #tpu.dot_dimension_numbers<[1], [0], [0], [1], [0, 0, 1, 1], [], []>} : vector<2x128xf32>, vector<128x128xf32>, vector<2x128xf32> -> vector<2x128xf32>
    %76 = arith.addf %74, %75 : vector<2x128xf32>
    %77 = math.tanh %76 : vector<2x128xf32>
    %78 = arith.truncf %77 : vector<2x128xf32> to vector<2x128xbf16>
    %c18 = arith.constant 18 : index
    %c0_38 = arith.constant 0 : index
    %79 = vector.load %arg13[%c18, %c0_38] : memref<32x128xbf16, #tpu.memory_space<vmem>>, vector<2x128xbf16>
    tpu.vector_store %arg13[%c18, %c0_38], %78 {strides = array<i32>} : memref<32x128xbf16, #tpu.memory_space<vmem>>, vector<2x128xbf16>,
    %80 = vector.extract_strided_slice %18 {offsets = [20, 0], sizes = [2, 128], strides = [1, 1]} : vector<32x128xf32> to vector<2x128xf32>
    %cst_39 = arith.constant dense<0.000000e+00> : vector<2x128xf32>
    %81 = tpu.matmul %77, %19, %cst_39 {dimension_numbers = #tpu.dot_dimension_numbers<[1], [0], [0], [1], [0, 0, 1, 1], [], []>} : vector<2x128xf32>, vector<128x128xf32>, vector<2x128xf32> -> vector<2x128xf32>
    %82 = arith.addf %80, %81 : vector<2x128xf32>
    %83 = math.tanh %82 : vector<2x128xf32>
    %84 = arith.truncf %83 : vector<2x128xf32> to vector<2x128xbf16>
    %c20 = arith.constant 20 : index
    %c0_40 = arith.constant 0 : index
    %85 = vector.load %arg13[%c20, %c0_40] : memref<32x128xbf16, #tpu.memory_space<vmem>>, vector<2x128xbf16>
    tpu.vector_store %arg13[%c20, %c0_40], %84 {strides = array<i32>} : memref<32x128xbf16, #tpu.memory_space<vmem>>, vector<2x128xbf16>,
    %86 = vector.extract_strided_slice %18 {offsets = [22, 0], sizes = [2, 128], strides = [1, 1]} : vector<32x128xf32> to vector<2x128xf32>
    %cst_41 = arith.constant dense<0.000000e+00> : vector<2x128xf32>
    %87 = tpu.matmul %83, %19, %cst_41 {dimension_numbers = #tpu.dot_dimension_numbers<[1], [0], [0], [1], [0, 0, 1, 1], [], []>} : vector<2x128xf32>, vector<128x128xf32>, vector<2x128xf32> -> vector<2x128xf32>
    %88 = arith.addf %86, %87 : vector<2x128xf32>
    %89 = math.tanh %88 : vector<2x128xf32>
    %90 = arith.truncf %89 : vector<2x128xf32> to vector<2x128xbf16>
    %c22 = arith.constant 22 : index
    %c0_42 = arith.constant 0 : index
    %91 = vector.load %arg13[%c22, %c0_42] : memref<32x128xbf16, #tpu.memory_space<vmem>>, vector<2x128xbf16>
    tpu.vector_store %arg13[%c22, %c0_42], %90 {strides = array<i32>} : memref<32x128xbf16, #tpu.memory_space<vmem>>, vector<2x128xbf16>,
    %92 = vector.extract_strided_slice %18 {offsets = [24, 0], sizes = [2, 128], strides = [1, 1]} : vector<32x128xf32> to vector<2x128xf32>
    %cst_43 = arith.constant dense<0.000000e+00> : vector<2x128xf32>
    %93 = tpu.matmul %89, %19, %cst_43 {dimension_numbers = #tpu.dot_dimension_numbers<[1], [0], [0], [1], [0, 0, 1, 1], [], []>} : vector<2x128xf32>, vector<128x128xf32>, vector<2x128xf32> -> vector<2x128xf32>
    %94 = arith.addf %92, %93 : vector<2x128xf32>
    %95 = math.tanh %94 : vector<2x128xf32>
    %96 = arith.truncf %95 : vector<2x128xf32> to vector<2x128xbf16>
    %c24 = arith.constant 24 : index
    %c0_44 = arith.constant 0 : index
    %97 = vector.load %arg13[%c24, %c0_44] : memref<32x128xbf16, #tpu.memory_space<vmem>>, vector<2x128xbf16>
    tpu.vector_store %arg13[%c24, %c0_44], %96 {strides = array<i32>} : memref<32x128xbf16, #tpu.memory_space<vmem>>, vector<2x128xbf16>,
    %98 = vector.extract_strided_slice %18 {offsets = [26, 0], sizes = [2, 128], strides = [1, 1]} : vector<32x128xf32> to vector<2x128xf32>
    %cst_45 = arith.constant dense<0.000000e+00> : vector<2x128xf32>
    %99 = tpu.matmul %95, %19, %cst_45 {dimension_numbers = #tpu.dot_dimension_numbers<[1], [0], [0], [1], [0, 0, 1, 1], [], []>} : vector<2x128xf32>, vector<128x128xf32>, vector<2x128xf32> -> vector<2x128xf32>
    %100 = arith.addf %98, %99 : vector<2x128xf32>
    %101 = math.tanh %100 : vector<2x128xf32>
    %102 = arith.truncf %101 : vector<2x128xf32> to vector<2x128xbf16>
    %c26 = arith.constant 26 : index
    %c0_46 = arith.constant 0 : index
    %103 = vector.load %arg13[%c26, %c0_46] : memref<32x128xbf16, #tpu.memory_space<vmem>>, vector<2x128xbf16>
    tpu.vector_store %arg13[%c26, %c0_46], %102 {strides = array<i32>} : memref<32x128xbf16, #tpu.memory_space<vmem>>, vector<2x128xbf16>,
    %104 = vector.extract_strided_slice %18 {offsets = [28, 0], sizes = [2, 128], strides = [1, 1]} : vector<32x128xf32> to vector<2x128xf32>
    %cst_47 = arith.constant dense<0.000000e+00> : vector<2x128xf32>
    %105 = tpu.matmul %101, %19, %cst_47 {dimension_numbers = #tpu.dot_dimension_numbers<[1], [0], [0], [1], [0, 0, 1, 1], [], []>} : vector<2x128xf32>, vector<128x128xf32>, vector<2x128xf32> -> vector<2x128xf32>
    %106 = arith.addf %104, %105 : vector<2x128xf32>
    %107 = math.tanh %106 : vector<2x128xf32>
    %108 = arith.truncf %107 : vector<2x128xf32> to vector<2x128xbf16>
    %c28 = arith.constant 28 : index
    %c0_48 = arith.constant 0 : index
    %109 = vector.load %arg13[%c28, %c0_48] : memref<32x128xbf16, #tpu.memory_space<vmem>>, vector<2x128xbf16>
    tpu.vector_store %arg13[%c28, %c0_48], %108 {strides = array<i32>} : memref<32x128xbf16, #tpu.memory_space<vmem>>, vector<2x128xbf16>,
    %110 = vector.extract_strided_slice %18 {offsets = [30, 0], sizes = [2, 128], strides = [1, 1]} : vector<32x128xf32> to vector<2x128xf32>
    %cst_49 = arith.constant dense<0.000000e+00> : vector<2x128xf32>
    %111 = tpu.matmul %107, %19, %cst_49 {dimension_numbers = #tpu.dot_dimension_numbers<[1], [0], [0], [1], [0, 0, 1, 1], [], []>} : vector<2x128xf32>, vector<128x128xf32>, vector<2x128xf32> -> vector<2x128xf32>
    %112 = arith.addf %110, %111 : vector<2x128xf32>
    %113 = math.tanh %112 : vector<2x128xf32>
    %114 = arith.truncf %113 : vector<2x128xf32> to vector<2x128xbf16>
    %c30 = arith.constant 30 : index
    %c0_50 = arith.constant 0 : index
    %115 = vector.load %arg13[%c30, %c0_50] : memref<32x128xbf16, #tpu.memory_space<vmem>>, vector<2x128xbf16>
    tpu.vector_store %arg13[%c30, %c0_50], %114 {strides = array<i32>} : memref<32x128xbf16, #tpu.memory_space<vmem>>, vector<2x128xbf16>,
    %c0_51 = arith.constant 0 : index
    %c0_52 = arith.constant 0 : index
    %116 = vector.load %arg13[%c0_51, %c0_52] : memref<32x128xbf16, #tpu.memory_space<vmem>>, vector<32x128xbf16>
    %c0_53 = arith.constant 0 : index
    %c0_54 = arith.constant 0 : index
    %117 = vector.load %arg7[%c0_53, %c0_54] : memref<128x128xbf16, #tpu.memory_space<vmem>>, vector<128x128xbf16>
    %cst_55 = arith.constant dense<0.000000e+00> : vector<32x128xf32>
    %118 = tpu.matmul %116, %117, %cst_55 {dimension_numbers = #tpu.dot_dimension_numbers<[1], [0], [0], [1], [0, 0, 1, 1], [], []>} : vector<32x128xbf16>, vector<128x128xbf16>, vector<32x128xf32> -> vector<32x128xf32>
    %c0_56 = arith.constant 0 : index
    %c0_57 = arith.constant 0 : index
    %119 = vector.load %arg9[%c0_56, %c0_57] : memref<1x128xf32, #tpu.memory_space<vmem>>, vector<1x128xf32>
    %120 = vector.broadcast %119 : vector<1x128xf32> to vector<32x128xf32>
    %121 = arith.addf %118, %120 : vector<32x128xf32>
    %c0_58 = arith.constant 0 : index
    %c0_59 = arith.constant 0 : index
    %122 = vector.load %arg8[%c0_58, %c0_59] : memref<128x128xf32, #tpu.memory_space<vmem>>, vector<128x128xf32>
    %123 = vector.extract_strided_slice %121 {offsets = [0, 0], sizes = [2, 128], strides = [1, 1]} : vector<32x128xf32> to vector<2x128xf32>
    %cst_60 = arith.constant dense<0.000000e+00> : vector<2x128xf32>
    %124 = tpu.matmul %12, %122, %cst_60 {dimension_numbers = #tpu.dot_dimension_numbers<[1], [0], [0], [1], [0, 0, 1, 1], [], []>} : vector<2x128xf32>, vector<128x128xf32>, vector<2x128xf32> -> vector<2x128xf32>
    %125 = arith.addf %123, %124 : vector<2x128xf32>
    %126 = math.tanh %125 : vector<2x128xf32>
    %127 = vector.extract_strided_slice %126 {offsets = [0, 0], sizes = [1, 128], strides = [1, 1]} : vector<2x128xf32> to vector<1x128xf32>
    %128 = arith.truncf %127 : vector<1x128xf32> to vector<1x128xbf16>
    %c0_61 = arith.constant 0 : index
    %c0_62 = arith.constant 0 : index
    %129 = vector.load %arg14[%c0_61, %c0_62] : memref<16x256xbf16, #tpu.memory_space<vmem>>, vector<1x128xbf16>
    tpu.vector_store %arg14[%c0_61, %c0_62], %128 {strides = array<i32>} : memref<16x256xbf16, #tpu.memory_space<vmem>>, vector<1x128xbf16>,
    %130 = vector.extract_strided_slice %126 {offsets = [1, 0], sizes = [1, 128], strides = [1, 1]} : vector<2x128xf32> to vector<1x128xf32>
    %131 = arith.truncf %130 : vector<1x128xf32> to vector<1x128xbf16>
    %c0_63 = arith.constant 0 : index
    %c128 = arith.constant 128 : index
    %132 = vector.load %arg14[%c0_63, %c128] : memref<16x256xbf16, #tpu.memory_space<vmem>>, vector<1x128xbf16>
    tpu.vector_store %arg14[%c0_63, %c128], %131 {strides = array<i32>} : memref<16x256xbf16, #tpu.memory_space<vmem>>, vector<1x128xbf16>,
    %133 = vector.extract_strided_slice %121 {offsets = [2, 0], sizes = [2, 128], strides = [1, 1]} : vector<32x128xf32> to vector<2x128xf32>
    %cst_64 = arith.constant dense<0.000000e+00> : vector<2x128xf32>
    %134 = tpu.matmul %126, %122, %cst_64 {dimension_numbers = #tpu.dot_dimension_numbers<[1], [0], [0], [1], [0, 0, 1, 1], [], []>} : vector<2x128xf32>, vector<128x128xf32>, vector<2x128xf32> -> vector<2x128xf32>
    %135 = arith.addf %133, %134 : vector<2x128xf32>
    %136 = math.tanh %135 : vector<2x128xf32>
    %137 = vector.extract_strided_slice %136 {offsets = [0, 0], sizes = [1, 128], strides = [1, 1]} : vector<2x128xf32> to vector<1x128xf32>
    %138 = arith.truncf %137 : vector<1x128xf32> to vector<1x128xbf16>
    %c1 = arith.constant 1 : index
    %c0_65 = arith.constant 0 : index
    %139 = vector.load %arg14[%c1, %c0_65] : memref<16x256xbf16, #tpu.memory_space<vmem>>, vector<1x128xbf16>
    tpu.vector_store %arg14[%c1, %c0_65], %138 {strides = array<i32>} : memref<16x256xbf16, #tpu.memory_space<vmem>>, vector<1x128xbf16>,
    %140 = vector.extract_strided_slice %136 {offsets = [1, 0], sizes = [1, 128], strides = [1, 1]} : vector<2x128xf32> to vector<1x128xf32>
    %141 = arith.truncf %140 : vector<1x128xf32> to vector<1x128xbf16>
    %c1_66 = arith.constant 1 : index
    %c128_67 = arith.constant 128 : index
    %142 = vector.load %arg14[%c1_66, %c128_67] : memref<16x256xbf16, #tpu.memory_space<vmem>>, vector<1x128xbf16>
    tpu.vector_store %arg14[%c1_66, %c128_67], %141 {strides = array<i32>} : memref<16x256xbf16, #tpu.memory_space<vmem>>, vector<1x128xbf16>,
    %143 = vector.extract_strided_slice %121 {offsets = [4, 0], sizes = [2, 128], strides = [1, 1]} : vector<32x128xf32> to vector<2x128xf32>
    %cst_68 = arith.constant dense<0.000000e+00> : vector<2x128xf32>
    %144 = tpu.matmul %136, %122, %cst_68 {dimension_numbers = #tpu.dot_dimension_numbers<[1], [0], [0], [1], [0, 0, 1, 1], [], []>} : vector<2x128xf32>, vector<128x128xf32>, vector<2x128xf32> -> vector<2x128xf32>
    %145 = arith.addf %143, %144 : vector<2x128xf32>
    %146 = math.tanh %145 : vector<2x128xf32>
    %147 = vector.extract_strided_slice %146 {offsets = [0, 0], sizes = [1, 128], strides = [1, 1]} : vector<2x128xf32> to vector<1x128xf32>
    %148 = arith.truncf %147 : vector<1x128xf32> to vector<1x128xbf16>
    %c2_69 = arith.constant 2 : index
    %c0_70 = arith.constant 0 : index
    %149 = vector.load %arg14[%c2_69, %c0_70] : memref<16x256xbf16, #tpu.memory_space<vmem>>, vector<1x128xbf16>
    tpu.vector_store %arg14[%c2_69, %c0_70], %148 {strides = array<i32>} : memref<16x256xbf16, #tpu.memory_space<vmem>>, vector<1x128xbf16>,
    %150 = vector.extract_strided_slice %146 {offsets = [1, 0], sizes = [1, 128], strides = [1, 1]} : vector<2x128xf32> to vector<1x128xf32>
    %151 = arith.truncf %150 : vector<1x128xf32> to vector<1x128xbf16>
    %c2_71 = arith.constant 2 : index
    %c128_72 = arith.constant 128 : index
    %152 = vector.load %arg14[%c2_71, %c128_72] : memref<16x256xbf16, #tpu.memory_space<vmem>>, vector<1x128xbf16>
    tpu.vector_store %arg14[%c2_71, %c128_72], %151 {strides = array<i32>} : memref<16x256xbf16, #tpu.memory_space<vmem>>, vector<1x128xbf16>,
    %153 = vector.extract_strided_slice %121 {offsets = [6, 0], sizes = [2, 128], strides = [1, 1]} : vector<32x128xf32> to vector<2x128xf32>
    %cst_73 = arith.constant dense<0.000000e+00> : vector<2x128xf32>
    %154 = tpu.matmul %146, %122, %cst_73 {dimension_numbers = #tpu.dot_dimension_numbers<[1], [0], [0], [1], [0, 0, 1, 1], [], []>} : vector<2x128xf32>, vector<128x128xf32>, vector<2x128xf32> -> vector<2x128xf32>
    %155 = arith.addf %153, %154 : vector<2x128xf32>
    %156 = math.tanh %155 : vector<2x128xf32>
    %157 = vector.extract_strided_slice %156 {offsets = [0, 0], sizes = [1, 128], strides = [1, 1]} : vector<2x128xf32> to vector<1x128xf32>
    %158 = arith.truncf %157 : vector<1x128xf32> to vector<1x128xbf16>
    %c3 = arith.constant 3 : index
    %c0_74 = arith.constant 0 : index
    %159 = vector.load %arg14[%c3, %c0_74] : memref<16x256xbf16, #tpu.memory_space<vmem>>, vector<1x128xbf16>
    tpu.vector_store %arg14[%c3, %c0_74], %158 {strides = array<i32>} : memref<16x256xbf16, #tpu.memory_space<vmem>>, vector<1x128xbf16>,
    %160 = vector.extract_strided_slice %156 {offsets = [1, 0], sizes = [1, 128], strides = [1, 1]} : vector<2x128xf32> to vector<1x128xf32>
    %161 = arith.truncf %160 : vector<1x128xf32> to vector<1x128xbf16>
    %c3_75 = arith.constant 3 : index
    %c128_76 = arith.constant 128 : index
    %162 = vector.load %arg14[%c3_75, %c128_76] : memref<16x256xbf16, #tpu.memory_space<vmem>>, vector<1x128xbf16>
    tpu.vector_store %arg14[%c3_75, %c128_76], %161 {strides = array<i32>} : memref<16x256xbf16, #tpu.memory_space<vmem>>, vector<1x128xbf16>,
    %163 = vector.extract_strided_slice %121 {offsets = [8, 0], sizes = [2, 128], strides = [1, 1]} : vector<32x128xf32> to vector<2x128xf32>
    %cst_77 = arith.constant dense<0.000000e+00> : vector<2x128xf32>
    %164 = tpu.matmul %156, %122, %cst_77 {dimension_numbers = #tpu.dot_dimension_numbers<[1], [0], [0], [1], [0, 0, 1, 1], [], []>} : vector<2x128xf32>, vector<128x128xf32>, vector<2x128xf32> -> vector<2x128xf32>
    %165 = arith.addf %163, %164 : vector<2x128xf32>
    %166 = math.tanh %165 : vector<2x128xf32>
    %167 = vector.extract_strided_slice %166 {offsets = [0, 0], sizes = [1, 128], strides = [1, 1]} : vector<2x128xf32> to vector<1x128xf32>
    %168 = arith.truncf %167 : vector<1x128xf32> to vector<1x128xbf16>
    %c4_78 = arith.constant 4 : index
    %c0_79 = arith.constant 0 : index
    %169 = vector.load %arg14[%c4_78, %c0_79] : memref<16x256xbf16, #tpu.memory_space<vmem>>, vector<1x128xbf16>
    tpu.vector_store %arg14[%c4_78, %c0_79], %168 {strides = array<i32>} : memref<16x256xbf16, #tpu.memory_space<vmem>>, vector<1x128xbf16>,
    %170 = vector.extract_strided_slice %166 {offsets = [1, 0], sizes = [1, 128], strides = [1, 1]} : vector<2x128xf32> to vector<1x128xf32>
    %171 = arith.truncf %170 : vector<1x128xf32> to vector<1x128xbf16>
    %c4_80 = arith.constant 4 : index
    %c128_81 = arith.constant 128 : index
    %172 = vector.load %arg14[%c4_80, %c128_81] : memref<16x256xbf16, #tpu.memory_space<vmem>>, vector<1x128xbf16>
    tpu.vector_store %arg14[%c4_80, %c128_81], %171 {strides = array<i32>} : memref<16x256xbf16, #tpu.memory_space<vmem>>, vector<1x128xbf16>,
    %173 = vector.extract_strided_slice %121 {offsets = [10, 0], sizes = [2, 128], strides = [1, 1]} : vector<32x128xf32> to vector<2x128xf32>
    %cst_82 = arith.constant dense<0.000000e+00> : vector<2x128xf32>
    %174 = tpu.matmul %166, %122, %cst_82 {dimension_numbers = #tpu.dot_dimension_numbers<[1], [0], [0], [1], [0, 0, 1, 1], [], []>} : vector<2x128xf32>, vector<128x128xf32>, vector<2x128xf32> -> vector<2x128xf32>
    %175 = arith.addf %173, %174 : vector<2x128xf32>
    %176 = math.tanh %175 : vector<2x128xf32>
    %177 = vector.extract_strided_slice %176 {offsets = [0, 0], sizes = [1, 128], strides = [1, 1]} : vector<2x128xf32> to vector<1x128xf32>
    %178 = arith.truncf %177 : vector<1x128xf32> to vector<1x128xbf16>
    %c5 = arith.constant 5 : index
    %c0_83 = arith.constant 0 : index
    %179 = vector.load %arg14[%c5, %c0_83] : memref<16x256xbf16, #tpu.memory_space<vmem>>, vector<1x128xbf16>
    tpu.vector_store %arg14[%c5, %c0_83], %178 {strides = array<i32>} : memref<16x256xbf16, #tpu.memory_space<vmem>>, vector<1x128xbf16>,
    %180 = vector.extract_strided_slice %176 {offsets = [1, 0], sizes = [1, 128], strides = [1, 1]} : vector<2x128xf32> to vector<1x128xf32>
    %181 = arith.truncf %180 : vector<1x128xf32> to vector<1x128xbf16>
    %c5_84 = arith.constant 5 : index
    %c128_85 = arith.constant 128 : index
    %182 = vector.load %arg14[%c5_84, %c128_85] : memref<16x256xbf16, #tpu.memory_space<vmem>>, vector<1x128xbf16>
    tpu.vector_store %arg14[%c5_84, %c128_85], %181 {strides = array<i32>} : memref<16x256xbf16, #tpu.memory_space<vmem>>, vector<1x128xbf16>,
    %183 = vector.extract_strided_slice %121 {offsets = [12, 0], sizes = [2, 128], strides = [1, 1]} : vector<32x128xf32> to vector<2x128xf32>
    %cst_86 = arith.constant dense<0.000000e+00> : vector<2x128xf32>
    %184 = tpu.matmul %176, %122, %cst_86 {dimension_numbers = #tpu.dot_dimension_numbers<[1], [0], [0], [1], [0, 0, 1, 1], [], []>} : vector<2x128xf32>, vector<128x128xf32>, vector<2x128xf32> -> vector<2x128xf32>
    %185 = arith.addf %183, %184 : vector<2x128xf32>
    %186 = math.tanh %185 : vector<2x128xf32>
    %187 = vector.extract_strided_slice %186 {offsets = [0, 0], sizes = [1, 128], strides = [1, 1]} : vector<2x128xf32> to vector<1x128xf32>
    %188 = arith.truncf %187 : vector<1x128xf32> to vector<1x128xbf16>
    %c6_87 = arith.constant 6 : index
    %c0_88 = arith.constant 0 : index
    %189 = vector.load %arg14[%c6_87, %c0_88] : memref<16x256xbf16, #tpu.memory_space<vmem>>, vector<1x128xbf16>
    tpu.vector_store %arg14[%c6_87, %c0_88], %188 {strides = array<i32>} : memref<16x256xbf16, #tpu.memory_space<vmem>>, vector<1x128xbf16>,
    %190 = vector.extract_strided_slice %186 {offsets = [1, 0], sizes = [1, 128], strides = [1, 1]} : vector<2x128xf32> to vector<1x128xf32>
    %191 = arith.truncf %190 : vector<1x128xf32> to vector<1x128xbf16>
    %c6_89 = arith.constant 6 : index
    %c128_90 = arith.constant 128 : index
    %192 = vector.load %arg14[%c6_89, %c128_90] : memref<16x256xbf16, #tpu.memory_space<vmem>>, vector<1x128xbf16>
    tpu.vector_store %arg14[%c6_89, %c128_90], %191 {strides = array<i32>} : memref<16x256xbf16, #tpu.memory_space<vmem>>, vector<1x128xbf16>,
    %193 = vector.extract_strided_slice %121 {offsets = [14, 0], sizes = [2, 128], strides = [1, 1]} : vector<32x128xf32> to vector<2x128xf32>
    %cst_91 = arith.constant dense<0.000000e+00> : vector<2x128xf32>
    %194 = tpu.matmul %186, %122, %cst_91 {dimension_numbers = #tpu.dot_dimension_numbers<[1], [0], [0], [1], [0, 0, 1, 1], [], []>} : vector<2x128xf32>, vector<128x128xf32>, vector<2x128xf32> -> vector<2x128xf32>
    %195 = arith.addf %193, %194 : vector<2x128xf32>
    %196 = math.tanh %195 : vector<2x128xf32>
    %197 = vector.extract_strided_slice %196 {offsets = [0, 0], sizes = [1, 128], strides = [1, 1]} : vector<2x128xf32> to vector<1x128xf32>
    %198 = arith.truncf %197 : vector<1x128xf32> to vector<1x128xbf16>
    %c7 = arith.constant 7 : index
    %c0_92 = arith.constant 0 : index
    %199 = vector.load %arg14[%c7, %c0_92] : memref<16x256xbf16, #tpu.memory_space<vmem>>, vector<1x128xbf16>
    tpu.vector_store %arg14[%c7, %c0_92], %198 {strides = array<i32>} : memref<16x256xbf16, #tpu.memory_space<vmem>>, vector<1x128xbf16>,
    %200 = vector.extract_strided_slice %196 {offsets = [1, 0], sizes = [1, 128], strides = [1, 1]} : vector<2x128xf32> to vector<1x128xf32>
    %201 = arith.truncf %200 : vector<1x128xf32> to vector<1x128xbf16>
    %c7_93 = arith.constant 7 : index
    %c128_94 = arith.constant 128 : index
    %202 = vector.load %arg14[%c7_93, %c128_94] : memref<16x256xbf16, #tpu.memory_space<vmem>>, vector<1x128xbf16>
    tpu.vector_store %arg14[%c7_93, %c128_94], %201 {strides = array<i32>} : memref<16x256xbf16, #tpu.memory_space<vmem>>, vector<1x128xbf16>,
    %203 = vector.extract_strided_slice %121 {offsets = [16, 0], sizes = [2, 128], strides = [1, 1]} : vector<32x128xf32> to vector<2x128xf32>
    %cst_95 = arith.constant dense<0.000000e+00> : vector<2x128xf32>
    %204 = tpu.matmul %196, %122, %cst_95 {dimension_numbers = #tpu.dot_dimension_numbers<[1], [0], [0], [1], [0, 0, 1, 1], [], []>} : vector<2x128xf32>, vector<128x128xf32>, vector<2x128xf32> -> vector<2x128xf32>
    %205 = arith.addf %203, %204 : vector<2x128xf32>
    %206 = math.tanh %205 : vector<2x128xf32>
    %207 = vector.extract_strided_slice %206 {offsets = [0, 0], sizes = [1, 128], strides = [1, 1]} : vector<2x128xf32> to vector<1x128xf32>
    %208 = arith.truncf %207 : vector<1x128xf32> to vector<1x128xbf16>
    %c8_96 = arith.constant 8 : index
    %c0_97 = arith.constant 0 : index
    %209 = vector.load %arg14[%c8_96, %c0_97] : memref<16x256xbf16, #tpu.memory_space<vmem>>, vector<1x128xbf16>
    tpu.vector_store %arg14[%c8_96, %c0_97], %208 {strides = array<i32>} : memref<16x256xbf16, #tpu.memory_space<vmem>>, vector<1x128xbf16>,
    %210 = vector.extract_strided_slice %206 {offsets = [1, 0], sizes = [1, 128], strides = [1, 1]} : vector<2x128xf32> to vector<1x128xf32>
    %211 = arith.truncf %210 : vector<1x128xf32> to vector<1x128xbf16>
    %c8_98 = arith.constant 8 : index
    %c128_99 = arith.constant 128 : index
    %212 = vector.load %arg14[%c8_98, %c128_99] : memref<16x256xbf16, #tpu.memory_space<vmem>>, vector<1x128xbf16>
    tpu.vector_store %arg14[%c8_98, %c128_99], %211 {strides = array<i32>} : memref<16x256xbf16, #tpu.memory_space<vmem>>, vector<1x128xbf16>,
    %213 = vector.extract_strided_slice %121 {offsets = [18, 0], sizes = [2, 128], strides = [1, 1]} : vector<32x128xf32> to vector<2x128xf32>
    %cst_100 = arith.constant dense<0.000000e+00> : vector<2x128xf32>
    %214 = tpu.matmul %206, %122, %cst_100 {dimension_numbers = #tpu.dot_dimension_numbers<[1], [0], [0], [1], [0, 0, 1, 1], [], []>} : vector<2x128xf32>, vector<128x128xf32>, vector<2x128xf32> -> vector<2x128xf32>
    %215 = arith.addf %213, %214 : vector<2x128xf32>
    %216 = math.tanh %215 : vector<2x128xf32>
    %217 = vector.extract_strided_slice %216 {offsets = [0, 0], sizes = [1, 128], strides = [1, 1]} : vector<2x128xf32> to vector<1x128xf32>
    %218 = arith.truncf %217 : vector<1x128xf32> to vector<1x128xbf16>
    %c9 = arith.constant 9 : index
    %c0_101 = arith.constant 0 : index
    %219 = vector.load %arg14[%c9, %c0_101] : memref<16x256xbf16, #tpu.memory_space<vmem>>, vector<1x128xbf16>
    tpu.vector_store %arg14[%c9, %c0_101], %218 {strides = array<i32>} : memref<16x256xbf16, #tpu.memory_space<vmem>>, vector<1x128xbf16>,
    %220 = vector.extract_strided_slice %216 {offsets = [1, 0], sizes = [1, 128], strides = [1, 1]} : vector<2x128xf32> to vector<1x128xf32>
    %221 = arith.truncf %220 : vector<1x128xf32> to vector<1x128xbf16>
    %c9_102 = arith.constant 9 : index
    %c128_103 = arith.constant 128 : index
    %222 = vector.load %arg14[%c9_102, %c128_103] : memref<16x256xbf16, #tpu.memory_space<vmem>>, vector<1x128xbf16>
    tpu.vector_store %arg14[%c9_102, %c128_103], %221 {strides = array<i32>} : memref<16x256xbf16, #tpu.memory_space<vmem>>, vector<1x128xbf16>,
    %223 = vector.extract_strided_slice %121 {offsets = [20, 0], sizes = [2, 128], strides = [1, 1]} : vector<32x128xf32> to vector<2x128xf32>
    %cst_104 = arith.constant dense<0.000000e+00> : vector<2x128xf32>
    %224 = tpu.matmul %216, %122, %cst_104 {dimension_numbers = #tpu.dot_dimension_numbers<[1], [0], [0], [1], [0, 0, 1, 1], [], []>} : vector<2x128xf32>, vector<128x128xf32>, vector<2x128xf32> -> vector<2x128xf32>
    %225 = arith.addf %223, %224 : vector<2x128xf32>
    %226 = math.tanh %225 : vector<2x128xf32>
    %227 = vector.extract_strided_slice %226 {offsets = [0, 0], sizes = [1, 128], strides = [1, 1]} : vector<2x128xf32> to vector<1x128xf32>
    %228 = arith.truncf %227 : vector<1x128xf32> to vector<1x128xbf16>
    %c10_105 = arith.constant 10 : index
    %c0_106 = arith.constant 0 : index
    %229 = vector.load %arg14[%c10_105, %c0_106] : memref<16x256xbf16, #tpu.memory_space<vmem>>, vector<1x128xbf16>
    tpu.vector_store %arg14[%c10_105, %c0_106], %228 {strides = array<i32>} : memref<16x256xbf16, #tpu.memory_space<vmem>>, vector<1x128xbf16>,
    %230 = vector.extract_strided_slice %226 {offsets = [1, 0], sizes = [1, 128], strides = [1, 1]} : vector<2x128xf32> to vector<1x128xf32>
    %231 = arith.truncf %230 : vector<1x128xf32> to vector<1x128xbf16>
    %c10_107 = arith.constant 10 : index
    %c128_108 = arith.constant 128 : index
    %232 = vector.load %arg14[%c10_107, %c128_108] : memref<16x256xbf16, #tpu.memory_space<vmem>>, vector<1x128xbf16>
    tpu.vector_store %arg14[%c10_107, %c128_108], %231 {strides = array<i32>} : memref<16x256xbf16, #tpu.memory_space<vmem>>, vector<1x128xbf16>,
    %233 = vector.extract_strided_slice %121 {offsets = [22, 0], sizes = [2, 128], strides = [1, 1]} : vector<32x128xf32> to vector<2x128xf32>
    %cst_109 = arith.constant dense<0.000000e+00> : vector<2x128xf32>
    %234 = tpu.matmul %226, %122, %cst_109 {dimension_numbers = #tpu.dot_dimension_numbers<[1], [0], [0], [1], [0, 0, 1, 1], [], []>} : vector<2x128xf32>, vector<128x128xf32>, vector<2x128xf32> -> vector<2x128xf32>
    %235 = arith.addf %233, %234 : vector<2x128xf32>
    %236 = math.tanh %235 : vector<2x128xf32>
    %237 = vector.extract_strided_slice %236 {offsets = [0, 0], sizes = [1, 128], strides = [1, 1]} : vector<2x128xf32> to vector<1x128xf32>
    %238 = arith.truncf %237 : vector<1x128xf32> to vector<1x128xbf16>
    %c11 = arith.constant 11 : index
    %c0_110 = arith.constant 0 : index
    %239 = vector.load %arg14[%c11, %c0_110] : memref<16x256xbf16, #tpu.memory_space<vmem>>, vector<1x128xbf16>
    tpu.vector_store %arg14[%c11, %c0_110], %238 {strides = array<i32>} : memref<16x256xbf16, #tpu.memory_space<vmem>>, vector<1x128xbf16>,
    %240 = vector.extract_strided_slice %236 {offsets = [1, 0], sizes = [1, 128], strides = [1, 1]} : vector<2x128xf32> to vector<1x128xf32>
    %241 = arith.truncf %240 : vector<1x128xf32> to vector<1x128xbf16>
    %c11_111 = arith.constant 11 : index
    %c128_112 = arith.constant 128 : index
    %242 = vector.load %arg14[%c11_111, %c128_112] : memref<16x256xbf16, #tpu.memory_space<vmem>>, vector<1x128xbf16>
    tpu.vector_store %arg14[%c11_111, %c128_112], %241 {strides = array<i32>} : memref<16x256xbf16, #tpu.memory_space<vmem>>, vector<1x128xbf16>,
    %243 = vector.extract_strided_slice %121 {offsets = [24, 0], sizes = [2, 128], strides = [1, 1]} : vector<32x128xf32> to vector<2x128xf32>
    %cst_113 = arith.constant dense<0.000000e+00> : vector<2x128xf32>
    %244 = tpu.matmul %236, %122, %cst_113 {dimension_numbers = #tpu.dot_dimension_numbers<[1], [0], [0], [1], [0, 0, 1, 1], [], []>} : vector<2x128xf32>, vector<128x128xf32>, vector<2x128xf32> -> vector<2x128xf32>
    %245 = arith.addf %243, %244 : vector<2x128xf32>
    %246 = math.tanh %245 : vector<2x128xf32>
    %247 = vector.extract_strided_slice %246 {offsets = [0, 0], sizes = [1, 128], strides = [1, 1]} : vector<2x128xf32> to vector<1x128xf32>
    %248 = arith.truncf %247 : vector<1x128xf32> to vector<1x128xbf16>
    %c12_114 = arith.constant 12 : index
    %c0_115 = arith.constant 0 : index
    %249 = vector.load %arg14[%c12_114, %c0_115] : memref<16x256xbf16, #tpu.memory_space<vmem>>, vector<1x128xbf16>
    tpu.vector_store %arg14[%c12_114, %c0_115], %248 {strides = array<i32>} : memref<16x256xbf16, #tpu.memory_space<vmem>>, vector<1x128xbf16>,
    %250 = vector.extract_strided_slice %246 {offsets = [1, 0], sizes = [1, 128], strides = [1, 1]} : vector<2x128xf32> to vector<1x128xf32>
    %251 = arith.truncf %250 : vector<1x128xf32> to vector<1x128xbf16>
    %c12_116 = arith.constant 12 : index
    %c128_117 = arith.constant 128 : index
    %252 = vector.load %arg14[%c12_116, %c128_117] : memref<16x256xbf16, #tpu.memory_space<vmem>>, vector<1x128xbf16>
    tpu.vector_store %arg14[%c12_116, %c128_117], %251 {strides = array<i32>} : memref<16x256xbf16, #tpu.memory_space<vmem>>, vector<1x128xbf16>,
    %253 = vector.extract_strided_slice %121 {offsets = [26, 0], sizes = [2, 128], strides = [1, 1]} : vector<32x128xf32> to vector<2x128xf32>
    %cst_118 = arith.constant dense<0.000000e+00> : vector<2x128xf32>
    %254 = tpu.matmul %246, %122, %cst_118 {dimension_numbers = #tpu.dot_dimension_numbers<[1], [0], [0], [1], [0, 0, 1, 1], [], []>} : vector<2x128xf32>, vector<128x128xf32>, vector<2x128xf32> -> vector<2x128xf32>
    %255 = arith.addf %253, %254 : vector<2x128xf32>
    %256 = math.tanh %255 : vector<2x128xf32>
    %257 = vector.extract_strided_slice %256 {offsets = [0, 0], sizes = [1, 128], strides = [1, 1]} : vector<2x128xf32> to vector<1x128xf32>
    %258 = arith.truncf %257 : vector<1x128xf32> to vector<1x128xbf16>
    %c13 = arith.constant 13 : index
    %c0_119 = arith.constant 0 : index
    %259 = vector.load %arg14[%c13, %c0_119] : memref<16x256xbf16, #tpu.memory_space<vmem>>, vector<1x128xbf16>
    tpu.vector_store %arg14[%c13, %c0_119], %258 {strides = array<i32>} : memref<16x256xbf16, #tpu.memory_space<vmem>>, vector<1x128xbf16>,
    %260 = vector.extract_strided_slice %256 {offsets = [1, 0], sizes = [1, 128], strides = [1, 1]} : vector<2x128xf32> to vector<1x128xf32>
    %261 = arith.truncf %260 : vector<1x128xf32> to vector<1x128xbf16>
    %c13_120 = arith.constant 13 : index
    %c128_121 = arith.constant 128 : index
    %262 = vector.load %arg14[%c13_120, %c128_121] : memref<16x256xbf16, #tpu.memory_space<vmem>>, vector<1x128xbf16>
    tpu.vector_store %arg14[%c13_120, %c128_121], %261 {strides = array<i32>} : memref<16x256xbf16, #tpu.memory_space<vmem>>, vector<1x128xbf16>,
    %263 = vector.extract_strided_slice %121 {offsets = [28, 0], sizes = [2, 128], strides = [1, 1]} : vector<32x128xf32> to vector<2x128xf32>
    %cst_122 = arith.constant dense<0.000000e+00> : vector<2x128xf32>
    %264 = tpu.matmul %256, %122, %cst_122 {dimension_numbers = #tpu.dot_dimension_numbers<[1], [0], [0], [1], [0, 0, 1, 1], [], []>} : vector<2x128xf32>, vector<128x128xf32>, vector<2x128xf32> -> vector<2x128xf32>
    %265 = arith.addf %263, %264 : vector<2x128xf32>
    %266 = math.tanh %265 : vector<2x128xf32>
    %267 = vector.extract_strided_slice %266 {offsets = [0, 0], sizes = [1, 128], strides = [1, 1]} : vector<2x128xf32> to vector<1x128xf32>
    %268 = arith.truncf %267 : vector<1x128xf32> to vector<1x128xbf16>
    %c14_123 = arith.constant 14 : index
    %c0_124 = arith.constant 0 : index
    %269 = vector.load %arg14[%c14_123, %c0_124] : memref<16x256xbf16, #tpu.memory_space<vmem>>, vector<1x128xbf16>
    tpu.vector_store %arg14[%c14_123, %c0_124], %268 {strides = array<i32>} : memref<16x256xbf16, #tpu.memory_space<vmem>>, vector<1x128xbf16>,
    %270 = vector.extract_strided_slice %266 {offsets = [1, 0], sizes = [1, 128], strides = [1, 1]} : vector<2x128xf32> to vector<1x128xf32>
    %271 = arith.truncf %270 : vector<1x128xf32> to vector<1x128xbf16>
    %c14_125 = arith.constant 14 : index
    %c128_126 = arith.constant 128 : index
    %272 = vector.load %arg14[%c14_125, %c128_126] : memref<16x256xbf16, #tpu.memory_space<vmem>>, vector<1x128xbf16>
    tpu.vector_store %arg14[%c14_125, %c128_126], %271 {strides = array<i32>} : memref<16x256xbf16, #tpu.memory_space<vmem>>, vector<1x128xbf16>,
    %273 = vector.extract_strided_slice %121 {offsets = [30, 0], sizes = [2, 128], strides = [1, 1]} : vector<32x128xf32> to vector<2x128xf32>
    %cst_127 = arith.constant dense<0.000000e+00> : vector<2x128xf32>
    %274 = tpu.matmul %266, %122, %cst_127 {dimension_numbers = #tpu.dot_dimension_numbers<[1], [0], [0], [1], [0, 0, 1, 1], [], []>} : vector<2x128xf32>, vector<128x128xf32>, vector<2x128xf32> -> vector<2x128xf32>
    %275 = arith.addf %273, %274 : vector<2x128xf32>
    %276 = math.tanh %275 : vector<2x128xf32>
    %277 = vector.extract_strided_slice %276 {offsets = [0, 0], sizes = [1, 128], strides = [1, 1]} : vector<2x128xf32> to vector<1x128xf32>
    %278 = arith.truncf %277 : vector<1x128xf32> to vector<1x128xbf16>
    %c15 = arith.constant 15 : index
    %c0_128 = arith.constant 0 : index
    %279 = vector.load %arg14[%c15, %c0_128] : memref<16x256xbf16, #tpu.memory_space<vmem>>, vector<1x128xbf16>
    tpu.vector_store %arg14[%c15, %c0_128], %278 {strides = array<i32>} : memref<16x256xbf16, #tpu.memory_space<vmem>>, vector<1x128xbf16>,
    %280 = vector.extract_strided_slice %276 {offsets = [1, 0], sizes = [1, 128], strides = [1, 1]} : vector<2x128xf32> to vector<1x128xf32>
    %281 = arith.truncf %280 : vector<1x128xf32> to vector<1x128xbf16>
    %c15_129 = arith.constant 15 : index
    %c128_130 = arith.constant 128 : index
    %282 = vector.load %arg14[%c15_129, %c128_130] : memref<16x256xbf16, #tpu.memory_space<vmem>>, vector<1x128xbf16>
    tpu.vector_store %arg14[%c15_129, %c128_130], %281 {strides = array<i32>} : memref<16x256xbf16, #tpu.memory_space<vmem>>, vector<1x128xbf16>,
    %c0_131 = arith.constant 0 : index
    %c0_132 = arith.constant 0 : index
    %283 = vector.load %arg10[%c0_131, %c0_132] : memref<32x16xbf16, #tpu.memory_space<vmem>>, vector<32x16xbf16>
    %c0_133 = arith.constant 0 : index
    %c0_134 = arith.constant 0 : index
    %284 = vector.load %arg14[%c0_133, %c0_134] : memref<16x256xbf16, #tpu.memory_space<vmem>>, vector<16x256xbf16>
    %cst_135 = arith.constant dense<0.000000e+00> : vector<32x256xf32>
    %285 = tpu.matmul %283, %284, %cst_135 {dimension_numbers = #tpu.dot_dimension_numbers<[1], [0], [0], [1], [0, 0, 1, 1], [], []>} : vector<32x16xbf16>, vector<16x256xbf16>, vector<32x256xf32> -> vector<32x256xf32>
    %c0_136 = arith.constant 0 : index
    %c0_137 = arith.constant 0 : index
    %286 = vector.load %arg11[%c0_136, %c0_137] : memref<32x1xf32, #tpu.memory_space<vmem>>, vector<32x1xf32>
    %287 = vector.broadcast %286 : vector<32x1xf32> to vector<32x256xf32>
    %288 = arith.addf %285, %287 : vector<32x256xf32>
    %c0_138 = arith.constant 0 : index
    %c0_139 = arith.constant 0 : index
    %289 = vector.load %arg12[%c0_138, %c0_139] : memref<32x256xf32, #tpu.memory_space<vmem>>, vector<32x256xf32>
    tpu.vector_store %arg12[%c0_138, %c0_139], %288 {strides = array<i32>} : memref<32x256xf32, #tpu.memory_space<vmem>>, vector<32x256xf32>,
    return
  }
}

</mosaic_0001>

<llo_original>
// kernel: query_block_forward.1
$region0: #{query_block_forward.1}
  #allocation0 [shape = 'u32[]', space=smem, size = 0x4, offset = 0x4, fixed_abs, tag = 'smem constant byte address 0x4 - core index']
  #allocation1 [shape = 'u32[144,128]{1,0:T(1,128)}', space=vmem, size = 0x12000, scoped, tag = 'internal scratch']
  #allocation2 [shape = 'bf16[32,128]{1,0:T(16,128)(2,1)}', space=vmem, size = 0x2000, scoped, tag = 'scratch operand']
  #allocation3 [shape = 'bf16[16,256]{1,0:T(16,128)(2,1)}', space=vmem, size = 0x2000, scoped, tag = 'scratch operand']
  %s0 = inlined_call_operand.vmem [shape: bf16[64,128], index: 0, kind: input, shape index: {}]
  %s1 = inlined_call_operand.vmem [shape: bf16[32,64], index: 1, kind: input, shape index: {}]
  %s2 = inlined_call_operand.vmem [shape: f32[32,1], index: 2, kind: input, shape index: {}]
  %s3 = inlined_call_operand.vmem [shape: f32[2,32], index: 3, kind: input, shape index: {}]
  %s4 = inlined_call_operand.vmem [shape: bf16[128,128], index: 4, kind: input, shape index: {}]
  %s5 = inlined_call_operand.vmem [shape: f32[128,128], index: 5, kind: input, shape index: {}]
  %s6 = inlined_call_operand.vmem [shape: f32[1,128], index: 6, kind: input, shape index: {}]
  %s7 = inlined_call_operand.vmem [shape: bf16[128,128], index: 7, kind: input, shape index: {}]
  %s8 = inlined_call_operand.vmem [shape: f32[128,128], index: 8, kind: input, shape index: {}]
  %s9 = inlined_call_operand.vmem [shape: f32[1,128], index: 9, kind: input, shape index: {}]
  %s10 = inlined_call_operand.vmem [shape: bf16[32,16], index: 10, kind: input, shape index: {}]
  %s11 = inlined_call_operand.vmem [shape: f32[32,1], index: 11, kind: input, shape index: {}]
  %s12 = inlined_call_operand.vmem [shape: f32[32,256], index: 12, kind: output, shape index: {}]
  %s13 = sld [smem:[#allocation0]]
  $region58: #{query_block_forward.1} parent=0
    _
  %s15 = ssub.s32 1, %s13
  %s16 = scalar_select 0, %s15, %s13
  // Predicated region
  $region2: #{query_block_forward.1} parent=0 // pred_check
    _
  $region3: #{query_block_forward.1} parent=0 // pred_check_branch
    %18 = sbr.rel (0) target = $region5
  $region4: #{query_block_forward.1} parent=0 // pred_region
    _
  $region5: #{query_block_forward.1} parent=0 // pred_fallthru
    _
  // Predicated region
  $region6: #{query_block_forward.1} parent=0 // pred_check
    _
  $region7: #{query_block_forward.1} parent=0 // pred_check_branch
    %20 = sbr.rel (0) target = $region9
  $region8: #{query_block_forward.1} parent=0 // pred_region
    _
  $region9: #{query_block_forward.1} parent=0 // pred_fallthru
    _
  // Predicated region
  $region10: #{query_block_forward.1} parent=0 // pred_check
    _
  $region11: #{query_block_forward.1} parent=0 // pred_check_branch
    %22 = sbr.rel (0) target = $region13
  $region12: #{query_block_forward.1} parent=0 // pred_region
    _
  $region13: #{query_block_forward.1} parent=0 // pred_fallthru
    _
  // Predicated region
  $region14: #{query_block_forward.1} parent=0 // pred_check
    _
  $region15: #{query_block_forward.1} parent=0 // pred_check_branch
    %24 = sbr.rel (0) target = $region17
  $region16: #{query_block_forward.1} parent=0 // pred_region
    _
  $region17: #{query_block_forward.1} parent=0 // pred_fallthru
    _
  // Predicated region
  $region18: #{query_block_forward.1} parent=0 // pred_check
    _
  $region19: #{query_block_forward.1} parent=0 // pred_check_branch
    %26 = sbr.rel (0) target = $region21
  $region20: #{query_block_forward.1} parent=0 // pred_region
    _
  $region21: #{query_block_forward.1} parent=0 // pred_fallthru
    _
  // Predicated region
  $region22: #{query_block_forward.1} parent=0 // pred_check
    _
  $region23: #{query_block_forward.1} parent=0 // pred_check_branch
    %28 = sbr.rel (0) target = $region25
  $region24: #{query_block_forward.1} parent=0 // pred_region
    _
  $region25: #{query_block_forward.1} parent=0 // pred_fallthru
    _
  // Predicated region
  $region26: #{query_block_forward.1} parent=0 // pred_check
    _
  $region27: #{query_block_forward.1} parent=0 // pred_check_branch
    %30 = sbr.rel (0) target = $region29
  $region28: #{query_block_forward.1} parent=0 // pred_region
    _
  $region29: #{query_block_forward.1} parent=0 // pred_fallthru
    _
  // Predicated region
  $region30: #{query_block_forward.1} parent=0 // pred_check
    _
  $region31: #{query_block_forward.1} parent=0 // pred_check_branch
    %32 = sbr.rel (0) target = $region33
  $region32: #{query_block_forward.1} parent=0 // pred_region
    _
  $region33: #{query_block_forward.1} parent=0 // pred_fallthru
    _
  // Predicated region
  $region34: #{query_block_forward.1} parent=0 // pred_check
    _
  $region35: #{query_block_forward.1} parent=0 // pred_check_branch
    %34 = sbr.rel (0) target = $region37
  $region36: #{query_block_forward.1} parent=0 // pred_region
    _
  $region37: #{query_block_forward.1} parent=0 // pred_fallthru
    _
  // Predicated region
  $region38: #{query_block_forward.1} parent=0 // pred_check
    _
  $region39: #{query_block_forward.1} parent=0 // pred_check_branch
    %36 = sbr.rel (0) target = $region41
  $region40: #{query_block_forward.1} parent=0 // pred_region
    _
  $region41: #{query_block_forward.1} parent=0 // pred_fallthru
    _
  // Predicated region
  $region42: #{query_block_forward.1} parent=0 // pred_check
    _
  $region43: #{query_block_forward.1} parent=0 // pred_check_branch
    %38 = sbr.rel (0) target = $region45
  $region44: #{query_block_forward.1} parent=0 // pred_region
    _
  $region45: #{query_block_forward.1} parent=0 // pred_fallthru
    _
  // Predicated region
  $region46: #{query_block_forward.1} parent=0 // pred_check
    _
  $region47: #{query_block_forward.1} parent=0 // pred_check_branch
    %40 = sbr.rel (0) target = $region49
  $region48: #{query_block_forward.1} parent=0 // pred_region
    _
  $region49: #{query_block_forward.1} parent=0 // pred_fallthru
    _
  %v42 = vld [vmem:[%s1] sm:$0xf]
  %v43 = vld [vmem:[%s1 + $0x4] sm:$0xf]
  %v44 = vld [vmem:[%s1 + $0x8] sm:$0xf]
  %v45 = vld [vmem:[%s1 + $0xc] sm:$0xf]
  %v46 = vld [vmem:[%s0] sm:$0xf]
  %v47 = vld [vmem:[%s0 + $0x4] sm:$0xf]
  %v48 = vld [vmem:[%s0 + $0x8] sm:$0xf]
  %v49 = vld [vmem:[%s0 + $0xc] sm:$0xf]
  %v50 = vld [vmem:[%s0 + $0x10] sm:$0xf]
  %v51 = vld [vmem:[%s0 + $0x14] sm:$0xf]
  %v52 = vld [vmem:[%s0 + $0x18] sm:$0xf]
  %v53 = vld [vmem:[%s0 + $0x1c] sm:$0xf]
  %v54 = vld [vmem:[%s2] sm:$0xff]
  %v55 = vld [vmem:[%s2 + $0x8] sm:$0xff]
  %v56 = vld [vmem:[%s2 + $0x10] sm:$0xff]
  %v57 = vld [vmem:[%s2 + $0x18] sm:$0xff]
  %59 = vset.pattern.permute.xlu0 0
  %60 = vperm.xlu0 %59, %v54
  %v61 = vpop.permute.xlu0 %60
  %64 = vset.pattern.permute.xlu0 0
  %65 = vperm.xlu0 %64, %v55
  %v66 = vpop.permute.xlu0 %65
  %69 = vset.pattern.permute.xlu0 0
  %70 = vperm.xlu0 %69, %v56
  %v71 = vpop.permute.xlu0 %70
  %74 = vset.pattern.permute.xlu0 0
  %75 = vperm.xlu0 %74, %v57
  %v76 = vpop.permute.xlu0 %75
  %v82 = vunpack.c.l.b16 %v42
  %v83 = vunpack.c.l.b16 %v43
  %v84 = vunpack.c.l.b16 %v44
  %v85 = vunpack.c.l.b16 %v45
  %v86 = vpack.c.b16 %v83, %v82
  %v87 = vpack.c.b16 %v85, %v84
  %v96 = vunpack.c.l.b16 %v46
  %v97 = vunpack.c.l.b16 %v47
  %v98 = vunpack.c.l.b16 %v48
  %v99 = vunpack.c.l.b16 %v49
  %v100 = vunpack.c.l.b16 %v50
  %v101 = vunpack.c.l.b16 %v51
  %v102 = vunpack.c.l.b16 %v52
  %v103 = vunpack.c.l.b16 %v53
  %v104 = vpack.c.b16 %v97, %v96
  %v105 = vpack.c.b16 %v99, %v98
  %v106 = vpack.c.b16 %v101, %v100
  %v107 = vpack.c.b16 %v103, %v102
  %vm112 = vcmask 523264
  %v114 = vsel %vm112, %v86, 0
  %v117 = vsel %vm112, %v87, 0
  %119 = vmatprep.subr.bf16.mxu0 0
  %120 = vmatpush1.bf16.msra.mxu0 %v104
  %121 = vmatprep.subr.bf16.mxu0 0
  %122 = vmatpush1.bf16.msra.mxu0 %v105
  %123 = vmatprep.subr.bf16.mxu0 0
  %124 = vmatpush1.bf16.msra.mxu0 %v106
  %125 = vmatprep.subr.bf16.mxu0 0
  %126 = vmatpush1.bf16.msra.mxu0 %v107
  %127 = vmatprep.subr.bf16.mxu0 0
  %128 = vmatpush1.bf16.msra.mxu0 0
  %129 = vmatprep.subr.bf16.mxu0 0
  %130 = vmatpush1.bf16.msra.mxu0 0
  %131 = vmatprep.subr.bf16.mxu0 0
  %132 = vmatpush1.bf16.msra.mxu0 0
  %133 = vmatprep.subr.bf16.mxu0 0
  %134 = vmatpush1.bf16.msra.mxu0 0
  %135 = vmatprep.subr.bf16.mxu0 0
  %136 = vmatpush1.bf16.msra.mxu0 0
  %137 = vmatprep.subr.bf16.mxu0 0
  %138 = vmatpush1.bf16.msra.mxu0 0
  %139 = vmatprep.subr.bf16.mxu0 0
  %140 = vmatpush1.bf16.msra.mxu0 0
  %141 = vmatprep.subr.bf16.mxu0 0
  %142 = vmatpush1.bf16.msra.mxu0 0
  %143 = vmatprep.subr.bf16.mxu0 0
  %144 = vmatpush1.bf16.msra.mxu0 0
  %145 = vmatprep.subr.bf16.mxu0 0
  %146 = vmatpush1.bf16.msra.mxu0 0
  %147 = vmatprep.subr.bf16.mxu0 0
  %148 = vmatpush1.bf16.msra.mxu0 0
  %149 = vmatprep.subr.bf16.mxu0 0
  %150 = vmatpush1.bf16.msra.mxu0 0
  %151 = vmatprep.mubr.bf16.mxu0 0
  %152 = vmatmul.mubr.bf16.gmra.mrb[0].mxu0 %v114
  %v153 = vpop.f32.mrb[0].mxu0
  %v154 = vadd.f32 %v61, %v153
  %v155 = vpop.f32.mrb[0].mxu0
  %v156 = vpop.f32.mrb[0].mxu0
  %v157 = vadd.f32 %v66, %v156
  %v158 = vpop.f32.mrb[0].mxu0
  %159 = vmatprep.mubr.bf16.mxu0 0
  %160 = vmatmul.mubr.bf16.gmra.mrb[0].mxu0 %v117
  %v161 = vpop.f32.mrb[0].mxu0
  %v162 = vadd.f32 %v71, %v161
  %v163 = vpop.f32.mrb[0].mxu0
  %v164 = vpop.f32.mrb[0].mxu0
  %v165 = vadd.f32 %v76, %v164
  %v166 = vpop.f32.mrb[0].mxu0
  %167 = vdwg.mxu0
  %v168 = vld [vmem:[%s3] sm:$0x3]
  %vm169 = vcmask 261120
  %v171 = vsel %vm169, %v168, 0
  %173 = vmatprep.subr.mxu0 0.0
  %174 = vmatpush1.msra.mxu0 %v154
  %175 = vmatprep.subr.mxu0 0.0
  %176 = vmatpush1.msra.mxu0 %v157
  %177 = vmatprep.subr.mxu0 0.0
  %178 = vmatpush1.msra.mxu0 %v162
  %179 = vmatprep.subr.mxu0 0.0
  %180 = vmatpush1.msra.mxu0 %v165
  %181 = vmatprep.subr.mxu0 0.0
  %182 = vmatpush1.msra.mxu0 0.0
  %183 = vmatprep.subr.mxu0 0.0
  %184 = vmatpush1.msra.mxu0 0.0
  %185 = vmatprep.subr.mxu0 0.0
  %186 = vmatpush1.msra.mxu0 0.0
  %187 = vmatprep.subr.mxu0 0.0
  %188 = vmatpush1.msra.mxu0 0.0
  %189 = vmatprep.subr.mxu0 0.0
  %190 = vmatpush1.msra.mxu0 0.0
  %191 = vmatprep.subr.mxu0 0.0
  %192 = vmatpush1.msra.mxu0 0.0
  %193 = vmatprep.subr.mxu0 0.0
  %194 = vmatpush1.msra.mxu0 0.0
  %195 = vmatprep.subr.mxu0 0.0
  %196 = vmatpush1.msra.mxu0 0.0
  %197 = vmatprep.subr.mxu0 0.0
  %198 = vmatpush1.msra.mxu0 0.0
  %199 = vmatprep.subr.mxu0 0.0
  %200 = vmatpush1.msra.mxu0 0.0
  %201 = vmatprep.subr.mxu0 0.0
  %202 = vmatpush1.msra.mxu0 0.0
  %203 = vmatprep.subr.mxu0 0.0
  %204 = vmatpush1.msra.mxu0 0.0
  %205 = vmatprep.subr.mxu0 0.0
  %206 = vmatpush1.msra.mxu0 0.0
  %207 = vmatprep.subr.mxu0 0.0
  %208 = vmatpush1.msra.mxu0 0.0
  %209 = vmatprep.subr.mxu0 0.0
  %210 = vmatpush1.msra.mxu0 0.0
  %211 = vmatprep.subr.mxu0 0.0
  %212 = vmatpush1.msra.mxu0 0.0
  %213 = vmatprep.subr.mxu0 0.0
  %214 = vmatpush1.msra.mxu0 0.0
  %215 = vmatprep.subr.mxu0 0.0
  %216 = vmatpush1.msra.mxu0 0.0
  %217 = vmatprep.subr.mxu0 0.0
  %218 = vmatpush1.msra.mxu0 0.0
  %219 = vmatprep.subr.mxu0 0.0
  %220 = vmatpush1.msra.mxu0 0.0
  %221 = vmatprep.subr.mxu0 0.0
  %222 = vmatpush1.msra.mxu0 0.0
  %223 = vmatprep.subr.mxu0 0.0
  %224 = vmatpush1.msra.mxu0 0.0
  %225 = vmatprep.subr.mxu0 0.0
  %226 = vmatpush1.msra.mxu0 0.0
  %227 = vmatprep.subr.mxu0 0.0
  %228 = vmatpush1.msra.mxu0 0.0
  %229 = vmatprep.subr.mxu0 0.0
  %230 = vmatpush1.msra.mxu0 0.0
  %231 = vmatprep.subr.mxu0 0.0
  %232 = vmatpush1.msra.mxu0 0.0
  %233 = vmatprep.subr.mxu0 0.0
  %234 = vmatpush1.msra.mxu0 0.0
  %235 = vmatprep.subr.mxu0 0.0
  %236 = vmatpush1.msra.mxu0 0.0
  %237 = vmatprep.mubr.f32.mxu0 0.0
  %238 = vmatmul.mubr.f32.gmra.mrb[0].mxu0 %v171
  %v239 = vpop.f32.mrb[0].mxu0
  %v240 = vadd.f32 0.0, %v239
  %v241 = vpop.f32.mrb[0].mxu0
  %242 = vdwg.mxu0
  %v244 = vrot.slane %v240, 6
  %v246 = vrot.slane %v240, 4
  %v248 = vrot.slane %v240, 2
  %vm250 = vcmask 1041408
  %v251 = vsel %vm250, %v240, %v244
  %vm252 = vcmask 1043456
  %v253 = vsel %vm252, %v251, %v246
  %vm254 = vcmask 1045504
  %v255 = vsel %vm254, %v253, %v248
  %v256 = vsub.f32 %v154, %v255
  %v257 = vsub.f32 %v157, %v255
  %v258 = vsub.f32 %v162, %v255
  %v259 = vsub.f32 %v165, %v255
  %v260 = vmul.f32 %v256, %v256
  %v261 = vmul.f32 %v257, %v257
  %v262 = vmul.f32 %v258, %v258
  %v263 = vmul.f32 %v259, %v259
  %264 = vmatprep.subr.mxu0 0.0
  %265 = vmatpush1.msra.mxu0 %v260
  %266 = vmatprep.subr.mxu0 0.0
  %267 = vmatpush1.msra.mxu0 %v261
  %268 = vmatprep.subr.mxu0 0.0
  %269 = vmatpush1.msra.mxu0 %v262
  %270 = vmatprep.subr.mxu0 0.0
  %271 = vmatpush1.msra.mxu0 %v263
  %272 = vmatprep.subr.mxu0 0.0
  %273 = vmatpush1.msra.mxu0 0.0
  %274 = vmatprep.subr.mxu0 0.0
  %275 = vmatpush1.msra.mxu0 0.0
  %276 = vmatprep.subr.mxu0 0.0
  %277 = vmatpush1.msra.mxu0 0.0
  %278 = vmatprep.subr.mxu0 0.0
  %279 = vmatpush1.msra.mxu0 0.0
  %280 = vmatprep.subr.mxu0 0.0
  %281 = vmatpush1.msra.mxu0 0.0
  %282 = vmatprep.subr.mxu0 0.0
  %283 = vmatpush1.msra.mxu0 0.0
  %284 = vmatprep.subr.mxu0 0.0
  %285 = vmatpush1.msra.mxu0 0.0
  %286 = vmatprep.subr.mxu0 0.0
  %287 = vmatpush1.msra.mxu0 0.0
  %288 = vmatprep.subr.mxu0 0.0
  %289 = vmatpush1.msra.mxu0 0.0
  %290 = vmatprep.subr.mxu0 0.0
  %291 = vmatpush1.msra.mxu0 0.0
  %292 = vmatprep.subr.mxu0 0.0
  %293 = vmatpush1.msra.mxu0 0.0
  %294 = vmatprep.subr.mxu0 0.0
  %295 = vmatpush1.msra.mxu0 0.0
  %296 = vmatprep.subr.mxu0 0.0
  %297 = vmatpush1.msra.mxu0 0.0
  %298 = vmatprep.subr.mxu0 0.0
  %299 = vmatpush1.msra.mxu0 0.0
  %300 = vmatprep.subr.mxu0 0.0
  %301 = vmatpush1.msra.mxu0 0.0
  %302 = vmatprep.subr.mxu0 0.0
  %303 = vmatpush1.msra.mxu0 0.0
  %304 = vmatprep.subr.mxu0 0.0
  %305 = vmatpush1.msra.mxu0 0.0
  %306 = vmatprep.subr.mxu0 0.0
  %307 = vmatpush1.msra.mxu0 0.0
  %308 = vmatprep.subr.mxu0 0.0
  %309 = vmatpush1.msra.mxu0 0.0
  %310 = vmatprep.subr.mxu0 0.0
  %311 = vmatpush1.msra.mxu0 0.0
  %312 = vmatprep.subr.mxu0 0.0
  %313 = vmatpush1.msra.mxu0 0.0
  %314 = vmatprep.subr.mxu0 0.0
  %315 = vmatpush1.msra.mxu0 0.0
  %316 = vmatprep.subr.mxu0 0.0
  %317 = vmatpush1.msra.mxu0 0.0
  %318 = vmatprep.subr.mxu0 0.0
  %319 = vmatpush1.msra.mxu0 0.0
  %320 = vmatprep.subr.mxu0 0.0
  %321 = vmatpush1.msra.mxu0 0.0
  %322 = vmatprep.subr.mxu0 0.0
  %323 = vmatpush1.msra.mxu0 0.0
  %324 = vmatprep.subr.mxu0 0.0
  %325 = vmatpush1.msra.mxu0 0.0
  %326 = vmatprep.subr.mxu0 0.0
  %327 = vmatpush1.msra.mxu0 0.0
  %328 = vmatprep.mubr.f32.mxu0 0.0
  %329 = vmatmul.mubr.f32.gmra.mrb[0].mxu0 %v171
  %v330 = vpop.f32.mrb[0].mxu0
  %v331 = vadd.f32 0.0, %v330
  %v332 = vpop.f32.mrb[0].mxu0
  %333 = vdwg.mxu0
  %v334 = vpack.c.bf16 %v157, %v154
  %v335 = vpack.c.bf16 %v165, %v162
  %v336 = vld [vmem:[%s4] sm:$0xf]
  %v337 = vld [vmem:[%s4 + $0x4] sm:$0xf]
  %v338 = vld [vmem:[%s4 + $0x8] sm:$0xf]
  %v339 = vld [vmem:[%s4 + $0xc] sm:$0xf]
  %v340 = vld [vmem:[%s4 + $0x10] sm:$0xf]
  %v341 = vld [vmem:[%s4 + $0x14] sm:$0xf]
  %v342 = vld [vmem:[%s4 + $0x18] sm:$0xf]
  %v343 = vld [vmem:[%s4 + $0x1c] sm:$0xf]
  %v344 = vld [vmem:[%s4 + $0x20] sm:$0xf]
  %v345 = vld [vmem:[%s4 + $0x24] sm:$0xf]
  %v346 = vld [vmem:[%s4 + $0x28] sm:$0xf]
  %v347 = vld [vmem:[%s4 + $0x2c] sm:$0xf]
  %v348 = vld [vmem:[%s4 + $0x30] sm:$0xf]
  %v349 = vld [vmem:[%s4 + $0x34] sm:$0xf]
  %v350 = vld [vmem:[%s4 + $0x38] sm:$0xf]
  %v351 = vld [vmem:[%s4 + $0x3c] sm:$0xf]
  %v352 = vld [vmem:[%s6] sm:$0x1]
  %v354 = vlaneseq
  %v355 = vshrl.u32 %v354, 7
  %v356 = vsub.s32 0, %v355
  %v357 = vrot.slane %v352, %v356
  %v375 = vunpack.c.l.b16 %v336
  %v376 = vunpack.c.l.b16 %v337
  %v377 = vunpack.c.l.b16 %v338
  %v378 = vunpack.c.l.b16 %v339
  %v379 = vunpack.c.l.b16 %v340
  %v380 = vunpack.c.l.b16 %v341
  %v381 = vunpack.c.l.b16 %v342
  %v382 = vunpack.c.l.b16 %v343
  %v383 = vunpack.c.l.b16 %v344
  %v384 = vunpack.c.l.b16 %v345
  %v385 = vunpack.c.l.b16 %v346
  %v386 = vunpack.c.l.b16 %v347
  %v387 = vunpack.c.l.b16 %v348
  %v388 = vunpack.c.l.b16 %v349
  %v389 = vunpack.c.l.b16 %v350
  %v390 = vunpack.c.l.b16 %v351
  %v391 = vpack.c.b16 %v376, %v375
  %v392 = vpack.c.b16 %v378, %v377
  %v393 = vpack.c.b16 %v380, %v379
  %v394 = vpack.c.b16 %v382, %v381
  %v395 = vpack.c.b16 %v384, %v383
  %v396 = vpack.c.b16 %v386, %v385
  %v397 = vpack.c.b16 %v388, %v387
  %v398 = vpack.c.b16 %v390, %v389
  %407 = vmatprep.subr.bf16.mxu0 0
  %408 = vmatpush1.bf16.msra.mxu0 %v391
  %409 = vmatprep.subr.bf16.mxu0 0
  %410 = vmatpush1.bf16.msra.mxu0 %v392
  %411 = vmatprep.subr.bf16.mxu0 0
  %412 = vmatpush1.bf16.msra.mxu0 %v393
  %413 = vmatprep.subr.bf16.mxu0 0
  %414 = vmatpush1.bf16.msra.mxu0 %v394
  %415 = vmatprep.subr.bf16.mxu0 0
  %416 = vmatpush1.bf16.msra.mxu0 %v395
  %417 = vmatprep.subr.bf16.mxu0 0
  %418 = vmatpush1.bf16.msra.mxu0 %v396
  %419 = vmatprep.subr.bf16.mxu0 0
  %420 = vmatpush1.bf16.msra.mxu0 %v397
  %421 = vmatprep.subr.bf16.mxu0 0
  %422 = vmatpush1.bf16.msra.mxu0 %v398
  %423 = vmatprep.subr.bf16.mxu0 0
  %424 = vmatpush1.bf16.msra.mxu0 0
  %425 = vmatprep.subr.bf16.mxu0 0
  %426 = vmatpush1.bf16.msra.mxu0 0
  %427 = vmatprep.subr.bf16.mxu0 0
  %428 = vmatpush1.bf16.msra.mxu0 0
  %429 = vmatprep.subr.bf16.mxu0 0
  %430 = vmatpush1.bf16.msra.mxu0 0
  %431 = vmatprep.subr.bf16.mxu0 0
  %432 = vmatpush1.bf16.msra.mxu0 0
  %433 = vmatprep.subr.bf16.mxu0 0
  %434 = vmatpush1.bf16.msra.mxu0 0
  %435 = vmatprep.subr.bf16.mxu0 0
  %436 = vmatpush1.bf16.msra.mxu0 0
  %437 = vmatprep.subr.bf16.mxu0 0
  %438 = vmatpush1.bf16.msra.mxu0 0
  %439 = vmatprep.mubr.bf16.mxu0 0
  %440 = vmatmul.mubr.bf16.gmra.mrb[0].mxu0 %v334
  %v441 = vpop.f32.mrb[0].mxu0
  %v442 = vadd.f32 %v357, %v441
  %v443 = vpop.f32.mrb[0].mxu0
  %v444 = vpop.f32.mrb[0].mxu0
  %v445 = vadd.f32 %v357, %v444
  %v446 = vpop.f32.mrb[0].mxu0
  %447 = vmatprep.mubr.bf16.mxu0 0
  %448 = vmatmul.mubr.bf16.gmra.mrb[0].mxu0 %v335
  %v449 = vpop.f32.mrb[0].mxu0
  %v450 = vadd.f32 %v357, %v449
  %v451 = vpop.f32.mrb[0].mxu0
  %v452 = vpop.f32.mrb[0].mxu0
  %v453 = vadd.f32 %v357, %v452
  %v454 = vpop.f32.mrb[0].mxu0
  %455 = vdwg.mxu0
  %v456 = vld [vmem:[%s5] sm:$0xff]
  %v457 = vld [vmem:[%s5 + $0x8] sm:$0xff]
  %v458 = vld [vmem:[%s5 + $0x10] sm:$0xff]
  %v459 = vld [vmem:[%s5 + $0x18] sm:$0xff]
  %v460 = vld [vmem:[%s5 + $0x20] sm:$0xff]
  %v461 = vld [vmem:[%s5 + $0x28] sm:$0xff]
  %v462 = vld [vmem:[%s5 + $0x30] sm:$0xff]
  %v463 = vld [vmem:[%s5 + $0x38] sm:$0xff]
  %v464 = vld [vmem:[%s5 + $0x40] sm:$0xff]
  %v465 = vld [vmem:[%s5 + $0x48] sm:$0xff]
  %v466 = vld [vmem:[%s5 + $0x50] sm:$0xff]
  %v467 = vld [vmem:[%s5 + $0x58] sm:$0xff]
  %v468 = vld [vmem:[%s5 + $0x60] sm:$0xff]
  %v469 = vld [vmem:[%s5 + $0x68] sm:$0xff]
  %v470 = vld [vmem:[%s5 + $0x70] sm:$0xff]
  %v471 = vld [vmem:[%s5 + $0x78] sm:$0xff]
  %472 = vmatprep.subr.mxu0 0.0
  %473 = vmatpush1.msra.mxu0 %v456
  %474 = vmatprep.subr.mxu0 0.0
  %475 = vmatpush1.msra.mxu0 %v457
  %476 = vmatprep.subr.mxu0 0.0
  %477 = vmatpush1.msra.mxu0 %v458
  %478 = vmatprep.subr.mxu0 0.0
  %479 = vmatpush1.msra.mxu0 %v459
  %480 = vmatprep.subr.mxu0 0.0
  %481 = vmatpush1.msra.mxu0 %v460
  %482 = vmatprep.subr.mxu0 0.0
  %483 = vmatpush1.msra.mxu0 %v461
  %484 = vmatprep.subr.mxu0 0.0
  %485 = vmatpush1.msra.mxu0 %v462
  %486 = vmatprep.subr.mxu0 0.0
  %487 = vmatpush1.msra.mxu0 %v463
  %488 = vmatprep.subr.mxu0 0.0
  %489 = vmatpush1.msra.mxu0 %v464
  %490 = vmatprep.subr.mxu0 0.0
  %491 = vmatpush1.msra.mxu0 %v465
  %492 = vmatprep.subr.mxu0 0.0
  %493 = vmatpush1.msra.mxu0 %v466
  %494 = vmatprep.subr.mxu0 0.0
  %495 = vmatpush1.msra.mxu0 %v467
  %496 = vmatprep.subr.mxu0 0.0
  %497 = vmatpush1.msra.mxu0 %v468
  %498 = vmatprep.subr.mxu0 0.0
  %499 = vmatpush1.msra.mxu0 %v469
  %500 = vmatprep.subr.mxu0 0.0
  %501 = vmatpush1.msra.mxu0 %v470
  %502 = vmatprep.subr.mxu0 0.0
  %503 = vmatpush1.msra.mxu0 %v471
  %504 = vmatprep.subr.mxu0 0.0
  %505 = vmatpush1.msra.mxu0 0.0
  %506 = vmatprep.subr.mxu0 0.0
  %507 = vmatpush1.msra.mxu0 0.0
  %508 = vmatprep.subr.mxu0 0.0
  %509 = vmatpush1.msra.mxu0 0.0
  %510 = vmatprep.subr.mxu0 0.0
  %511 = vmatpush1.msra.mxu0 0.0
  %512 = vmatprep.subr.mxu0 0.0
  %513 = vmatpush1.msra.mxu0 0.0
  %514 = vmatprep.subr.mxu0 0.0
  %515 = vmatpush1.msra.mxu0 0.0
  %516 = vmatprep.subr.mxu0 0.0
  %517 = vmatpush1.msra.mxu0 0.0
  %518 = vmatprep.subr.mxu0 0.0
  %519 = vmatpush1.msra.mxu0 0.0
  %520 = vmatprep.subr.mxu0 0.0
  %521 = vmatpush1.msra.mxu0 0.0
  %522 = vmatprep.subr.mxu0 0.0
  %523 = vmatpush1.msra.mxu0 0.0
  %524 = vmatprep.subr.mxu0 0.0
  %525 = vmatpush1.msra.mxu0 0.0
  %526 = vmatprep.subr.mxu0 0.0
  %527 = vmatpush1.msra.mxu0 0.0
  %528 = vmatprep.subr.mxu0 0.0
  %529 = vmatpush1.msra.mxu0 0.0
  %530 = vmatprep.subr.mxu0 0.0
  %531 = vmatpush1.msra.mxu0 0.0
  %532 = vmatprep.subr.mxu0 0.0
  %533 = vmatpush1.msra.mxu0 0.0
  %534 = vmatprep.subr.mxu0 0.0
  %535 = vmatpush1.msra.mxu0 0.0
  %536 = vmatprep.mubr.f32.mxu0 0.0
  %537 = vmatmul.mubr.f32.gmra.mrb[0].mxu0 %v240
  %v538 = vpop.f32.mrb[0].mxu0
  %v539 = vadd.f32 0.0, %v538
  %v540 = vpop.f32.mrb[0].mxu0
  %541 = vdwg.mxu0
  %v542 = vadd.f32 %v442, %v539
  %v543 = vtanh.pop %v542
  %v544 = vpack.c.bf16 %v543, %v543
  %545 = vst [vmem:[#allocation2] sm:$0x1] %v544
  %546 = vmatprep.subr.mxu0 0.0
  %547 = vmatpush1.msra.mxu0 %v456
  %548 = vmatprep.subr.mxu0 0.0
  %549 = vmatpush1.msra.mxu0 %v457
  %550 = vmatprep.subr.mxu0 0.0
  %551 = vmatpush1.msra.mxu0 %v458
  %552 = vmatprep.subr.mxu0 0.0
  %553 = vmatpush1.msra.mxu0 %v459
  %554 = vmatprep.subr.mxu0 0.0
  %555 = vmatpush1.msra.mxu0 %v460
  %556 = vmatprep.subr.mxu0 0.0
  %557 = vmatpush1.msra.mxu0 %v461
  %558 = vmatprep.subr.mxu0 0.0
  %559 = vmatpush1.msra.mxu0 %v462
  %560 = vmatprep.subr.mxu0 0.0
  %561 = vmatpush1.msra.mxu0 %v463
  %562 = vmatprep.subr.mxu0 0.0
  %563 = vmatpush1.msra.mxu0 %v464
  %564 = vmatprep.subr.mxu0 0.0
  %565 = vmatpush1.msra.mxu0 %v465
  %566 = vmatprep.subr.mxu0 0.0
  %567 = vmatpush1.msra.mxu0 %v466
  %568 = vmatprep.subr.mxu0 0.0
  %569 = vmatpush1.msra.mxu0 %v467
  %570 = vmatprep.subr.mxu0 0.0
  %571 = vmatpush1.msra.mxu0 %v468
  %572 = vmatprep.subr.mxu0 0.0
  %573 = vmatpush1.msra.mxu0 %v469
  %574 = vmatprep.subr.mxu0 0.0
  %575 = vmatpush1.msra.mxu0 %v470
  %576 = vmatprep.subr.mxu0 0.0
  %577 = vmatpush1.msra.mxu0 %v471
  %578 = vmatprep.subr.mxu0 0.0
  %579 = vmatpush1.msra.mxu0 0.0
  %580 = vmatprep.subr.mxu0 0.0
  %581 = vmatpush1.msra.mxu0 0.0
  %582 = vmatprep.subr.mxu0 0.0
  %583 = vmatpush1.msra.mxu0 0.0
  %584 = vmatprep.subr.mxu0 0.0
  %585 = vmatpush1.msra.mxu0 0.0
  %586 = vmatprep.subr.mxu0 0.0
  %587 = vmatpush1.msra.mxu0 0.0
  %588 = vmatprep.subr.mxu0 0.0
  %589 = vmatpush1.msra.mxu0 0.0
  %590 = vmatprep.subr.mxu0 0.0
  %591 = vmatpush1.msra.mxu0 0.0
  %592 = vmatprep.subr.mxu0 0.0
  %593 = vmatpush1.msra.mxu0 0.0
  %594 = vmatprep.subr.mxu0 0.0
  %595 = vmatpush1.msra.mxu0 0.0
  %596 = vmatprep.subr.mxu0 0.0
  %597 = vmatpush1.msra.mxu0 0.0
  %598 = vmatprep.subr.mxu0 0.0
  %599 = vmatpush1.msra.mxu0 0.0
  %600 = vmatprep.subr.mxu0 0.0
  %601 = vmatpush1.msra.mxu0 0.0
  %602 = vmatprep.subr.mxu0 0.0
  %603 = vmatpush1.msra.mxu0 0.0
  %604 = vmatprep.subr.mxu0 0.0
  %605 = vmatpush1.msra.mxu0 0.0
  %606 = vmatprep.subr.mxu0 0.0
  %607 = vmatpush1.msra.mxu0 0.0
  %608 = vmatprep.subr.mxu0 0.0
  %609 = vmatpush1.msra.mxu0 0.0
  %610 = vmatprep.mubr.f32.mxu0 0.0
  %611 = vmatmul.mubr.f32.gmra.mrb[0].mxu0 %v543
  %v612 = vpop.f32.mrb[0].mxu0
  %v613 = vadd.f32 0.0, %v612
  %v614 = vpop.f32.mrb[0].mxu0
  %615 = vdwg.mxu0
  %v617 = vrot.slane %v613, 6
  %v619 = vadd.f32 %v442, %v617
  %v620 = vtanh.pop %v619
  %v621 = vpack.c.bf16 %v620, %v620
  %622 = vst [vmem:[#allocation2] sm:$0x2] %v621
  %v624 = vrot.slane %v620, 2
  %626 = vmatprep.subr.mxu0 0.0
  %627 = vmatpush1.msra.mxu0 %v456
  %628 = vmatprep.subr.mxu0 0.0
  %629 = vmatpush1.msra.mxu0 %v457
  %630 = vmatprep.subr.mxu0 0.0
  %631 = vmatpush1.msra.mxu0 %v458
  %632 = vmatprep.subr.mxu0 0.0
  %633 = vmatpush1.msra.mxu0 %v459
  %634 = vmatprep.subr.mxu0 0.0
  %635 = vmatpush1.msra.mxu0 %v460
  %636 = vmatprep.subr.mxu0 0.0
  %637 = vmatpush1.msra.mxu0 %v461
  %638 = vmatprep.subr.mxu0 0.0
  %639 = vmatpush1.msra.mxu0 %v462
  %640 = vmatprep.subr.mxu0 0.0
  %641 = vmatpush1.msra.mxu0 %v463
  %642 = vmatprep.subr.mxu0 0.0
  %643 = vmatpush1.msra.mxu0 %v464
  %644 = vmatprep.subr.mxu0 0.0
  %645 = vmatpush1.msra.mxu0 %v465
  %646 = vmatprep.subr.mxu0 0.0
  %647 = vmatpush1.msra.mxu0 %v466
  %648 = vmatprep.subr.mxu0 0.0
  %649 = vmatpush1.msra.mxu0 %v467
  %650 = vmatprep.subr.mxu0 0.0
  %651 = vmatpush1.msra.mxu0 %v468
  %652 = vmatprep.subr.mxu0 0.0
  %653 = vmatpush1.msra.mxu0 %v469
  %654 = vmatprep.subr.mxu0 0.0
  %655 = vmatpush1.msra.mxu0 %v470
  %656 = vmatprep.subr.mxu0 0.0
  %657 = vmatpush1.msra.mxu0 %v471
  %658 = vmatprep.subr.mxu0 0.0
  %659 = vmatpush1.msra.mxu0 0.0
  %660 = vmatprep.subr.mxu0 0.0
  %661 = vmatpush1.msra.mxu0 0.0
  %662 = vmatprep.subr.mxu0 0.0
  %663 = vmatpush1.msra.mxu0 0.0
  %664 = vmatprep.subr.mxu0 0.0
  %665 = vmatpush1.msra.mxu0 0.0
  %666 = vmatprep.subr.mxu0 0.0
  %667 = vmatpush1.msra.mxu0 0.0
  %668 = vmatprep.subr.mxu0 0.0
  %669 = vmatpush1.msra.mxu0 0.0
  %670 = vmatprep.subr.mxu0 0.0
  %671 = vmatpush1.msra.mxu0 0.0
  %672 = vmatprep.subr.mxu0 0.0
  %673 = vmatpush1.msra.mxu0 0.0
  %674 = vmatprep.subr.mxu0 0.0
  %675 = vmatpush1.msra.mxu0 0.0
  %676 = vmatprep.subr.mxu0 0.0
  %677 = vmatpush1.msra.mxu0 0.0
  %678 = vmatprep.subr.mxu0 0.0
  %679 = vmatpush1.msra.mxu0 0.0
  %680 = vmatprep.subr.mxu0 0.0
  %681 = vmatpush1.msra.mxu0 0.0
  %682 = vmatprep.subr.mxu0 0.0
  %683 = vmatpush1.msra.mxu0 0.0
  %684 = vmatprep.subr.mxu0 0.0
  %685 = vmatpush1.msra.mxu0 0.0
  %686 = vmatprep.subr.mxu0 0.0
  %687 = vmatpush1.msra.mxu0 0.0
  %688 = vmatprep.subr.mxu0 0.0
  %689 = vmatpush1.msra.mxu0 0.0
  %690 = vmatprep.mubr.f32.mxu0 0.0
  %691 = vmatmul.mubr.f32.gmra.mrb[0].mxu0 %v624
  %v692 = vpop.f32.mrb[0].mxu0
  %v693 = vadd.f32 0.0, %v692
  %v694 = vpop.f32.mrb[0].mxu0
  %695 = vdwg.mxu0
  %v697 = vrot.slane %v693, 4
  %v699 = vadd.f32 %v442, %v697
  %v700 = vtanh.pop %v699
  %v701 = vpack.c.bf16 %v700, %v700
  %702 = vst [vmem:[#allocation2] sm:$0x4] %v701
  %v704 = vrot.slane %v700, 4
  %706 = vmatprep.subr.mxu0 0.0
  %707 = vmatpush1.msra.mxu0 %v456
  %708 = vmatprep.subr.mxu0 0.0
  %709 = vmatpush1.msra.mxu0 %v457
  %710 = vmatprep.subr.mxu0 0.0
  %711 = vmatpush1.msra.mxu0 %v458
  %712 = vmatprep.subr.mxu0 0.0
  %713 = vmatpush1.msra.mxu0 %v459
  %714 = vmatprep.subr.mxu0 0.0
  %715 = vmatpush1.msra.mxu0 %v460
  %716 = vmatprep.subr.mxu0 0.0
  %717 = vmatpush1.msra.mxu0 %v461
  %718 = vmatprep.subr.mxu0 0.0
  %719 = vmatpush1.msra.mxu0 %v462
  %720 = vmatprep.subr.mxu0 0.0
  %721 = vmatpush1.msra.mxu0 %v463
  %722 = vmatprep.subr.mxu0 0.0
  %723 = vmatpush1.msra.mxu0 %v464
  %724 = vmatprep.subr.mxu0 0.0
  %725 = vmatpush1.msra.mxu0 %v465
  %726 = vmatprep.subr.mxu0 0.0
  %727 = vmatpush1.msra.mxu0 %v466
  %728 = vmatprep.subr.mxu0 0.0
  %729 = vmatpush1.msra.mxu0 %v467
  %730 = vmatprep.subr.mxu0 0.0
  %731 = vmatpush1.msra.mxu0 %v468
  %732 = vmatprep.subr.mxu0 0.0
  %733 = vmatpush1.msra.mxu0 %v469
  %734 = vmatprep.subr.mxu0 0.0
  %735 = vmatpush1.msra.mxu0 %v470
  %736 = vmatprep.subr.mxu0 0.0
  %737 = vmatpush1.msra.mxu0 %v471
  %738 = vmatprep.subr.mxu0 0.0
  %739 = vmatpush1.msra.mxu0 0.0
  %740 = vmatprep.subr.mxu0 0.0
  %741 = vmatpush1.msra.mxu0 0.0
  %742 = vmatprep.subr.mxu0 0.0
  %743 = vmatpush1.msra.mxu0 0.0
  %744 = vmatprep.subr.mxu0 0.0
  %745 = vmatpush1.msra.mxu0 0.0
  %746 = vmatprep.subr.mxu0 0.0
  %747 = vmatpush1.msra.mxu0 0.0
  %748 = vmatprep.subr.mxu0 0.0
  %749 = vmatpush1.msra.mxu0 0.0
  %750 = vmatprep.subr.mxu0 0.0
  %751 = vmatpush1.msra.mxu0 0.0
  %752 = vmatprep.subr.mxu0 0.0
  %753 = vmatpush1.msra.mxu0 0.0
  %754 = vmatprep.subr.mxu0 0.0
  %755 = vmatpush1.msra.mxu0 0.0
  %756 = vmatprep.subr.mxu0 0.0
  %757 = vmatpush1.msra.mxu0 0.0
  %758 = vmatprep.subr.mxu0 0.0
  %759 = vmatpush1.msra.mxu0 0.0
  %760 = vmatprep.subr.mxu0 0.0
  %761 = vmatpush1.msra.mxu0 0.0
  %762 = vmatprep.subr.mxu0 0.0
  %763 = vmatpush1.msra.mxu0 0.0
  %764 = vmatprep.subr.mxu0 0.0
  %765 = vmatpush1.msra.mxu0 0.0
  %766 = vmatprep.subr.mxu0 0.0
  %767 = vmatpush1.msra.mxu0 0.0
  %768 = vmatprep.subr.mxu0 0.0
  %769 = vmatpush1.msra.mxu0 0.0
  %770 = vmatprep.mubr.f32.mxu0 0.0
  %771 = vmatmul.mubr.f32.gmra.mrb[0].mxu0 %v704
  %v772 = vpop.f32.mrb[0].mxu0
  %v773 = vadd.f32 0.0, %v772
  %v774 = vpop.f32.mrb[0].mxu0
  %775 = vdwg.mxu0
  %v777 = vrot.slane %v773, 2
  %v779 = vadd.f32 %v442, %v777
  %v780 = vtanh.pop %v779
  %v781 = vpack.c.bf16 %v780, %v780
  %782 = vst [vmem:[#allocation2] sm:$0x8] %v781
  %v784 = vrot.slane %v780, 6
  %786 = vmatprep.subr.mxu0 0.0
  %787 = vmatpush1.msra.mxu0 %v456
  %788 = vmatprep.subr.mxu0 0.0
  %789 = vmatpush1.msra.mxu0 %v457
  %790 = vmatprep.subr.mxu0 0.0
  %791 = vmatpush1.msra.mxu0 %v458
  %792 = vmatprep.subr.mxu0 0.0
  %793 = vmatpush1.msra.mxu0 %v459
  %794 = vmatprep.subr.mxu0 0.0
  %795 = vmatpush1.msra.mxu0 %v460
  %796 = vmatprep.subr.mxu0 0.0
  %797 = vmatpush1.msra.mxu0 %v461
  %798 = vmatprep.subr.mxu0 0.0
  %799 = vmatpush1.msra.mxu0 %v462
  %800 = vmatprep.subr.mxu0 0.0
  %801 = vmatpush1.msra.mxu0 %v463
  %802 = vmatprep.subr.mxu0 0.0
  %803 = vmatpush1.msra.mxu0 %v464
  %804 = vmatprep.subr.mxu0 0.0
  %805 = vmatpush1.msra.mxu0 %v465
  %806 = vmatprep.subr.mxu0 0.0
  %807 = vmatpush1.msra.mxu0 %v466
  %808 = vmatprep.subr.mxu0 0.0
  %809 = vmatpush1.msra.mxu0 %v467
  %810 = vmatprep.subr.mxu0 0.0
  %811 = vmatpush1.msra.mxu0 %v468
  %812 = vmatprep.subr.mxu0 0.0
  %813 = vmatpush1.msra.mxu0 %v469
  %814 = vmatprep.subr.mxu0 0.0
  %815 = vmatpush1.msra.mxu0 %v470
  %816 = vmatprep.subr.mxu0 0.0
  %817 = vmatpush1.msra.mxu0 %v471
  %818 = vmatprep.subr.mxu0 0.0
  %819 = vmatpush1.msra.mxu0 0.0
  %820 = vmatprep.subr.mxu0 0.0
  %821 = vmatpush1.msra.mxu0 0.0
  %822 = vmatprep.subr.mxu0 0.0
  %823 = vmatpush1.msra.mxu0 0.0
  %824 = vmatprep.subr.mxu0 0.0
  %825 = vmatpush1.msra.mxu0 0.0
  %826 = vmatprep.subr.mxu0 0.0
  %827 = vmatpush1.msra.mxu0 0.0
  %828 = vmatprep.subr.mxu0 0.0
  %829 = vmatpush1.msra.mxu0 0.0
  %830 = vmatprep.subr.mxu0 0.0
  %831 = vmatpush1.msra.mxu0 0.0
  %832 = vmatprep.subr.mxu0 0.0
  %833 = vmatpush1.msra.mxu0 0.0
  %834 = vmatprep.subr.mxu0 0.0
  %835 = vmatpush1.msra.mxu0 0.0
  %836 = vmatprep.subr.mxu0 0.0
  %837 = vmatpush1.msra.mxu0 0.0
  %838 = vmatprep.subr.mxu0 0.0
  %839 = vmatpush1.msra.mxu0 0.0
  %840 = vmatprep.subr.mxu0 0.0
  %841 = vmatpush1.msra.mxu0 0.0
  %842 = vmatprep.subr.mxu0 0.0
  %843 = vmatpush1.msra.mxu0 0.0
  %844 = vmatprep.subr.mxu0 0.0
  %845 = vmatpush1.msra.mxu0 0.0
  %846 = vmatprep.subr.mxu0 0.0
  %847 = vmatpush1.msra.mxu0 0.0
  %848 = vmatprep.subr.mxu0 0.0
  %849 = vmatpush1.msra.mxu0 0.0
  %850 = vmatprep.mubr.f32.mxu0 0.0
  %851 = vmatmul.mubr.f32.gmra.mrb[0].mxu0 %v784
  %v852 = vpop.f32.mrb[0].mxu0
  %v853 = vadd.f32 0.0, %v852
  %v854 = vpop.f32.mrb[0].mxu0
  %855 = vdwg.mxu0
  %v856 = vadd.f32 %v445, %v853
  %v857 = vtanh.pop %v856
  %v858 = vpack.c.bf16 %v857, %v857
  %v860 = vrot.slane %v858, 4
  %862 = vst [vmem:[#allocation2] sm:$0x10] %v860
  %863 = vmatprep.subr.mxu0 0.0
  %864 = vmatpush1.msra.mxu0 %v456
  %865 = vmatprep.subr.mxu0 0.0
  %866 = vmatpush1.msra.mxu0 %v457
  %867 = vmatprep.subr.mxu0 0.0
  %868 = vmatpush1.msra.mxu0 %v458
  %869 = vmatprep.subr.mxu0 0.0
  %870 = vmatpush1.msra.mxu0 %v459
  %871 = vmatprep.subr.mxu0 0.0
  %872 = vmatpush1.msra.mxu0 %v460
  %873 = vmatprep.subr.mxu0 0.0
  %874 = vmatpush1.msra.mxu0 %v461
  %875 = vmatprep.subr.mxu0 0.0
  %876 = vmatpush1.msra.mxu0 %v462
  %877 = vmatprep.subr.mxu0 0.0
  %878 = vmatpush1.msra.mxu0 %v463
  %879 = vmatprep.subr.mxu0 0.0
  %880 = vmatpush1.msra.mxu0 %v464
  %881 = vmatprep.subr.mxu0 0.0
  %882 = vmatpush1.msra.mxu0 %v465
  %883 = vmatprep.subr.mxu0 0.0
  %884 = vmatpush1.msra.mxu0 %v466
  %885 = vmatprep.subr.mxu0 0.0
  %886 = vmatpush1.msra.mxu0 %v467
  %887 = vmatprep.subr.mxu0 0.0
  %888 = vmatpush1.msra.mxu0 %v468
  %889 = vmatprep.subr.mxu0 0.0
  %890 = vmatpush1.msra.mxu0 %v469
  %891 = vmatprep.subr.mxu0 0.0
  %892 = vmatpush1.msra.mxu0 %v470
  %893 = vmatprep.subr.mxu0 0.0
  %894 = vmatpush1.msra.mxu0 %v471
  %895 = vmatprep.subr.mxu0 0.0
  %896 = vmatpush1.msra.mxu0 0.0
  %897 = vmatprep.subr.mxu0 0.0
  %898 = vmatpush1.msra.mxu0 0.0
  %899 = vmatprep.subr.mxu0 0.0
  %900 = vmatpush1.msra.mxu0 0.0
  %901 = vmatprep.subr.mxu0 0.0
  %902 = vmatpush1.msra.mxu0 0.0
  %903 = vmatprep.subr.mxu0 0.0
  %904 = vmatpush1.msra.mxu0 0.0
  %905 = vmatprep.subr.mxu0 0.0
  %906 = vmatpush1.msra.mxu0 0.0
  %907 = vmatprep.subr.mxu0 0.0
  %908 = vmatpush1.msra.mxu0 0.0
  %909 = vmatprep.subr.mxu0 0.0
  %910 = vmatpush1.msra.mxu0 0.0
  %911 = vmatprep.subr.mxu0 0.0
  %912 = vmatpush1.msra.mxu0 0.0
  %913 = vmatprep.subr.mxu0 0.0
  %914 = vmatpush1.msra.mxu0 0.0
  %915 = vmatprep.subr.mxu0 0.0
  %916 = vmatpush1.msra.mxu0 0.0
  %917 = vmatprep.subr.mxu0 0.0
  %918 = vmatpush1.msra.mxu0 0.0
  %919 = vmatprep.subr.mxu0 0.0
  %920 = vmatpush1.msra.mxu0 0.0
  %921 = vmatprep.subr.mxu0 0.0
  %922 = vmatpush1.msra.mxu0 0.0
  %923 = vmatprep.subr.mxu0 0.0
  %924 = vmatpush1.msra.mxu0 0.0
  %925 = vmatprep.subr.mxu0 0.0
  %926 = vmatpush1.msra.mxu0 0.0
  %927 = vmatprep.mubr.f32.mxu0 0.0
  %928 = vmatmul.mubr.f32.gmra.mrb[0].mxu0 %v857
  %v929 = vpop.f32.mrb[0].mxu0
  %v930 = vadd.f32 0.0, %v929
  %v931 = vpop.f32.mrb[0].mxu0
  %932 = vdwg.mxu0
  %v934 = vrot.slane %v930, 6
  %v936 = vadd.f32 %v445, %v934
  %v937 = vtanh.pop %v936
  %v938 = vpack.c.bf16 %v937, %v937
  %v940 = vrot.slane %v938, 4
  %942 = vst [vmem:[#allocation2] sm:$0x20] %v940
  %v944 = vrot.slane %v937, 2
  %946 = vmatprep.subr.mxu0 0.0
  %947 = vmatpush1.msra.mxu0 %v456
  %948 = vmatprep.subr.mxu0 0.0
  %949 = vmatpush1.msra.mxu0 %v457
  %950 = vmatprep.subr.mxu0 0.0
  %951 = vmatpush1.msra.mxu0 %v458
  %952 = vmatprep.subr.mxu0 0.0
  %953 = vmatpush1.msra.mxu0 %v459
  %954 = vmatprep.subr.mxu0 0.0
  %955 = vmatpush1.msra.mxu0 %v460
  %956 = vmatprep.subr.mxu0 0.0
  %957 = vmatpush1.msra.mxu0 %v461
  %958 = vmatprep.subr.mxu0 0.0
  %959 = vmatpush1.msra.mxu0 %v462
  %960 = vmatprep.subr.mxu0 0.0
  %961 = vmatpush1.msra.mxu0 %v463
  %962 = vmatprep.subr.mxu0 0.0
  %963 = vmatpush1.msra.mxu0 %v464
  %964 = vmatprep.subr.mxu0 0.0
  %965 = vmatpush1.msra.mxu0 %v465
  %966 = vmatprep.subr.mxu0 0.0
  %967 = vmatpush1.msra.mxu0 %v466
  %968 = vmatprep.subr.mxu0 0.0
  %969 = vmatpush1.msra.mxu0 %v467
  %970 = vmatprep.subr.mxu0 0.0
  %971 = vmatpush1.msra.mxu0 %v468
  %972 = vmatprep.subr.mxu0 0.0
  %973 = vmatpush1.msra.mxu0 %v469
  %974 = vmatprep.subr.mxu0 0.0
  %975 = vmatpush1.msra.mxu0 %v470
  %976 = vmatprep.subr.mxu0 0.0
  %977 = vmatpush1.msra.mxu0 %v471
  %978 = vmatprep.subr.mxu0 0.0
  %979 = vmatpush1.msra.mxu0 0.0
  %980 = vmatprep.subr.mxu0 0.0
  %981 = vmatpush1.msra.mxu0 0.0
  %982 = vmatprep.subr.mxu0 0.0
  %983 = vmatpush1.msra.mxu0 0.0
  %984 = vmatprep.subr.mxu0 0.0
  %985 = vmatpush1.msra.mxu0 0.0
  %986 = vmatprep.subr.mxu0 0.0
  %987 = vmatpush1.msra.mxu0 0.0
  %988 = vmatprep.subr.mxu0 0.0
  %989 = vmatpush1.msra.mxu0 0.0
  %990 = vmatprep.subr.mxu0 0.0
  %991 = vmatpush1.msra.mxu0 0.0
  %992 = vmatprep.subr.mxu0 0.0
  %993 = vmatpush1.msra.mxu0 0.0
  %994 = vmatprep.subr.mxu0 0.0
  %995 = vmatpush1.msra.mxu0 0.0
  %996 = vmatprep.subr.mxu0 0.0
  %997 = vmatpush1.msra.mxu0 0.0
  %998 = vmatprep.subr.mxu0 0.0
  %999 = vmatpush1.msra.mxu0 0.0
  %1000 = vmatprep.subr.mxu0 0.0
  %1001 = vmatpush1.msra.mxu0 0.0
  %1002 = vmatprep.subr.mxu0 0.0
  %1003 = vmatpush1.msra.mxu0 0.0
  %1004 = vmatprep.subr.mxu0 0.0
  %1005 = vmatpush1.msra.mxu0 0.0
  %1006 = vmatprep.subr.mxu0 0.0
  %1007 = vmatpush1.msra.mxu0 0.0
  %1008 = vmatprep.subr.mxu0 0.0
  %1009 = vmatpush1.msra.mxu0 0.0
  %1010 = vmatprep.mubr.f32.mxu0 0.0
  %1011 = vmatmul.mubr.f32.gmra.mrb[0].mxu0 %v944
  %v1012 = vpop.f32.mrb[0].mxu0
  %v1013 = vadd.f32 0.0, %v1012
  %v1014 = vpop.f32.mrb[0].mxu0
  %1015 = vdwg.mxu0
  %v1017 = vrot.slane %v1013, 4
  %v1019 = vadd.f32 %v445, %v1017
  %v1020 = vtanh.pop %v1019
  %v1021 = vpack.c.bf16 %v1020, %v1020
  %v1023 = vrot.slane %v1021, 4
  %1025 = vst [vmem:[#allocation2] sm:$0x40] %v1023
  %v1027 = vrot.slane %v1020, 4
  %1029 = vmatprep.subr.mxu0 0.0
  %1030 = vmatpush1.msra.mxu0 %v456
  %1031 = vmatprep.subr.mxu0 0.0
  %1032 = vmatpush1.msra.mxu0 %v457
  %1033 = vmatprep.subr.mxu0 0.0
  %1034 = vmatpush1.msra.mxu0 %v458
  %1035 = vmatprep.subr.mxu0 0.0
  %1036 = vmatpush1.msra.mxu0 %v459
  %1037 = vmatprep.subr.mxu0 0.0
  %1038 = vmatpush1.msra.mxu0 %v460
  %1039 = vmatprep.subr.mxu0 0.0
  %1040 = vmatpush1.msra.mxu0 %v461
  %1041 = vmatprep.subr.mxu0 0.0
  %1042 = vmatpush1.msra.mxu0 %v462
  %1043 = vmatprep.subr.mxu0 0.0
  %1044 = vmatpush1.msra.mxu0 %v463
  %1045 = vmatprep.subr.mxu0 0.0
  %1046 = vmatpush1.msra.mxu0 %v464
  %1047 = vmatprep.subr.mxu0 0.0
  %1048 = vmatpush1.msra.mxu0 %v465
  %1049 = vmatprep.subr.mxu0 0.0
  %1050 = vmatpush1.msra.mxu0 %v466
  %1051 = vmatprep.subr.mxu0 0.0
  %1052 = vmatpush1.msra.mxu0 %v467
  %1053 = vmatprep.subr.mxu0 0.0
  %1054 = vmatpush1.msra.mxu0 %v468
  %1055 = vmatprep.subr.mxu0 0.0
  %1056 = vmatpush1.msra.mxu0 %v469
  %1057 = vmatprep.subr.mxu0 0.0
  %1058 = vmatpush1.msra.mxu0 %v470
  %1059 = vmatprep.subr.mxu0 0.0
  %1060 = vmatpush1.msra.mxu0 %v471
  %1061 = vmatprep.subr.mxu0 0.0
  %1062 = vmatpush1.msra.mxu0 0.0
  %1063 = vmatprep.subr.mxu0 0.0
  %1064 = vmatpush1.msra.mxu0 0.0
  %1065 = vmatprep.subr.mxu0 0.0
  %1066 = vmatpush1.msra.mxu0 0.0
  %1067 = vmatprep.subr.mxu0 0.0
  %1068 = vmatpush1.msra.mxu0 0.0
  %1069 = vmatprep.subr.mxu0 0.0
  %1070 = vmatpush1.msra.mxu0 0.0
  %1071 = vmatprep.subr.mxu0 0.0
  %1072 = vmatpush1.msra.mxu0 0.0
  %1073 = vmatprep.subr.mxu0 0.0
  %1074 = vmatpush1.msra.mxu0 0.0
  %1075 = vmatprep.subr.mxu0 0.0
  %1076 = vmatpush1.msra.mxu0 0.0
  %1077 = vmatprep.subr.mxu0 0.0
  %1078 = vmatpush1.msra.mxu0 0.0
  %1079 = vmatprep.subr.mxu0 0.0
  %1080 = vmatpush1.msra.mxu0 0.0
  %1081 = vmatprep.subr.mxu0 0.0
  %1082 = vmatpush1.msra.mxu0 0.0
  %1083 = vmatprep.subr.mxu0 0.0
  %1084 = vmatpush1.msra.mxu0 0.0
  %1085 = vmatprep.subr.mxu0 0.0
  %1086 = vmatpush1.msra.mxu0 0.0
  %1087 = vmatprep.subr.mxu0 0.0
  %1088 = vmatpush1.msra.mxu0 0.0
  %1089 = vmatprep.subr.mxu0 0.0
  %1090 = vmatpush1.msra.mxu0 0.0
  %1091 = vmatprep.subr.mxu0 0.0
  %1092 = vmatpush1.msra.mxu0 0.0
  %1093 = vmatprep.mubr.f32.mxu0 0.0
  %1094 = vmatmul.mubr.f32.gmra.mrb[0].mxu0 %v1027
  %v1095 = vpop.f32.mrb[0].mxu0
  %v1096 = vadd.f32 0.0, %v1095
  %v1097 = vpop.f32.mrb[0].mxu0
  %1098 = vdwg.mxu0
  %v1100 = vrot.slane %v1096, 2
  %v1102 = vadd.f32 %v445, %v1100
  %v1103 = vtanh.pop %v1102
  %v1104 = vpack.c.bf16 %v1103, %v1103
  %v1106 = vrot.slane %v1104, 4
  %1108 = vst [vmem:[#allocation2] sm:$0x80] %v1106
  %v1110 = vrot.slane %v1103, 6
  %1112 = vmatprep.subr.mxu0 0.0
  %1113 = vmatpush1.msra.mxu0 %v456
  %1114 = vmatprep.subr.mxu0 0.0
  %1115 = vmatpush1.msra.mxu0 %v457
  %1116 = vmatprep.subr.mxu0 0.0
  %1117 = vmatpush1.msra.mxu0 %v458
  %1118 = vmatprep.subr.mxu0 0.0
  %1119 = vmatpush1.msra.mxu0 %v459
  %1120 = vmatprep.subr.mxu0 0.0
  %1121 = vmatpush1.msra.mxu0 %v460
  %1122 = vmatprep.subr.mxu0 0.0
  %1123 = vmatpush1.msra.mxu0 %v461
  %1124 = vmatprep.subr.mxu0 0.0
  %1125 = vmatpush1.msra.mxu0 %v462
  %1126 = vmatprep.subr.mxu0 0.0
  %1127 = vmatpush1.msra.mxu0 %v463
  %1128 = vmatprep.subr.mxu0 0.0
  %1129 = vmatpush1.msra.mxu0 %v464
  %1130 = vmatprep.subr.mxu0 0.0
  %1131 = vmatpush1.msra.mxu0 %v465
  %1132 = vmatprep.subr.mxu0 0.0
  %1133 = vmatpush1.msra.mxu0 %v466
  %1134 = vmatprep.subr.mxu0 0.0
  %1135 = vmatpush1.msra.mxu0 %v467
  %1136 = vmatprep.subr.mxu0 0.0
  %1137 = vmatpush1.msra.mxu0 %v468
  %1138 = vmatprep.subr.mxu0 0.0
  %1139 = vmatpush1.msra.mxu0 %v469
  %1140 = vmatprep.subr.mxu0 0.0
  %1141 = vmatpush1.msra.mxu0 %v470
  %1142 = vmatprep.subr.mxu0 0.0
  %1143 = vmatpush1.msra.mxu0 %v471
  %1144 = vmatprep.subr.mxu0 0.0
  %1145 = vmatpush1.msra.mxu0 0.0
  %1146 = vmatprep.subr.mxu0 0.0
  %1147 = vmatpush1.msra.mxu0 0.0
  %1148 = vmatprep.subr.mxu0 0.0
  %1149 = vmatpush1.msra.mxu0 0.0
  %1150 = vmatprep.subr.mxu0 0.0
  %1151 = vmatpush1.msra.mxu0 0.0
  %1152 = vmatprep.subr.mxu0 0.0
  %1153 = vmatpush1.msra.mxu0 0.0
  %1154 = vmatprep.subr.mxu0 0.0
  %1155 = vmatpush1.msra.mxu0 0.0
  %1156 = vmatprep.subr.mxu0 0.0
  %1157 = vmatpush1.msra.mxu0 0.0
  %1158 = vmatprep.subr.mxu0 0.0
  %1159 = vmatpush1.msra.mxu0 0.0
  %1160 = vmatprep.subr.mxu0 0.0
  %1161 = vmatpush1.msra.mxu0 0.0
  %1162 = vmatprep.subr.mxu0 0.0
  %1163 = vmatpush1.msra.mxu0 0.0
  %1164 = vmatprep.subr.mxu0 0.0
  %1165 = vmatpush1.msra.mxu0 0.0
  %1166 = vmatprep.subr.mxu0 0.0
  %1167 = vmatpush1.msra.mxu0 0.0
  %1168 = vmatprep.subr.mxu0 0.0
  %1169 = vmatpush1.msra.mxu0 0.0
  %1170 = vmatprep.subr.mxu0 0.0
  %1171 = vmatpush1.msra.mxu0 0.0
  %1172 = vmatprep.subr.mxu0 0.0
  %1173 = vmatpush1.msra.mxu0 0.0
  %1174 = vmatprep.subr.mxu0 0.0
  %1175 = vmatpush1.msra.mxu0 0.0
  %1176 = vmatprep.mubr.f32.mxu0 0.0
  %1177 = vmatmul.mubr.f32.gmra.mrb[0].mxu0 %v1110
  %v1178 = vpop.f32.mrb[0].mxu0
  %v1179 = vadd.f32 0.0, %v1178
  %v1180 = vpop.f32.mrb[0].mxu0
  %1181 = vdwg.mxu0
  %v1182 = vadd.f32 %v450, %v1179
  %v1183 = vtanh.pop %v1182
  %v1184 = vpack.c.bf16 %v1183, %v1183
  %1185 = vst [vmem:[#allocation2 + $0x8] sm:$0x1] %v1184
  %1186 = vmatprep.subr.mxu0 0.0
  %1187 = vmatpush1.msra.mxu0 %v456
  %1188 = vmatprep.subr.mxu0 0.0
  %1189 = vmatpush1.msra.mxu0 %v457
  %1190 = vmatprep.subr.mxu0 0.0
  %1191 = vmatpush1.msra.mxu0 %v458
  %1192 = vmatprep.subr.mxu0 0.0
  %1193 = vmatpush1.msra.mxu0 %v459
  %1194 = vmatprep.subr.mxu0 0.0
  %1195 = vmatpush1.msra.mxu0 %v460
  %1196 = vmatprep.subr.mxu0 0.0
  %1197 = vmatpush1.msra.mxu0 %v461
  %1198 = vmatprep.subr.mxu0 0.0
  %1199 = vmatpush1.msra.mxu0 %v462
  %1200 = vmatprep.subr.mxu0 0.0
  %1201 = vmatpush1.msra.mxu0 %v463
  %1202 = vmatprep.subr.mxu0 0.0
  %1203 = vmatpush1.msra.mxu0 %v464
  %1204 = vmatprep.subr.mxu0 0.0
  %1205 = vmatpush1.msra.mxu0 %v465
  %1206 = vmatprep.subr.mxu0 0.0
  %1207 = vmatpush1.msra.mxu0 %v466
  %1208 = vmatprep.subr.mxu0 0.0
  %1209 = vmatpush1.msra.mxu0 %v467
  %1210 = vmatprep.subr.mxu0 0.0
  %1211 = vmatpush1.msra.mxu0 %v468
  %1212 = vmatprep.subr.mxu0 0.0
  %1213 = vmatpush1.msra.mxu0 %v469
  %1214 = vmatprep.subr.mxu0 0.0
  %1215 = vmatpush1.msra.mxu0 %v470
  %1216 = vmatprep.subr.mxu0 0.0
  %1217 = vmatpush1.msra.mxu0 %v471
  %1218 = vmatprep.subr.mxu0 0.0
  %1219 = vmatpush1.msra.mxu0 0.0
  %1220 = vmatprep.subr.mxu0 0.0
  %1221 = vmatpush1.msra.mxu0 0.0
  %1222 = vmatprep.subr.mxu0 0.0
  %1223 = vmatpush1.msra.mxu0 0.0
  %1224 = vmatprep.subr.mxu0 0.0
  %1225 = vmatpush1.msra.mxu0 0.0
  %1226 = vmatprep.subr.mxu0 0.0
  %1227 = vmatpush1.msra.mxu0 0.0
  %1228 = vmatprep.subr.mxu0 0.0
  %1229 = vmatpush1.msra.mxu0 0.0
  %1230 = vmatprep.subr.mxu0 0.0
  %1231 = vmatpush1.msra.mxu0 0.0
  %1232 = vmatprep.subr.mxu0 0.0
  %1233 = vmatpush1.msra.mxu0 0.0
  %1234 = vmatprep.subr.mxu0 0.0
  %1235 = vmatpush1.msra.mxu0 0.0
  %1236 = vmatprep.subr.mxu0 0.0
  %1237 = vmatpush1.msra.mxu0 0.0
  %1238 = vmatprep.subr.mxu0 0.0
  %1239 = vmatpush1.msra.mxu0 0.0
  %1240 = vmatprep.subr.mxu0 0.0
  %1241 = vmatpush1.msra.mxu0 0.0
  %1242 = vmatprep.subr.mxu0 0.0
  %1243 = vmatpush1.msra.mxu0 0.0
  %1244 = vmatprep.subr.mxu0 0.0
  %1245 = vmatpush1.msra.mxu0 0.0
  %1246 = vmatprep.subr.mxu0 0.0
  %1247 = vmatpush1.msra.mxu0 0.0
  %1248 = vmatprep.subr.mxu0 0.0
  %1249 = vmatpush1.msra.mxu0 0.0
  %1250 = vmatprep.mubr.f32.mxu0 0.0
  %1251 = vmatmul.mubr.f32.gmra.mrb[0].mxu0 %v1183
  %v1252 = vpop.f32.mrb[0].mxu0
  %v1253 = vadd.f32 0.0, %v1252
  %v1254 = vpop.f32.mrb[0].mxu0
  %1255 = vdwg.mxu0
  %v1257 = vrot.slane %v1253, 6
  %v1259 = vadd.f32 %v450, %v1257
  %v1260 = vtanh.pop %v1259
  %v1261 = vpack.c.bf16 %v1260, %v1260
  %1262 = vst [vmem:[#allocation2 + $0x8] sm:$0x2] %v1261
  %v1264 = vrot.slane %v1260, 2
  %1266 = vmatprep.subr.mxu0 0.0
  %1267 = vmatpush1.msra.mxu0 %v456
  %1268 = vmatprep.subr.mxu0 0.0
  %1269 = vmatpush1.msra.mxu0 %v457
  %1270 = vmatprep.subr.mxu0 0.0
  %1271 = vmatpush1.msra.mxu0 %v458
  %1272 = vmatprep.subr.mxu0 0.0
  %1273 = vmatpush1.msra.mxu0 %v459
  %1274 = vmatprep.subr.mxu0 0.0
  %1275 = vmatpush1.msra.mxu0 %v460
  %1276 = vmatprep.subr.mxu0 0.0
  %1277 = vmatpush1.msra.mxu0 %v461
  %1278 = vmatprep.subr.mxu0 0.0
  %1279 = vmatpush1.msra.mxu0 %v462
  %1280 = vmatprep.subr.mxu0 0.0
  %1281 = vmatpush1.msra.mxu0 %v463
  %1282 = vmatprep.subr.mxu0 0.0
  %1283 = vmatpush1.msra.mxu0 %v464
  %1284 = vmatprep.subr.mxu0 0.0
  %1285 = vmatpush1.msra.mxu0 %v465
  %1286 = vmatprep.subr.mxu0 0.0
  %1287 = vmatpush1.msra.mxu0 %v466
  %1288 = vmatprep.subr.mxu0 0.0
  %1289 = vmatpush1.msra.mxu0 %v467
  %1290 = vmatprep.subr.mxu0 0.0
  %1291 = vmatpush1.msra.mxu0 %v468
  %1292 = vmatprep.subr.mxu0 0.0
  %1293 = vmatpush1.msra.mxu0 %v469
  %1294 = vmatprep.subr.mxu0 0.0
  %1295 = vmatpush1.msra.mxu0 %v470
  %1296 = vmatprep.subr.mxu0 0.0
  %1297 = vmatpush1.msra.mxu0 %v471
  %1298 = vmatprep.subr.mxu0 0.0
  %1299 = vmatpush1.msra.mxu0 0.0
  %1300 = vmatprep.subr.mxu0 0.0
  %1301 = vmatpush1.msra.mxu0 0.0
  %1302 = vmatprep.subr.mxu0 0.0
  %1303 = vmatpush1.msra.mxu0 0.0
  %1304 = vmatprep.subr.mxu0 0.0
  %1305 = vmatpush1.msra.mxu0 0.0
  %1306 = vmatprep.subr.mxu0 0.0
  %1307 = vmatpush1.msra.mxu0 0.0
  %1308 = vmatprep.subr.mxu0 0.0
  %1309 = vmatpush1.msra.mxu0 0.0
  %1310 = vmatprep.subr.mxu0 0.0
  %1311 = vmatpush1.msra.mxu0 0.0
  %1312 = vmatprep.subr.mxu0 0.0
  %1313 = vmatpush1.msra.mxu0 0.0
  %1314 = vmatprep.subr.mxu0 0.0
  %1315 = vmatpush1.msra.mxu0 0.0
  %1316 = vmatprep.subr.mxu0 0.0
  %1317 = vmatpush1.msra.mxu0 0.0
  %1318 = vmatprep.subr.mxu0 0.0
  %1319 = vmatpush1.msra.mxu0 0.0
  %1320 = vmatprep.subr.mxu0 0.0
  %1321 = vmatpush1.msra.mxu0 0.0
  %1322 = vmatprep.subr.mxu0 0.0
  %1323 = vmatpush1.msra.mxu0 0.0
  %1324 = vmatprep.subr.mxu0 0.0
  %1325 = vmatpush1.msra.mxu0 0.0
  %1326 = vmatprep.subr.mxu0 0.0
  %1327 = vmatpush1.msra.mxu0 0.0
  %1328 = vmatprep.subr.mxu0 0.0
  %1329 = vmatpush1.msra.mxu0 0.0
  %1330 = vmatprep.mubr.f32.mxu0 0.0
  %1331 = vmatmul.mubr.f32.gmra.mrb[0].mxu0 %v1264
  %v1332 = vpop.f32.mrb[0].mxu0
  %v1333 = vadd.f32 0.0, %v1332
  %v1334 = vpop.f32.mrb[0].mxu0
  %1335 = vdwg.mxu0
  %v1337 = vrot.slane %v1333, 4
  %v1339 = vadd.f32 %v450, %v1337
  %v1340 = vtanh.pop %v1339
  %v1341 = vpack.c.bf16 %v1340, %v1340
  %1342 = vst [vmem:[#allocation2 + $0x8] sm:$0x4] %v1341
  %v1344 = vrot.slane %v1340, 4
  %1346 = vmatprep.subr.mxu0 0.0
  %1347 = vmatpush1.msra.mxu0 %v456
  %1348 = vmatprep.subr.mxu0 0.0
  %1349 = vmatpush1.msra.mxu0 %v457
  %1350 = vmatprep.subr.mxu0 0.0
  %1351 = vmatpush1.msra.mxu0 %v458
  %1352 = vmatprep.subr.mxu0 0.0
  %1353 = vmatpush1.msra.mxu0 %v459
  %1354 = vmatprep.subr.mxu0 0.0
  %1355 = vmatpush1.msra.mxu0 %v460
  %1356 = vmatprep.subr.mxu0 0.0
  %1357 = vmatpush1.msra.mxu0 %v461
  %1358 = vmatprep.subr.mxu0 0.0
  %1359 = vmatpush1.msra.mxu0 %v462
  %1360 = vmatprep.subr.mxu0 0.0
  %1361 = vmatpush1.msra.mxu0 %v463
  %1362 = vmatprep.subr.mxu0 0.0
  %1363 = vmatpush1.msra.mxu0 %v464
  %1364 = vmatprep.subr.mxu0 0.0
  %1365 = vmatpush1.msra.mxu0 %v465
  %1366 = vmatprep.subr.mxu0 0.0
  %1367 = vmatpush1.msra.mxu0 %v466
  %1368 = vmatprep.subr.mxu0 0.0
  %1369 = vmatpush1.msra.mxu0 %v467
  %1370 = vmatprep.subr.mxu0 0.0
  %1371 = vmatpush1.msra.mxu0 %v468
  %1372 = vmatprep.subr.mxu0 0.0
  %1373 = vmatpush1.msra.mxu0 %v469
  %1374 = vmatprep.subr.mxu0 0.0
  %1375 = vmatpush1.msra.mxu0 %v470
  %1376 = vmatprep.subr.mxu0 0.0
  %1377 = vmatpush1.msra.mxu0 %v471
  %1378 = vmatprep.subr.mxu0 0.0
  %1379 = vmatpush1.msra.mxu0 0.0
  %1380 = vmatprep.subr.mxu0 0.0
  %1381 = vmatpush1.msra.mxu0 0.0
  %1382 = vmatprep.subr.mxu0 0.0
  %1383 = vmatpush1.msra.mxu0 0.0
  %1384 = vmatprep.subr.mxu0 0.0
  %1385 = vmatpush1.msra.mxu0 0.0
  %1386 = vmatprep.subr.mxu0 0.0
  %1387 = vmatpush1.msra.mxu0 0.0
  %1388 = vmatprep.subr.mxu0 0.0
  %1389 = vmatpush1.msra.mxu0 0.0
  %1390 = vmatprep.subr.mxu0 0.0
  %1391 = vmatpush1.msra.mxu0 0.0
  %1392 = vmatprep.subr.mxu0 0.0
  %1393 = vmatpush1.msra.mxu0 0.0
  %1394 = vmatprep.subr.mxu0 0.0
  %1395 = vmatpush1.msra.mxu0 0.0
  %1396 = vmatprep.subr.mxu0 0.0
  %1397 = vmatpush1.msra.mxu0 0.0
  %1398 = vmatprep.subr.mxu0 0.0
  %1399 = vmatpush1.msra.mxu0 0.0
  %1400 = vmatprep.subr.mxu0 0.0
  %1401 = vmatpush1.msra.mxu0 0.0
  %1402 = vmatprep.subr.mxu0 0.0
  %1403 = vmatpush1.msra.mxu0 0.0
  %1404 = vmatprep.subr.mxu0 0.0
  %1405 = vmatpush1.msra.mxu0 0.0
  %1406 = vmatprep.subr.mxu0 0.0
  %1407 = vmatpush1.msra.mxu0 0.0
  %1408 = vmatprep.subr.mxu0 0.0
  %1409 = vmatpush1.msra.mxu0 0.0
  %1410 = vmatprep.mubr.f32.mxu0 0.0
  %1411 = vmatmul.mubr.f32.gmra.mrb[0].mxu0 %v1344
  %v1412 = vpop.f32.mrb[0].mxu0
  %v1413 = vadd.f32 0.0, %v1412
  %v1414 = vpop.f32.mrb[0].mxu0
  %1415 = vdwg.mxu0
  %v1417 = vrot.slane %v1413, 2
  %v1419 = vadd.f32 %v450, %v1417
  %v1420 = vtanh.pop %v1419
  %v1421 = vpack.c.bf16 %v1420, %v1420
  %1422 = vst [vmem:[#allocation2 + $0x8] sm:$0x8] %v1421
  %v1424 = vrot.slane %v1420, 6
  %1426 = vmatprep.subr.mxu0 0.0
  %1427 = vmatpush1.msra.mxu0 %v456
  %1428 = vmatprep.subr.mxu0 0.0
  %1429 = vmatpush1.msra.mxu0 %v457
  %1430 = vmatprep.subr.mxu0 0.0
  %1431 = vmatpush1.msra.mxu0 %v458
  %1432 = vmatprep.subr.mxu0 0.0
  %1433 = vmatpush1.msra.mxu0 %v459
  %1434 = vmatprep.subr.mxu0 0.0
  %1435 = vmatpush1.msra.mxu0 %v460
  %1436 = vmatprep.subr.mxu0 0.0
  %1437 = vmatpush1.msra.mxu0 %v461
  %1438 = vmatprep.subr.mxu0 0.0
  %1439 = vmatpush1.msra.mxu0 %v462
  %1440 = vmatprep.subr.mxu0 0.0
  %1441 = vmatpush1.msra.mxu0 %v463
  %1442 = vmatprep.subr.mxu0 0.0
  %1443 = vmatpush1.msra.mxu0 %v464
  %1444 = vmatprep.subr.mxu0 0.0
  %1445 = vmatpush1.msra.mxu0 %v465
  %1446 = vmatprep.subr.mxu0 0.0
  %1447 = vmatpush1.msra.mxu0 %v466
  %1448 = vmatprep.subr.mxu0 0.0
  %1449 = vmatpush1.msra.mxu0 %v467
  %1450 = vmatprep.subr.mxu0 0.0
  %1451 = vmatpush1.msra.mxu0 %v468
  %1452 = vmatprep.subr.mxu0 0.0
  %1453 = vmatpush1.msra.mxu0 %v469
  %1454 = vmatprep.subr.mxu0 0.0
  %1455 = vmatpush1.msra.mxu0 %v470
  %1456 = vmatprep.subr.mxu0 0.0
  %1457 = vmatpush1.msra.mxu0 %v471
  %1458 = vmatprep.subr.mxu0 0.0
  %1459 = vmatpush1.msra.mxu0 0.0
  %1460 = vmatprep.subr.mxu0 0.0
  %1461 = vmatpush1.msra.mxu0 0.0
  %1462 = vmatprep.subr.mxu0 0.0
  %1463 = vmatpush1.msra.mxu0 0.0
  %1464 = vmatprep.subr.mxu0 0.0
  %1465 = vmatpush1.msra.mxu0 0.0
  %1466 = vmatprep.subr.mxu0 0.0
  %1467 = vmatpush1.msra.mxu0 0.0
  %1468 = vmatprep.subr.mxu0 0.0
  %1469 = vmatpush1.msra.mxu0 0.0
  %1470 = vmatprep.subr.mxu0 0.0
  %1471 = vmatpush1.msra.mxu0 0.0
  %1472 = vmatprep.subr.mxu0 0.0
  %1473 = vmatpush1.msra.mxu0 0.0
  %1474 = vmatprep.subr.mxu0 0.0
  %1475 = vmatpush1.msra.mxu0 0.0
  %1476 = vmatprep.subr.mxu0 0.0
  %1477 = vmatpush1.msra.mxu0 0.0
  %1478 = vmatprep.subr.mxu0 0.0
  %1479 = vmatpush1.msra.mxu0 0.0
  %1480 = vmatprep.subr.mxu0 0.0
  %1481 = vmatpush1.msra.mxu0 0.0
  %1482 = vmatprep.subr.mxu0 0.0
  %1483 = vmatpush1.msra.mxu0 0.0
  %1484 = vmatprep.subr.mxu0 0.0
  %1485 = vmatpush1.msra.mxu0 0.0
  %1486 = vmatprep.subr.mxu0 0.0
  %1487 = vmatpush1.msra.mxu0 0.0
  %1488 = vmatprep.subr.mxu0 0.0
  %1489 = vmatpush1.msra.mxu0 0.0
  %1490 = vmatprep.mubr.f32.mxu0 0.0
  %1491 = vmatmul.mubr.f32.gmra.mrb[0].mxu0 %v1424
  %v1492 = vpop.f32.mrb[0].mxu0
  %v1493 = vadd.f32 0.0, %v1492
  %v1494 = vpop.f32.mrb[0].mxu0
  %1495 = vdwg.mxu0
  %v1496 = vadd.f32 %v453, %v1493
  %v1497 = vtanh.pop %v1496
  %v1498 = vpack.c.bf16 %v1497, %v1497
  %v1500 = vrot.slane %v1498, 4
  %1502 = vst [vmem:[#allocation2 + $0x8] sm:$0x10] %v1500
  %1503 = vmatprep.subr.mxu0 0.0
  %1504 = vmatpush1.msra.mxu0 %v456
  %1505 = vmatprep.subr.mxu0 0.0
  %1506 = vmatpush1.msra.mxu0 %v457
  %1507 = vmatprep.subr.mxu0 0.0
  %1508 = vmatpush1.msra.mxu0 %v458
  %1509 = vmatprep.subr.mxu0 0.0
  %1510 = vmatpush1.msra.mxu0 %v459
  %1511 = vmatprep.subr.mxu0 0.0
  %1512 = vmatpush1.msra.mxu0 %v460
  %1513 = vmatprep.subr.mxu0 0.0
  %1514 = vmatpush1.msra.mxu0 %v461
  %1515 = vmatprep.subr.mxu0 0.0
  %1516 = vmatpush1.msra.mxu0 %v462
  %1517 = vmatprep.subr.mxu0 0.0
  %1518 = vmatpush1.msra.mxu0 %v463
  %1519 = vmatprep.subr.mxu0 0.0
  %1520 = vmatpush1.msra.mxu0 %v464
  %1521 = vmatprep.subr.mxu0 0.0
  %1522 = vmatpush1.msra.mxu0 %v465
  %1523 = vmatprep.subr.mxu0 0.0
  %1524 = vmatpush1.msra.mxu0 %v466
  %1525 = vmatprep.subr.mxu0 0.0
  %1526 = vmatpush1.msra.mxu0 %v467
  %1527 = vmatprep.subr.mxu0 0.0
  %1528 = vmatpush1.msra.mxu0 %v468
  %1529 = vmatprep.subr.mxu0 0.0
  %1530 = vmatpush1.msra.mxu0 %v469
  %1531 = vmatprep.subr.mxu0 0.0
  %1532 = vmatpush1.msra.mxu0 %v470
  %1533 = vmatprep.subr.mxu0 0.0
  %1534 = vmatpush1.msra.mxu0 %v471
  %1535 = vmatprep.subr.mxu0 0.0
  %1536 = vmatpush1.msra.mxu0 0.0
  %1537 = vmatprep.subr.mxu0 0.0
  %1538 = vmatpush1.msra.mxu0 0.0
  %1539 = vmatprep.subr.mxu0 0.0
  %1540 = vmatpush1.msra.mxu0 0.0
  %1541 = vmatprep.subr.mxu0 0.0
  %1542 = vmatpush1.msra.mxu0 0.0
  %1543 = vmatprep.subr.mxu0 0.0
  %1544 = vmatpush1.msra.mxu0 0.0
  %1545 = vmatprep.subr.mxu0 0.0
  %1546 = vmatpush1.msra.mxu0 0.0
  %1547 = vmatprep.subr.mxu0 0.0
  %1548 = vmatpush1.msra.mxu0 0.0
  %1549 = vmatprep.subr.mxu0 0.0
  %1550 = vmatpush1.msra.mxu0 0.0
  %1551 = vmatprep.subr.mxu0 0.0
  %1552 = vmatpush1.msra.mxu0 0.0
  %1553 = vmatprep.subr.mxu0 0.0
  %1554 = vmatpush1.msra.mxu0 0.0
  %1555 = vmatprep.subr.mxu0 0.0
  %1556 = vmatpush1.msra.mxu0 0.0
  %1557 = vmatprep.subr.mxu0 0.0
  %1558 = vmatpush1.msra.mxu0 0.0
  %1559 = vmatprep.subr.mxu0 0.0
  %1560 = vmatpush1.msra.mxu0 0.0
  %1561 = vmatprep.subr.mxu0 0.0
  %1562 = vmatpush1.msra.mxu0 0.0
  %1563 = vmatprep.subr.mxu0 0.0
  %1564 = vmatpush1.msra.mxu0 0.0
  %1565 = vmatprep.subr.mxu0 0.0
  %1566 = vmatpush1.msra.mxu0 0.0
  %1567 = vmatprep.mubr.f32.mxu0 0.0
  %1568 = vmatmul.mubr.f32.gmra.mrb[0].mxu0 %v1497
  %v1569 = vpop.f32.mrb[0].mxu0
  %v1570 = vadd.f32 0.0, %v1569
  %v1571 = vpop.f32.mrb[0].mxu0
  %1572 = vdwg.mxu0
  %v1574 = vrot.slane %v1570, 6
  %v1576 = vadd.f32 %v453, %v1574
  %v1577 = vtanh.pop %v1576
  %v1578 = vpack.c.bf16 %v1577, %v1577
  %v1580 = vrot.slane %v1578, 4
  %1582 = vst [vmem:[#allocation2 + $0x8] sm:$0x20] %v1580
  %v1584 = vrot.slane %v1577, 2
  %1586 = vmatprep.subr.mxu0 0.0
  %1587 = vmatpush1.msra.mxu0 %v456
  %1588 = vmatprep.subr.mxu0 0.0
  %1589 = vmatpush1.msra.mxu0 %v457
  %1590 = vmatprep.subr.mxu0 0.0
  %1591 = vmatpush1.msra.mxu0 %v458
  %1592 = vmatprep.subr.mxu0 0.0
  %1593 = vmatpush1.msra.mxu0 %v459
  %1594 = vmatprep.subr.mxu0 0.0
  %1595 = vmatpush1.msra.mxu0 %v460
  %1596 = vmatprep.subr.mxu0 0.0
  %1597 = vmatpush1.msra.mxu0 %v461
  %1598 = vmatprep.subr.mxu0 0.0
  %1599 = vmatpush1.msra.mxu0 %v462
  %1600 = vmatprep.subr.mxu0 0.0
  %1601 = vmatpush1.msra.mxu0 %v463
  %1602 = vmatprep.subr.mxu0 0.0
  %1603 = vmatpush1.msra.mxu0 %v464
  %1604 = vmatprep.subr.mxu0 0.0
  %1605 = vmatpush1.msra.mxu0 %v465
  %1606 = vmatprep.subr.mxu0 0.0
  %1607 = vmatpush1.msra.mxu0 %v466
  %1608 = vmatprep.subr.mxu0 0.0
  %1609 = vmatpush1.msra.mxu0 %v467
  %1610 = vmatprep.subr.mxu0 0.0
  %1611 = vmatpush1.msra.mxu0 %v468
  %1612 = vmatprep.subr.mxu0 0.0
  %1613 = vmatpush1.msra.mxu0 %v469
  %1614 = vmatprep.subr.mxu0 0.0
  %1615 = vmatpush1.msra.mxu0 %v470
  %1616 = vmatprep.subr.mxu0 0.0
  %1617 = vmatpush1.msra.mxu0 %v471
  %1618 = vmatprep.subr.mxu0 0.0
  %1619 = vmatpush1.msra.mxu0 0.0
  %1620 = vmatprep.subr.mxu0 0.0
  %1621 = vmatpush1.msra.mxu0 0.0
  %1622 = vmatprep.subr.mxu0 0.0
  %1623 = vmatpush1.msra.mxu0 0.0
  %1624 = vmatprep.subr.mxu0 0.0
  %1625 = vmatpush1.msra.mxu0 0.0
  %1626 = vmatprep.subr.mxu0 0.0
  %1627 = vmatpush1.msra.mxu0 0.0
  %1628 = vmatprep.subr.mxu0 0.0
  %1629 = vmatpush1.msra.mxu0 0.0
  %1630 = vmatprep.subr.mxu0 0.0
  %1631 = vmatpush1.msra.mxu0 0.0
  %1632 = vmatprep.subr.mxu0 0.0
  %1633 = vmatpush1.msra.mxu0 0.0
  %1634 = vmatprep.subr.mxu0 0.0
  %1635 = vmatpush1.msra.mxu0 0.0
  %1636 = vmatprep.subr.mxu0 0.0
  %1637 = vmatpush1.msra.mxu0 0.0
  %1638 = vmatprep.subr.mxu0 0.0
  %1639 = vmatpush1.msra.mxu0 0.0
  %1640 = vmatprep.subr.mxu0 0.0
  %1641 = vmatpush1.msra.mxu0 0.0
  %1642 = vmatprep.subr.mxu0 0.0
  %1643 = vmatpush1.msra.mxu0 0.0
  %1644 = vmatprep.subr.mxu0 0.0
  %1645 = vmatpush1.msra.mxu0 0.0
  %1646 = vmatprep.subr.mxu0 0.0
  %1647 = vmatpush1.msra.mxu0 0.0
  %1648 = vmatprep.subr.mxu0 0.0
  %1649 = vmatpush1.msra.mxu0 0.0
  %1650 = vmatprep.mubr.f32.mxu0 0.0
  %1651 = vmatmul.mubr.f32.gmra.mrb[0].mxu0 %v1584
  %v1652 = vpop.f32.mrb[0].mxu0
  %v1653 = vadd.f32 0.0, %v1652
  %v1654 = vpop.f32.mrb[0].mxu0
  %1655 = vdwg.mxu0
  %v1657 = vrot.slane %v1653, 4
  %v1659 = vadd.f32 %v453, %v1657
  %v1660 = vtanh.pop %v1659
  %v1661 = vpack.c.bf16 %v1660, %v1660
  %v1663 = vrot.slane %v1661, 4
  %1665 = vst [vmem:[#allocation2 + $0x8] sm:$0x40] %v1663
  %v1667 = vrot.slane %v1660, 4
  %1669 = vmatprep.subr.mxu0 0.0
  %1670 = vmatpush1.msra.mxu0 %v456
  %1671 = vmatprep.subr.mxu0 0.0
  %1672 = vmatpush1.msra.mxu0 %v457
  %1673 = vmatprep.subr.mxu0 0.0
  %1674 = vmatpush1.msra.mxu0 %v458
  %1675 = vmatprep.subr.mxu0 0.0
  %1676 = vmatpush1.msra.mxu0 %v459
  %1677 = vmatprep.subr.mxu0 0.0
  %1678 = vmatpush1.msra.mxu0 %v460
  %1679 = vmatprep.subr.mxu0 0.0
  %1680 = vmatpush1.msra.mxu0 %v461
  %1681 = vmatprep.subr.mxu0 0.0
  %1682 = vmatpush1.msra.mxu0 %v462
  %1683 = vmatprep.subr.mxu0 0.0
  %1684 = vmatpush1.msra.mxu0 %v463
  %1685 = vmatprep.subr.mxu0 0.0
  %1686 = vmatpush1.msra.mxu0 %v464
  %1687 = vmatprep.subr.mxu0 0.0
  %1688 = vmatpush1.msra.mxu0 %v465
  %1689 = vmatprep.subr.mxu0 0.0
  %1690 = vmatpush1.msra.mxu0 %v466
  %1691 = vmatprep.subr.mxu0 0.0
  %1692 = vmatpush1.msra.mxu0 %v467
  %1693 = vmatprep.subr.mxu0 0.0
  %1694 = vmatpush1.msra.mxu0 %v468
  %1695 = vmatprep.subr.mxu0 0.0
  %1696 = vmatpush1.msra.mxu0 %v469
  %1697 = vmatprep.subr.mxu0 0.0
  %1698 = vmatpush1.msra.mxu0 %v470
  %1699 = vmatprep.subr.mxu0 0.0
  %1700 = vmatpush1.msra.mxu0 %v471
  %1701 = vmatprep.subr.mxu0 0.0
  %1702 = vmatpush1.msra.mxu0 0.0
  %1703 = vmatprep.subr.mxu0 0.0
  %1704 = vmatpush1.msra.mxu0 0.0
  %1705 = vmatprep.subr.mxu0 0.0
  %1706 = vmatpush1.msra.mxu0 0.0
  %1707 = vmatprep.subr.mxu0 0.0
  %1708 = vmatpush1.msra.mxu0 0.0
  %1709 = vmatprep.subr.mxu0 0.0
  %1710 = vmatpush1.msra.mxu0 0.0
  %1711 = vmatprep.subr.mxu0 0.0
  %1712 = vmatpush1.msra.mxu0 0.0
  %1713 = vmatprep.subr.mxu0 0.0
  %1714 = vmatpush1.msra.mxu0 0.0
  %1715 = vmatprep.subr.mxu0 0.0
  %1716 = vmatpush1.msra.mxu0 0.0
  %1717 = vmatprep.subr.mxu0 0.0
  %1718 = vmatpush1.msra.mxu0 0.0
  %1719 = vmatprep.subr.mxu0 0.0
  %1720 = vmatpush1.msra.mxu0 0.0
  %1721 = vmatprep.subr.mxu0 0.0
  %1722 = vmatpush1.msra.mxu0 0.0
  %1723 = vmatprep.subr.mxu0 0.0
  %1724 = vmatpush1.msra.mxu0 0.0
  %1725 = vmatprep.subr.mxu0 0.0
  %1726 = vmatpush1.msra.mxu0 0.0
  %1727 = vmatprep.subr.mxu0 0.0
  %1728 = vmatpush1.msra.mxu0 0.0
  %1729 = vmatprep.subr.mxu0 0.0
  %1730 = vmatpush1.msra.mxu0 0.0
  %1731 = vmatprep.subr.mxu0 0.0
  %1732 = vmatpush1.msra.mxu0 0.0
  %1733 = vmatprep.mubr.f32.mxu0 0.0
  %1734 = vmatmul.mubr.f32.gmra.mrb[0].mxu0 %v1667
  %v1735 = vpop.f32.mrb[0].mxu0
  %v1736 = vadd.f32 0.0, %v1735
  %v1737 = vpop.f32.mrb[0].mxu0
  %1738 = vdwg.mxu0
  %v1740 = vrot.slane %v1736, 2
  %v1742 = vadd.f32 %v453, %v1740
  %v1743 = vtanh.pop %v1742
  %v1744 = vpack.c.bf16 %v1743, %v1743
  %v1746 = vrot.slane %v1744, 4
  %1748 = vst [vmem:[#allocation2 + $0x8] sm:$0x80] %v1746
  %v1749 = vld [vmem:[#allocation2] sm:$0xff]
  %v1750 = vld [vmem:[#allocation2 + $0x8] sm:$0xff]
  %v1751 = vld [vmem:[%s7] sm:$0xf]
  %v1752 = vld [vmem:[%s7 + $0x4] sm:$0xf]
  %v1753 = vld [vmem:[%s7 + $0x8] sm:$0xf]
  %v1754 = vld [vmem:[%s7 + $0xc] sm:$0xf]
  %v1755 = vld [vmem:[%s7 + $0x10] sm:$0xf]
  %v1756 = vld [vmem:[%s7 + $0x14] sm:$0xf]
  %v1757 = vld [vmem:[%s7 + $0x18] sm:$0xf]
  %v1758 = vld [vmem:[%s7 + $0x1c] sm:$0xf]
  %v1759 = vld [vmem:[%s7 + $0x20] sm:$0xf]
  %v1760 = vld [vmem:[%s7 + $0x24] sm:$0xf]
  %v1761 = vld [vmem:[%s7 + $0x28] sm:$0xf]
  %v1762 = vld [vmem:[%s7 + $0x2c] sm:$0xf]
  %v1763 = vld [vmem:[%s7 + $0x30] sm:$0xf]
  %v1764 = vld [vmem:[%s7 + $0x34] sm:$0xf]
  %v1765 = vld [vmem:[%s7 + $0x38] sm:$0xf]
  %v1766 = vld [vmem:[%s7 + $0x3c] sm:$0xf]
  %v1767 = vld [vmem:[%s9] sm:$0x1]
  %v1769 = vlaneseq
  %v1770 = vshrl.u32 %v1769, 7
  %v1771 = vsub.s32 0, %v1770
  %v1772 = vrot.slane %v1767, %v1771
  %v1790 = vunpack.c.l.b16 %v1751
  %v1791 = vunpack.c.l.b16 %v1752
  %v1792 = vunpack.c.l.b16 %v1753
  %v1793 = vunpack.c.l.b16 %v1754
  %v1794 = vunpack.c.l.b16 %v1755
  %v1795 = vunpack.c.l.b16 %v1756
  %v1796 = vunpack.c.l.b16 %v1757
  %v1797 = vunpack.c.l.b16 %v1758
  %v1798 = vunpack.c.l.b16 %v1759
  %v1799 = vunpack.c.l.b16 %v1760
  %v1800 = vunpack.c.l.b16 %v1761
  %v1801 = vunpack.c.l.b16 %v1762
  %v1802 = vunpack.c.l.b16 %v1763
  %v1803 = vunpack.c.l.b16 %v1764
  %v1804 = vunpack.c.l.b16 %v1765
  %v1805 = vunpack.c.l.b16 %v1766
  %v1806 = vpack.c.b16 %v1791, %v1790
  %v1807 = vpack.c.b16 %v1793, %v1792
  %v1808 = vpack.c.b16 %v1795, %v1794
  %v1809 = vpack.c.b16 %v1797, %v1796
  %v1810 = vpack.c.b16 %v1799, %v1798
  %v1811 = vpack.c.b16 %v1801, %v1800
  %v1812 = vpack.c.b16 %v1803, %v1802
  %v1813 = vpack.c.b16 %v1805, %v1804
  %1822 = vmatprep.subr.bf16.mxu0 0
  %1823 = vmatpush1.bf16.msra.mxu0 %v1806
  %1824 = vmatprep.subr.bf16.mxu0 0
  %1825 = vmatpush1.bf16.msra.mxu0 %v1807
  %1826 = vmatprep.subr.bf16.mxu0 0
  %1827 = vmatpush1.bf16.msra.mxu0 %v1808
  %1828 = vmatprep.subr.bf16.mxu0 0
  %1829 = vmatpush1.bf16.msra.mxu0 %v1809
  %1830 = vmatprep.subr.bf16.mxu0 0
  %1831 = vmatpush1.bf16.msra.mxu0 %v1810
  %1832 = vmatprep.subr.bf16.mxu0 0
  %1833 = vmatpush1.bf16.msra.mxu0 %v1811
  %1834 = vmatprep.subr.bf16.mxu0 0
  %1835 = vmatpush1.bf16.msra.mxu0 %v1812
  %1836 = vmatprep.subr.bf16.mxu0 0
  %1837 = vmatpush1.bf16.msra.mxu0 %v1813
  %1838 = vmatprep.subr.bf16.mxu0 0
  %1839 = vmatpush1.bf16.msra.mxu0 0
  %1840 = vmatprep.subr.bf16.mxu0 0
  %1841 = vmatpush1.bf16.msra.mxu0 0
  %1842 = vmatprep.subr.bf16.mxu0 0
  %1843 = vmatpush1.bf16.msra.mxu0 0
  %1844 = vmatprep.subr.bf16.mxu0 0
  %1845 = vmatpush1.bf16.msra.mxu0 0
  %1846 = vmatprep.subr.bf16.mxu0 0
  %1847 = vmatpush1.bf16.msra.mxu0 0
  %1848 = vmatprep.subr.bf16.mxu0 0
  %1849 = vmatpush1.bf16.msra.mxu0 0
  %1850 = vmatprep.subr.bf16.mxu0 0
  %1851 = vmatpush1.bf16.msra.mxu0 0
  %1852 = vmatprep.subr.bf16.mxu0 0
  %1853 = vmatpush1.bf16.msra.mxu0 0
  %1854 = vmatprep.mubr.bf16.mxu0 0
  %1855 = vmatmul.mubr.bf16.gmra.mrb[0].mxu0 %v1749
  %v1856 = vpop.f32.mrb[0].mxu0
  %v1857 = vadd.f32 %v1772, %v1856
  %v1858 = vpop.f32.mrb[0].mxu0
  %v1859 = vpop.f32.mrb[0].mxu0
  %v1860 = vadd.f32 %v1772, %v1859
  %v1861 = vpop.f32.mrb[0].mxu0
  %1862 = vmatprep.mubr.bf16.mxu0 0
  %1863 = vmatmul.mubr.bf16.gmra.mrb[0].mxu0 %v1750
  %v1864 = vpop.f32.mrb[0].mxu0
  %v1865 = vadd.f32 %v1772, %v1864
  %v1866 = vpop.f32.mrb[0].mxu0
  %v1867 = vpop.f32.mrb[0].mxu0
  %v1868 = vadd.f32 %v1772, %v1867
  %v1869 = vpop.f32.mrb[0].mxu0
  %1870 = vdwg.mxu0
  %v1871 = vld [vmem:[%s8] sm:$0xff]
  %v1872 = vld [vmem:[%s8 + $0x8] sm:$0xff]
  %v1873 = vld [vmem:[%s8 + $0x10] sm:$0xff]
  %v1874 = vld [vmem:[%s8 + $0x18] sm:$0xff]
  %v1875 = vld [vmem:[%s8 + $0x20] sm:$0xff]
  %v1876 = vld [vmem:[%s8 + $0x28] sm:$0xff]
  %v1877 = vld [vmem:[%s8 + $0x30] sm:$0xff]
  %v1878 = vld [vmem:[%s8 + $0x38] sm:$0xff]
  %v1879 = vld [vmem:[%s8 + $0x40] sm:$0xff]
  %v1880 = vld [vmem:[%s8 + $0x48] sm:$0xff]
  %v1881 = vld [vmem:[%s8 + $0x50] sm:$0xff]
  %v1882 = vld [vmem:[%s8 + $0x58] sm:$0xff]
  %v1883 = vld [vmem:[%s8 + $0x60] sm:$0xff]
  %v1884 = vld [vmem:[%s8 + $0x68] sm:$0xff]
  %v1885 = vld [vmem:[%s8 + $0x70] sm:$0xff]
  %v1886 = vld [vmem:[%s8 + $0x78] sm:$0xff]
  %1887 = vmatprep.subr.mxu0 0.0
  %1888 = vmatpush1.msra.mxu0 %v1871
  %1889 = vmatprep.subr.mxu0 0.0
  %1890 = vmatpush1.msra.mxu0 %v1872
  %1891 = vmatprep.subr.mxu0 0.0
  %1892 = vmatpush1.msra.mxu0 %v1873
  %1893 = vmatprep.subr.mxu0 0.0
  %1894 = vmatpush1.msra.mxu0 %v1874
  %1895 = vmatprep.subr.mxu0 0.0
  %1896 = vmatpush1.msra.mxu0 %v1875
  %1897 = vmatprep.subr.mxu0 0.0
  %1898 = vmatpush1.msra.mxu0 %v1876
  %1899 = vmatprep.subr.mxu0 0.0
  %1900 = vmatpush1.msra.mxu0 %v1877
  %1901 = vmatprep.subr.mxu0 0.0
  %1902 = vmatpush1.msra.mxu0 %v1878
  %1903 = vmatprep.subr.mxu0 0.0
  %1904 = vmatpush1.msra.mxu0 %v1879
  %1905 = vmatprep.subr.mxu0 0.0
  %1906 = vmatpush1.msra.mxu0 %v1880
  %1907 = vmatprep.subr.mxu0 0.0
  %1908 = vmatpush1.msra.mxu0 %v1881
  %1909 = vmatprep.subr.mxu0 0.0
  %1910 = vmatpush1.msra.mxu0 %v1882
  %1911 = vmatprep.subr.mxu0 0.0
  %1912 = vmatpush1.msra.mxu0 %v1883
  %1913 = vmatprep.subr.mxu0 0.0
  %1914 = vmatpush1.msra.mxu0 %v1884
  %1915 = vmatprep.subr.mxu0 0.0
  %1916 = vmatpush1.msra.mxu0 %v1885
  %1917 = vmatprep.subr.mxu0 0.0
  %1918 = vmatpush1.msra.mxu0 %v1886
  %1919 = vmatprep.subr.mxu0 0.0
  %1920 = vmatpush1.msra.mxu0 0.0
  %1921 = vmatprep.subr.mxu0 0.0
  %1922 = vmatpush1.msra.mxu0 0.0
  %1923 = vmatprep.subr.mxu0 0.0
  %1924 = vmatpush1.msra.mxu0 0.0
  %1925 = vmatprep.subr.mxu0 0.0
  %1926 = vmatpush1.msra.mxu0 0.0
  %1927 = vmatprep.subr.mxu0 0.0
  %1928 = vmatpush1.msra.mxu0 0.0
  %1929 = vmatprep.subr.mxu0 0.0
  %1930 = vmatpush1.msra.mxu0 0.0
  %1931 = vmatprep.subr.mxu0 0.0
  %1932 = vmatpush1.msra.mxu0 0.0
  %1933 = vmatprep.subr.mxu0 0.0
  %1934 = vmatpush1.msra.mxu0 0.0
  %1935 = vmatprep.subr.mxu0 0.0
  %1936 = vmatpush1.msra.mxu0 0.0
  %1937 = vmatprep.subr.mxu0 0.0
  %1938 = vmatpush1.msra.mxu0 0.0
  %1939 = vmatprep.subr.mxu0 0.0
  %1940 = vmatpush1.msra.mxu0 0.0
  %1941 = vmatprep.subr.mxu0 0.0
  %1942 = vmatpush1.msra.mxu0 0.0
  %1943 = vmatprep.subr.mxu0 0.0
  %1944 = vmatpush1.msra.mxu0 0.0
  %1945 = vmatprep.subr.mxu0 0.0
  %1946 = vmatpush1.msra.mxu0 0.0
  %1947 = vmatprep.subr.mxu0 0.0
  %1948 = vmatpush1.msra.mxu0 0.0
  %1949 = vmatprep.subr.mxu0 0.0
  %1950 = vmatpush1.msra.mxu0 0.0
  %1951 = vmatprep.mubr.f32.mxu0 0.0
  %1952 = vmatmul.mubr.f32.gmra.mrb[0].mxu0 %v331
  %v1953 = vpop.f32.mrb[0].mxu0
  %v1954 = vadd.f32 0.0, %v1953
  %v1955 = vpop.f32.mrb[0].mxu0
  %1956 = vdwg.mxu0
  %v1957 = vadd.f32 %v1857, %v1954
  %v1958 = vtanh.pop %v1957
  %v1959 = vpack.c.bf16 %v1958, %v1958
  %vm1960 = vcmask 1040384
  %vm1961 = vsmask.f32 256
  %vm1962 = vmand %vm1960, %vm1961
  %v1963 = vld [vmem:[#allocation3] sm:$0x1]
  %v1964 = vsel %vm1962, %v1959, %v1963
  %1965 = vst [vmem:[#allocation3] sm:$0x1] %v1964
  %v1967 = vshrl.u32 %v1959, 16
  %v1970 = vld [vmem:[#allocation3 + $0x8] sm:$0x1]
  %v1971 = vsel %vm1962, %v1967, %v1970
  %1972 = vst [vmem:[#allocation3 + $0x8] sm:$0x1] %v1971
  %1973 = vmatprep.subr.mxu0 0.0
  %1974 = vmatpush1.msra.mxu0 %v1871
  %1975 = vmatprep.subr.mxu0 0.0
  %1976 = vmatpush1.msra.mxu0 %v1872
  %1977 = vmatprep.subr.mxu0 0.0
  %1978 = vmatpush1.msra.mxu0 %v1873
  %1979 = vmatprep.subr.mxu0 0.0
  %1980 = vmatpush1.msra.mxu0 %v1874
  %1981 = vmatprep.subr.mxu0 0.0
  %1982 = vmatpush1.msra.mxu0 %v1875
  %1983 = vmatprep.subr.mxu0 0.0
  %1984 = vmatpush1.msra.mxu0 %v1876
  %1985 = vmatprep.subr.mxu0 0.0
  %1986 = vmatpush1.msra.mxu0 %v1877
  %1987 = vmatprep.subr.mxu0 0.0
  %1988 = vmatpush1.msra.mxu0 %v1878
  %1989 = vmatprep.subr.mxu0 0.0
  %1990 = vmatpush1.msra.mxu0 %v1879
  %1991 = vmatprep.subr.mxu0 0.0
  %1992 = vmatpush1.msra.mxu0 %v1880
  %1993 = vmatprep.subr.mxu0 0.0
  %1994 = vmatpush1.msra.mxu0 %v1881
  %1995 = vmatprep.subr.mxu0 0.0
  %1996 = vmatpush1.msra.mxu0 %v1882
  %1997 = vmatprep.subr.mxu0 0.0
  %1998 = vmatpush1.msra.mxu0 %v1883
  %1999 = vmatprep.subr.mxu0 0.0
  %2000 = vmatpush1.msra.mxu0 %v1884
  %2001 = vmatprep.subr.mxu0 0.0
  %2002 = vmatpush1.msra.mxu0 %v1885
  %2003 = vmatprep.subr.mxu0 0.0
  %2004 = vmatpush1.msra.mxu0 %v1886
  %2005 = vmatprep.subr.mxu0 0.0
  %2006 = vmatpush1.msra.mxu0 0.0
  %2007 = vmatprep.subr.mxu0 0.0
  %2008 = vmatpush1.msra.mxu0 0.0
  %2009 = vmatprep.subr.mxu0 0.0
  %2010 = vmatpush1.msra.mxu0 0.0
  %2011 = vmatprep.subr.mxu0 0.0
  %2012 = vmatpush1.msra.mxu0 0.0
  %2013 = vmatprep.subr.mxu0 0.0
  %2014 = vmatpush1.msra.mxu0 0.0
  %2015 = vmatprep.subr.mxu0 0.0
  %2016 = vmatpush1.msra.mxu0 0.0
  %2017 = vmatprep.subr.mxu0 0.0
  %2018 = vmatpush1.msra.mxu0 0.0
  %2019 = vmatprep.subr.mxu0 0.0
  %2020 = vmatpush1.msra.mxu0 0.0
  %2021 = vmatprep.subr.mxu0 0.0
  %2022 = vmatpush1.msra.mxu0 0.0
  %2023 = vmatprep.subr.mxu0 0.0
  %2024 = vmatpush1.msra.mxu0 0.0
  %2025 = vmatprep.subr.mxu0 0.0
  %2026 = vmatpush1.msra.mxu0 0.0
  %2027 = vmatprep.subr.mxu0 0.0
  %2028 = vmatpush1.msra.mxu0 0.0
  %2029 = vmatprep.subr.mxu0 0.0
  %2030 = vmatpush1.msra.mxu0 0.0
  %2031 = vmatprep.subr.mxu0 0.0
  %2032 = vmatpush1.msra.mxu0 0.0
  %2033 = vmatprep.subr.mxu0 0.0
  %2034 = vmatpush1.msra.mxu0 0.0
  %2035 = vmatprep.subr.mxu0 0.0
  %2036 = vmatpush1.msra.mxu0 0.0
  %2037 = vmatprep.mubr.f32.mxu0 0.0
  %2038 = vmatmul.mubr.f32.gmra.mrb[0].mxu0 %v1958
  %v2039 = vpop.f32.mrb[0].mxu0
  %v2040 = vadd.f32 0.0, %v2039
  %v2041 = vpop.f32.mrb[0].mxu0
  %2042 = vdwg.mxu0
  %v2044 = vrot.slane %v2040, 6
  %v2046 = vadd.f32 %v1857, %v2044
  %v2047 = vtanh.pop %v2046
  %v2048 = vpack.c.bf16 %v2047, %v2047
  %v2050 = vshll.u32 %v2048, 16
  %v2052 = vrot.slane %v2050, 1
  %vm2054 = vsmask.f32 7938
  %vm2055 = vmand %vm1960, %vm2054
  %v2056 = vld [vmem:[#allocation3] sm:$0x1]
  %v2057 = vsel %vm2055, %v2052, %v2056
  %2058 = vst [vmem:[#allocation3] sm:$0x1] %v2057
  %v2060 = vrot.slane %v2048, 1
  %v2062 = vld [vmem:[#allocation3 + $0x8] sm:$0x1]
  %v2063 = vsel %vm2055, %v2060, %v2062
  %2064 = vst [vmem:[#allocation3 + $0x8] sm:$0x1] %v2063
  %v2066 = vrot.slane %v2047, 2
  %2068 = vmatprep.subr.mxu0 0.0
  %2069 = vmatpush1.msra.mxu0 %v1871
  %2070 = vmatprep.subr.mxu0 0.0
  %2071 = vmatpush1.msra.mxu0 %v1872
  %2072 = vmatprep.subr.mxu0 0.0
  %2073 = vmatpush1.msra.mxu0 %v1873
  %2074 = vmatprep.subr.mxu0 0.0
  %2075 = vmatpush1.msra.mxu0 %v1874
  %2076 = vmatprep.subr.mxu0 0.0
  %2077 = vmatpush1.msra.mxu0 %v1875
  %2078 = vmatprep.subr.mxu0 0.0
  %2079 = vmatpush1.msra.mxu0 %v1876
  %2080 = vmatprep.subr.mxu0 0.0
  %2081 = vmatpush1.msra.mxu0 %v1877
  %2082 = vmatprep.subr.mxu0 0.0
  %2083 = vmatpush1.msra.mxu0 %v1878
  %2084 = vmatprep.subr.mxu0 0.0
  %2085 = vmatpush1.msra.mxu0 %v1879
  %2086 = vmatprep.subr.mxu0 0.0
  %2087 = vmatpush1.msra.mxu0 %v1880
  %2088 = vmatprep.subr.mxu0 0.0
  %2089 = vmatpush1.msra.mxu0 %v1881
  %2090 = vmatprep.subr.mxu0 0.0
  %2091 = vmatpush1.msra.mxu0 %v1882
  %2092 = vmatprep.subr.mxu0 0.0
  %2093 = vmatpush1.msra.mxu0 %v1883
  %2094 = vmatprep.subr.mxu0 0.0
  %2095 = vmatpush1.msra.mxu0 %v1884
  %2096 = vmatprep.subr.mxu0 0.0
  %2097 = vmatpush1.msra.mxu0 %v1885
  %2098 = vmatprep.subr.mxu0 0.0
  %2099 = vmatpush1.msra.mxu0 %v1886
  %2100 = vmatprep.subr.mxu0 0.0
  %2101 = vmatpush1.msra.mxu0 0.0
  %2102 = vmatprep.subr.mxu0 0.0
  %2103 = vmatpush1.msra.mxu0 0.0
  %2104 = vmatprep.subr.mxu0 0.0
  %2105 = vmatpush1.msra.mxu0 0.0
  %2106 = vmatprep.subr.mxu0 0.0
  %2107 = vmatpush1.msra.mxu0 0.0
  %2108 = vmatprep.subr.mxu0 0.0
  %2109 = vmatpush1.msra.mxu0 0.0
  %2110 = vmatprep.subr.mxu0 0.0
  %2111 = vmatpush1.msra.mxu0 0.0
  %2112 = vmatprep.subr.mxu0 0.0
  %2113 = vmatpush1.msra.mxu0 0.0
  %2114 = vmatprep.subr.mxu0 0.0
  %2115 = vmatpush1.msra.mxu0 0.0
  %2116 = vmatprep.subr.mxu0 0.0
  %2117 = vmatpush1.msra.mxu0 0.0
  %2118 = vmatprep.subr.mxu0 0.0
  %2119 = vmatpush1.msra.mxu0 0.0
  %2120 = vmatprep.subr.mxu0 0.0
  %2121 = vmatpush1.msra.mxu0 0.0
  %2122 = vmatprep.subr.mxu0 0.0
  %2123 = vmatpush1.msra.mxu0 0.0
  %2124 = vmatprep.subr.mxu0 0.0
  %2125 = vmatpush1.msra.mxu0 0.0
  %2126 = vmatprep.subr.mxu0 0.0
  %2127 = vmatpush1.msra.mxu0 0.0
  %2128 = vmatprep.subr.mxu0 0.0
  %2129 = vmatpush1.msra.mxu0 0.0
  %2130 = vmatprep.subr.mxu0 0.0
  %2131 = vmatpush1.msra.mxu0 0.0
  %2132 = vmatprep.mubr.f32.mxu0 0.0
  %2133 = vmatmul.mubr.f32.gmra.mrb[0].mxu0 %v2066
  %v2134 = vpop.f32.mrb[0].mxu0
  %v2135 = vadd.f32 0.0, %v2134
  %v2136 = vpop.f32.mrb[0].mxu0
  %2137 = vdwg.mxu0
  %v2139 = vrot.slane %v2135, 4
  %v2141 = vadd.f32 %v1857, %v2139
  %v2142 = vtanh.pop %v2141
  %v2143 = vpack.c.bf16 %v2142, %v2142
  %v2145 = vrot.slane %v2143, 1
  %vm2147 = vcmask 1041409
  %vm2148 = vsmask.f32 1280
  %vm2149 = vmand %vm2147, %vm2148
  %v2150 = vld [vmem:[#allocation3] sm:$0x2]
  %v2151 = vsel %vm2149, %v2145, %v2150
  %2152 = vst [vmem:[#allocation3] sm:$0x2] %v2151
  %v2154 = vshrl.u32 %v2143, 16
  %v2156 = vrot.slane %v2154, 1
  %v2158 = vld [vmem:[#allocation3 + $0x8] sm:$0x2]
  %v2159 = vsel %vm2149, %v2156, %v2158
  %2160 = vst [vmem:[#allocation3 + $0x8] sm:$0x2] %v2159
  %v2162 = vrot.slane %v2142, 4
  %2164 = vmatprep.subr.mxu0 0.0
  %2165 = vmatpush1.msra.mxu0 %v1871
  %2166 = vmatprep.subr.mxu0 0.0
  %2167 = vmatpush1.msra.mxu0 %v1872
  %2168 = vmatprep.subr.mxu0 0.0
  %2169 = vmatpush1.msra.mxu0 %v1873
  %2170 = vmatprep.subr.mxu0 0.0
  %2171 = vmatpush1.msra.mxu0 %v1874
  %2172 = vmatprep.subr.mxu0 0.0
  %2173 = vmatpush1.msra.mxu0 %v1875
  %2174 = vmatprep.subr.mxu0 0.0
  %2175 = vmatpush1.msra.mxu0 %v1876
  %2176 = vmatprep.subr.mxu0 0.0
  %2177 = vmatpush1.msra.mxu0 %v1877
  %2178 = vmatprep.subr.mxu0 0.0
  %2179 = vmatpush1.msra.mxu0 %v1878
  %2180 = vmatprep.subr.mxu0 0.0
  %2181 = vmatpush1.msra.mxu0 %v1879
  %2182 = vmatprep.subr.mxu0 0.0
  %2183 = vmatpush1.msra.mxu0 %v1880
  %2184 = vmatprep.subr.mxu0 0.0
  %2185 = vmatpush1.msra.mxu0 %v1881
  %2186 = vmatprep.subr.mxu0 0.0
  %2187 = vmatpush1.msra.mxu0 %v1882
  %2188 = vmatprep.subr.mxu0 0.0
  %2189 = vmatpush1.msra.mxu0 %v1883
  %2190 = vmatprep.subr.mxu0 0.0
  %2191 = vmatpush1.msra.mxu0 %v1884
  %2192 = vmatprep.subr.mxu0 0.0
  %2193 = vmatpush1.msra.mxu0 %v1885
  %2194 = vmatprep.subr.mxu0 0.0
  %2195 = vmatpush1.msra.mxu0 %v1886
  %2196 = vmatprep.subr.mxu0 0.0
  %2197 = vmatpush1.msra.mxu0 0.0
  %2198 = vmatprep.subr.mxu0 0.0
  %2199 = vmatpush1.msra.mxu0 0.0
  %2200 = vmatprep.subr.mxu0 0.0
  %2201 = vmatpush1.msra.mxu0 0.0
  %2202 = vmatprep.subr.mxu0 0.0
  %2203 = vmatpush1.msra.mxu0 0.0
  %2204 = vmatprep.subr.mxu0 0.0
  %2205 = vmatpush1.msra.mxu0 0.0
  %2206 = vmatprep.subr.mxu0 0.0
  %2207 = vmatpush1.msra.mxu0 0.0
  %2208 = vmatprep.subr.mxu0 0.0
  %2209 = vmatpush1.msra.mxu0 0.0
  %2210 = vmatprep.subr.mxu0 0.0
  %2211 = vmatpush1.msra.mxu0 0.0
  %2212 = vmatprep.subr.mxu0 0.0
  %2213 = vmatpush1.msra.mxu0 0.0
  %2214 = vmatprep.subr.mxu0 0.0
  %2215 = vmatpush1.msra.mxu0 0.0
  %2216 = vmatprep.subr.mxu0 0.0
  %2217 = vmatpush1.msra.mxu0 0.0
  %2218 = vmatprep.subr.mxu0 0.0
  %2219 = vmatpush1.msra.mxu0 0.0
  %2220 = vmatprep.subr.mxu0 0.0
  %2221 = vmatpush1.msra.mxu0 0.0
  %2222 = vmatprep.subr.mxu0 0.0
  %2223 = vmatpush1.msra.mxu0 0.0
  %2224 = vmatprep.subr.mxu0 0.0
  %2225 = vmatpush1.msra.mxu0 0.0
  %2226 = vmatprep.subr.mxu0 0.0
  %2227 = vmatpush1.msra.mxu0 0.0
  %2228 = vmatprep.mubr.f32.mxu0 0.0
  %2229 = vmatmul.mubr.f32.gmra.mrb[0].mxu0 %v2162
  %v2230 = vpop.f32.mrb[0].mxu0
  %v2231 = vadd.f32 0.0, %v2230
  %v2232 = vpop.f32.mrb[0].mxu0
  %2233 = vdwg.mxu0
  %v2235 = vrot.slane %v2231, 2
  %v2237 = vadd.f32 %v1857, %v2235
  %v2238 = vtanh.pop %v2237
  %v2239 = vpack.c.bf16 %v2238, %v2238
  %v2241 = vshll.u32 %v2239, 16
  %v2243 = vrot.slane %v2241, 2
  %vm2245 = vsmask.f32 7942
  %vm2246 = vmand %vm2147, %vm2245
  %v2247 = vld [vmem:[#allocation3] sm:$0x2]
  %v2248 = vsel %vm2246, %v2243, %v2247
  %2249 = vst [vmem:[#allocation3] sm:$0x2] %v2248
  %v2251 = vrot.slane %v2239, 2
  %v2253 = vld [vmem:[#allocation3 + $0x8] sm:$0x2]
  %v2254 = vsel %vm2246, %v2251, %v2253
  %2255 = vst [vmem:[#allocation3 + $0x8] sm:$0x2] %v2254
  %v2257 = vrot.slane %v2238, 6
  %2259 = vmatprep.subr.mxu0 0.0
  %2260 = vmatpush1.msra.mxu0 %v1871
  %2261 = vmatprep.subr.mxu0 0.0
  %2262 = vmatpush1.msra.mxu0 %v1872
  %2263 = vmatprep.subr.mxu0 0.0
  %2264 = vmatpush1.msra.mxu0 %v1873
  %2265 = vmatprep.subr.mxu0 0.0
  %2266 = vmatpush1.msra.mxu0 %v1874
  %2267 = vmatprep.subr.mxu0 0.0
  %2268 = vmatpush1.msra.mxu0 %v1875
  %2269 = vmatprep.subr.mxu0 0.0
  %2270 = vmatpush1.msra.mxu0 %v1876
  %2271 = vmatprep.subr.mxu0 0.0
  %2272 = vmatpush1.msra.mxu0 %v1877
  %2273 = vmatprep.subr.mxu0 0.0
  %2274 = vmatpush1.msra.mxu0 %v1878
  %2275 = vmatprep.subr.mxu0 0.0
  %2276 = vmatpush1.msra.mxu0 %v1879
  %2277 = vmatprep.subr.mxu0 0.0
  %2278 = vmatpush1.msra.mxu0 %v1880
  %2279 = vmatprep.subr.mxu0 0.0
  %2280 = vmatpush1.msra.mxu0 %v1881
  %2281 = vmatprep.subr.mxu0 0.0
  %2282 = vmatpush1.msra.mxu0 %v1882
  %2283 = vmatprep.subr.mxu0 0.0
  %2284 = vmatpush1.msra.mxu0 %v1883
  %2285 = vmatprep.subr.mxu0 0.0
  %2286 = vmatpush1.msra.mxu0 %v1884
  %2287 = vmatprep.subr.mxu0 0.0
  %2288 = vmatpush1.msra.mxu0 %v1885
  %2289 = vmatprep.subr.mxu0 0.0
  %2290 = vmatpush1.msra.mxu0 %v1886
  %2291 = vmatprep.subr.mxu0 0.0
  %2292 = vmatpush1.msra.mxu0 0.0
  %2293 = vmatprep.subr.mxu0 0.0
  %2294 = vmatpush1.msra.mxu0 0.0
  %2295 = vmatprep.subr.mxu0 0.0
  %2296 = vmatpush1.msra.mxu0 0.0
  %2297 = vmatprep.subr.mxu0 0.0
  %2298 = vmatpush1.msra.mxu0 0.0
  %2299 = vmatprep.subr.mxu0 0.0
  %2300 = vmatpush1.msra.mxu0 0.0
  %2301 = vmatprep.subr.mxu0 0.0
  %2302 = vmatpush1.msra.mxu0 0.0
  %2303 = vmatprep.subr.mxu0 0.0
  %2304 = vmatpush1.msra.mxu0 0.0
  %2305 = vmatprep.subr.mxu0 0.0
  %2306 = vmatpush1.msra.mxu0 0.0
  %2307 = vmatprep.subr.mxu0 0.0
  %2308 = vmatpush1.msra.mxu0 0.0
  %2309 = vmatprep.subr.mxu0 0.0
  %2310 = vmatpush1.msra.mxu0 0.0
  %2311 = vmatprep.subr.mxu0 0.0
  %2312 = vmatpush1.msra.mxu0 0.0
  %2313 = vmatprep.subr.mxu0 0.0
  %2314 = vmatpush1.msra.mxu0 0.0
  %2315 = vmatprep.subr.mxu0 0.0
  %2316 = vmatpush1.msra.mxu0 0.0
  %2317 = vmatprep.subr.mxu0 0.0
  %2318 = vmatpush1.msra.mxu0 0.0
  %2319 = vmatprep.subr.mxu0 0.0
  %2320 = vmatpush1.msra.mxu0 0.0
  %2321 = vmatprep.subr.mxu0 0.0
  %2322 = vmatpush1.msra.mxu0 0.0
  %2323 = vmatprep.mubr.f32.mxu0 0.0
  %2324 = vmatmul.mubr.f32.gmra.mrb[0].mxu0 %v2257
  %v2325 = vpop.f32.mrb[0].mxu0
  %v2326 = vadd.f32 0.0, %v2325
  %v2327 = vpop.f32.mrb[0].mxu0
  %2328 = vdwg.mxu0
  %v2329 = vadd.f32 %v1860, %v2326
  %v2330 = vtanh.pop %v2329
  %v2331 = vpack.c.bf16 %v2330, %v2330
  %v2333 = vrot.slane %v2331, 6
  %vm2335 = vcmask 1042434
  %vm2336 = vsmask.f32 2304
  %vm2337 = vmand %vm2335, %vm2336
  %v2338 = vld [vmem:[#allocation3] sm:$0x4]
  %v2339 = vsel %vm2337, %v2333, %v2338
  %2340 = vst [vmem:[#allocation3] sm:$0x4] %v2339
  %v2342 = vshrl.u32 %v2331, 16
  %v2344 = vrot.slane %v2342, 6
  %v2346 = vld [vmem:[#allocation3 + $0x8] sm:$0x4]
  %v2347 = vsel %vm2337, %v2344, %v2346
  %2348 = vst [vmem:[#allocation3 + $0x8] sm:$0x4] %v2347
  %2349 = vmatprep.subr.mxu0 0.0
  %2350 = vmatpush1.msra.mxu0 %v1871
  %2351 = vmatprep.subr.mxu0 0.0
  %2352 = vmatpush1.msra.mxu0 %v1872
  %2353 = vmatprep.subr.mxu0 0.0
  %2354 = vmatpush1.msra.mxu0 %v1873
  %2355 = vmatprep.subr.mxu0 0.0
  %2356 = vmatpush1.msra.mxu0 %v1874
  %2357 = vmatprep.subr.mxu0 0.0
  %2358 = vmatpush1.msra.mxu0 %v1875
  %2359 = vmatprep.subr.mxu0 0.0
  %2360 = vmatpush1.msra.mxu0 %v1876
  %2361 = vmatprep.subr.mxu0 0.0
  %2362 = vmatpush1.msra.mxu0 %v1877
  %2363 = vmatprep.subr.mxu0 0.0
  %2364 = vmatpush1.msra.mxu0 %v1878
  %2365 = vmatprep.subr.mxu0 0.0
  %2366 = vmatpush1.msra.mxu0 %v1879
  %2367 = vmatprep.subr.mxu0 0.0
  %2368 = vmatpush1.msra.mxu0 %v1880
  %2369 = vmatprep.subr.mxu0 0.0
  %2370 = vmatpush1.msra.mxu0 %v1881
  %2371 = vmatprep.subr.mxu0 0.0
  %2372 = vmatpush1.msra.mxu0 %v1882
  %2373 = vmatprep.subr.mxu0 0.0
  %2374 = vmatpush1.msra.mxu0 %v1883
  %2375 = vmatprep.subr.mxu0 0.0
  %2376 = vmatpush1.msra.mxu0 %v1884
  %2377 = vmatprep.subr.mxu0 0.0
  %2378 = vmatpush1.msra.mxu0 %v1885
  %2379 = vmatprep.subr.mxu0 0.0
  %2380 = vmatpush1.msra.mxu0 %v1886
  %2381 = vmatprep.subr.mxu0 0.0
  %2382 = vmatpush1.msra.mxu0 0.0
  %2383 = vmatprep.subr.mxu0 0.0
  %2384 = vmatpush1.msra.mxu0 0.0
  %2385 = vmatprep.subr.mxu0 0.0
  %2386 = vmatpush1.msra.mxu0 0.0
  %2387 = vmatprep.subr.mxu0 0.0
  %2388 = vmatpush1.msra.mxu0 0.0
  %2389 = vmatprep.subr.mxu0 0.0
  %2390 = vmatpush1.msra.mxu0 0.0
  %2391 = vmatprep.subr.mxu0 0.0
  %2392 = vmatpush1.msra.mxu0 0.0
  %2393 = vmatprep.subr.mxu0 0.0
  %2394 = vmatpush1.msra.mxu0 0.0
  %2395 = vmatprep.subr.mxu0 0.0
  %2396 = vmatpush1.msra.mxu0 0.0
  %2397 = vmatprep.subr.mxu0 0.0
  %2398 = vmatpush1.msra.mxu0 0.0
  %2399 = vmatprep.subr.mxu0 0.0
  %2400 = vmatpush1.msra.mxu0 0.0
  %2401 = vmatprep.subr.mxu0 0.0
  %2402 = vmatpush1.msra.mxu0 0.0
  %2403 = vmatprep.subr.mxu0 0.0
  %2404 = vmatpush1.msra.mxu0 0.0
  %2405 = vmatprep.subr.mxu0 0.0
  %2406 = vmatpush1.msra.mxu0 0.0
  %2407 = vmatprep.subr.mxu0 0.0
  %2408 = vmatpush1.msra.mxu0 0.0
  %2409 = vmatprep.subr.mxu0 0.0
  %2410 = vmatpush1.msra.mxu0 0.0
  %2411 = vmatprep.subr.mxu0 0.0
  %2412 = vmatpush1.msra.mxu0 0.0
  %2413 = vmatprep.mubr.f32.mxu0 0.0
  %2414 = vmatmul.mubr.f32.gmra.mrb[0].mxu0 %v2330
  %v2415 = vpop.f32.mrb[0].mxu0
  %v2416 = vadd.f32 0.0, %v2415
  %v2417 = vpop.f32.mrb[0].mxu0
  %2418 = vdwg.mxu0
  %v2420 = vrot.slane %v2416, 6
  %v2422 = vadd.f32 %v1860, %v2420
  %v2423 = vtanh.pop %v2422
  %v2424 = vpack.c.bf16 %v2423, %v2423
  %v2426 = vshll.u32 %v2424, 16
  %v2428 = vrot.slane %v2426, 7
  %vm2430 = vsmask.f32 7946
  %vm2431 = vmand %vm2335, %vm2430
  %v2432 = vld [vmem:[#allocation3] sm:$0x4]
  %v2433 = vsel %vm2431, %v2428, %v2432
  %2434 = vst [vmem:[#allocation3] sm:$0x4] %v2433
  %v2436 = vrot.slane %v2424, 7
  %v2438 = vld [vmem:[#allocation3 + $0x8] sm:$0x4]
  %v2439 = vsel %vm2431, %v2436, %v2438
  %2440 = vst [vmem:[#allocation3 + $0x8] sm:$0x4] %v2439
  %v2442 = vrot.slane %v2423, 2
  %2444 = vmatprep.subr.mxu0 0.0
  %2445 = vmatpush1.msra.mxu0 %v1871
  %2446 = vmatprep.subr.mxu0 0.0
  %2447 = vmatpush1.msra.mxu0 %v1872
  %2448 = vmatprep.subr.mxu0 0.0
  %2449 = vmatpush1.msra.mxu0 %v1873
  %2450 = vmatprep.subr.mxu0 0.0
  %2451 = vmatpush1.msra.mxu0 %v1874
  %2452 = vmatprep.subr.mxu0 0.0
  %2453 = vmatpush1.msra.mxu0 %v1875
  %2454 = vmatprep.subr.mxu0 0.0
  %2455 = vmatpush1.msra.mxu0 %v1876
  %2456 = vmatprep.subr.mxu0 0.0
  %2457 = vmatpush1.msra.mxu0 %v1877
  %2458 = vmatprep.subr.mxu0 0.0
  %2459 = vmatpush1.msra.mxu0 %v1878
  %2460 = vmatprep.subr.mxu0 0.0
  %2461 = vmatpush1.msra.mxu0 %v1879
  %2462 = vmatprep.subr.mxu0 0.0
  %2463 = vmatpush1.msra.mxu0 %v1880
  %2464 = vmatprep.subr.mxu0 0.0
  %2465 = vmatpush1.msra.mxu0 %v1881
  %2466 = vmatprep.subr.mxu0 0.0
  %2467 = vmatpush1.msra.mxu0 %v1882
  %2468 = vmatprep.subr.mxu0 0.0
  %2469 = vmatpush1.msra.mxu0 %v1883
  %2470 = vmatprep.subr.mxu0 0.0
  %2471 = vmatpush1.msra.mxu0 %v1884
  %2472 = vmatprep.subr.mxu0 0.0
  %2473 = vmatpush1.msra.mxu0 %v1885
  %2474 = vmatprep.subr.mxu0 0.0
  %2475 = vmatpush1.msra.mxu0 %v1886
  %2476 = vmatprep.subr.mxu0 0.0
  %2477 = vmatpush1.msra.mxu0 0.0
  %2478 = vmatprep.subr.mxu0 0.0
  %2479 = vmatpush1.msra.mxu0 0.0
  %2480 = vmatprep.subr.mxu0 0.0
  %2481 = vmatpush1.msra.mxu0 0.0
  %2482 = vmatprep.subr.mxu0 0.0
  %2483 = vmatpush1.msra.mxu0 0.0
  %2484 = vmatprep.subr.mxu0 0.0
  %2485 = vmatpush1.msra.mxu0 0.0
  %2486 = vmatprep.subr.mxu0 0.0
  %2487 = vmatpush1.msra.mxu0 0.0
  %2488 = vmatprep.subr.mxu0 0.0
  %2489 = vmatpush1.msra.mxu0 0.0
  %2490 = vmatprep.subr.mxu0 0.0
  %2491 = vmatpush1.msra.mxu0 0.0
  %2492 = vmatprep.subr.mxu0 0.0
  %2493 = vmatpush1.msra.mxu0 0.0
  %2494 = vmatprep.subr.mxu0 0.0
  %2495 = vmatpush1.msra.mxu0 0.0
  %2496 = vmatprep.subr.mxu0 0.0
  %2497 = vmatpush1.msra.mxu0 0.0
  %2498 = vmatprep.subr.mxu0 0.0
  %2499 = vmatpush1.msra.mxu0 0.0
  %2500 = vmatprep.subr.mxu0 0.0
  %2501 = vmatpush1.msra.mxu0 0.0
  %2502 = vmatprep.subr.mxu0 0.0
  %2503 = vmatpush1.msra.mxu0 0.0
  %2504 = vmatprep.subr.mxu0 0.0
  %2505 = vmatpush1.msra.mxu0 0.0
  %2506 = vmatprep.subr.mxu0 0.0
  %2507 = vmatpush1.msra.mxu0 0.0
  %2508 = vmatprep.mubr.f32.mxu0 0.0
  %2509 = vmatmul.mubr.f32.gmra.mrb[0].mxu0 %v2442
  %v2510 = vpop.f32.mrb[0].mxu0
  %v2511 = vadd.f32 0.0, %v2510
  %v2512 = vpop.f32.mrb[0].mxu0
  %2513 = vdwg.mxu0
  %v2515 = vrot.slane %v2511, 4
  %v2517 = vadd.f32 %v1860, %v2515
  %v2518 = vtanh.pop %v2517
  %v2519 = vpack.c.bf16 %v2518, %v2518
  %v2521 = vrot.slane %v2519, 7
  %vm2523 = vcmask 1043459
  %vm2524 = vsmask.f32 3328
  %vm2525 = vmand %vm2523, %vm2524
  %v2526 = vld [vmem:[#allocation3] sm:$0x8]
  %v2527 = vsel %vm2525, %v2521, %v2526
  %2528 = vst [vmem:[#allocation3] sm:$0x8] %v2527
  %v2530 = vshrl.u32 %v2519, 16
  %v2532 = vrot.slane %v2530, 7
  %v2534 = vld [vmem:[#allocation3 + $0x8] sm:$0x8]
  %v2535 = vsel %vm2525, %v2532, %v2534
  %2536 = vst [vmem:[#allocation3 + $0x8] sm:$0x8] %v2535
  %v2538 = vrot.slane %v2518, 4
  %2540 = vmatprep.subr.mxu0 0.0
  %2541 = vmatpush1.msra.mxu0 %v1871
  %2542 = vmatprep.subr.mxu0 0.0
  %2543 = vmatpush1.msra.mxu0 %v1872
  %2544 = vmatprep.subr.mxu0 0.0
  %2545 = vmatpush1.msra.mxu0 %v1873
  %2546 = vmatprep.subr.mxu0 0.0
  %2547 = vmatpush1.msra.mxu0 %v1874
  %2548 = vmatprep.subr.mxu0 0.0
  %2549 = vmatpush1.msra.mxu0 %v1875
  %2550 = vmatprep.subr.mxu0 0.0
  %2551 = vmatpush1.msra.mxu0 %v1876
  %2552 = vmatprep.subr.mxu0 0.0
  %2553 = vmatpush1.msra.mxu0 %v1877
  %2554 = vmatprep.subr.mxu0 0.0
  %2555 = vmatpush1.msra.mxu0 %v1878
  %2556 = vmatprep.subr.mxu0 0.0
  %2557 = vmatpush1.msra.mxu0 %v1879
  %2558 = vmatprep.subr.mxu0 0.0
  %2559 = vmatpush1.msra.mxu0 %v1880
  %2560 = vmatprep.subr.mxu0 0.0
  %2561 = vmatpush1.msra.mxu0 %v1881
  %2562 = vmatprep.subr.mxu0 0.0
  %2563 = vmatpush1.msra.mxu0 %v1882
  %2564 = vmatprep.subr.mxu0 0.0
  %2565 = vmatpush1.msra.mxu0 %v1883
  %2566 = vmatprep.subr.mxu0 0.0
  %2567 = vmatpush1.msra.mxu0 %v1884
  %2568 = vmatprep.subr.mxu0 0.0
  %2569 = vmatpush1.msra.mxu0 %v1885
  %2570 = vmatprep.subr.mxu0 0.0
  %2571 = vmatpush1.msra.mxu0 %v1886
  %2572 = vmatprep.subr.mxu0 0.0
  %2573 = vmatpush1.msra.mxu0 0.0
  %2574 = vmatprep.subr.mxu0 0.0
  %2575 = vmatpush1.msra.mxu0 0.0
  %2576 = vmatprep.subr.mxu0 0.0
  %2577 = vmatpush1.msra.mxu0 0.0
  %2578 = vmatprep.subr.mxu0 0.0
  %2579 = vmatpush1.msra.mxu0 0.0
  %2580 = vmatprep.subr.mxu0 0.0
  %2581 = vmatpush1.msra.mxu0 0.0
  %2582 = vmatprep.subr.mxu0 0.0
  %2583 = vmatpush1.msra.mxu0 0.0
  %2584 = vmatprep.subr.mxu0 0.0
  %2585 = vmatpush1.msra.mxu0 0.0
  %2586 = vmatprep.subr.mxu0 0.0
  %2587 = vmatpush1.msra.mxu0 0.0
  %2588 = vmatprep.subr.mxu0 0.0
  %2589 = vmatpush1.msra.mxu0 0.0
  %2590 = vmatprep.subr.mxu0 0.0
  %2591 = vmatpush1.msra.mxu0 0.0
  %2592 = vmatprep.subr.mxu0 0.0
  %2593 = vmatpush1.msra.mxu0 0.0
  %2594 = vmatprep.subr.mxu0 0.0
  %2595 = vmatpush1.msra.mxu0 0.0
  %2596 = vmatprep.subr.mxu0 0.0
  %2597 = vmatpush1.msra.mxu0 0.0
  %2598 = vmatprep.subr.mxu0 0.0
  %2599 = vmatpush1.msra.mxu0 0.0
  %2600 = vmatprep.subr.mxu0 0.0
  %2601 = vmatpush1.msra.mxu0 0.0
  %2602 = vmatprep.subr.mxu0 0.0
  %2603 = vmatpush1.msra.mxu0 0.0
  %2604 = vmatprep.mubr.f32.mxu0 0.0
  %2605 = vmatmul.mubr.f32.gmra.mrb[0].mxu0 %v2538
  %v2606 = vpop.f32.mrb[0].mxu0
  %v2607 = vadd.f32 0.0, %v2606
  %v2608 = vpop.f32.mrb[0].mxu0
  %2609 = vdwg.mxu0
  %v2611 = vrot.slane %v2607, 2
  %v2613 = vadd.f32 %v1860, %v2611
  %v2614 = vtanh.pop %v2613
  %v2615 = vpack.c.bf16 %v2614, %v2614
  %v2617 = vshll.u32 %v2615, 16
  %vm2620 = vsmask.f32 7950
  %vm2621 = vmand %vm2523, %vm2620
  %v2622 = vld [vmem:[#allocation3] sm:$0x8]
  %v2623 = vsel %vm2621, %v2617, %v2622
  %2624 = vst [vmem:[#allocation3] sm:$0x8] %v2623
  %v2625 = vld [vmem:[#allocation3 + $0x8] sm:$0x8]
  %v2626 = vsel %vm2621, %v2615, %v2625
  %2627 = vst [vmem:[#allocation3 + $0x8] sm:$0x8] %v2626
  %v2629 = vrot.slane %v2614, 6
  %2631 = vmatprep.subr.mxu0 0.0
  %2632 = vmatpush1.msra.mxu0 %v1871
  %2633 = vmatprep.subr.mxu0 0.0
  %2634 = vmatpush1.msra.mxu0 %v1872
  %2635 = vmatprep.subr.mxu0 0.0
  %2636 = vmatpush1.msra.mxu0 %v1873
  %2637 = vmatprep.subr.mxu0 0.0
  %2638 = vmatpush1.msra.mxu0 %v1874
  %2639 = vmatprep.subr.mxu0 0.0
  %2640 = vmatpush1.msra.mxu0 %v1875
  %2641 = vmatprep.subr.mxu0 0.0
  %2642 = vmatpush1.msra.mxu0 %v1876
  %2643 = vmatprep.subr.mxu0 0.0
  %2644 = vmatpush1.msra.mxu0 %v1877
  %2645 = vmatprep.subr.mxu0 0.0
  %2646 = vmatpush1.msra.mxu0 %v1878
  %2647 = vmatprep.subr.mxu0 0.0
  %2648 = vmatpush1.msra.mxu0 %v1879
  %2649 = vmatprep.subr.mxu0 0.0
  %2650 = vmatpush1.msra.mxu0 %v1880
  %2651 = vmatprep.subr.mxu0 0.0
  %2652 = vmatpush1.msra.mxu0 %v1881
  %2653 = vmatprep.subr.mxu0 0.0
  %2654 = vmatpush1.msra.mxu0 %v1882
  %2655 = vmatprep.subr.mxu0 0.0
  %2656 = vmatpush1.msra.mxu0 %v1883
  %2657 = vmatprep.subr.mxu0 0.0
  %2658 = vmatpush1.msra.mxu0 %v1884
  %2659 = vmatprep.subr.mxu0 0.0
  %2660 = vmatpush1.msra.mxu0 %v1885
  %2661 = vmatprep.subr.mxu0 0.0
  %2662 = vmatpush1.msra.mxu0 %v1886
  %2663 = vmatprep.subr.mxu0 0.0
  %2664 = vmatpush1.msra.mxu0 0.0
  %2665 = vmatprep.subr.mxu0 0.0
  %2666 = vmatpush1.msra.mxu0 0.0
  %2667 = vmatprep.subr.mxu0 0.0
  %2668 = vmatpush1.msra.mxu0 0.0
  %2669 = vmatprep.subr.mxu0 0.0
  %2670 = vmatpush1.msra.mxu0 0.0
  %2671 = vmatprep.subr.mxu0 0.0
  %2672 = vmatpush1.msra.mxu0 0.0
  %2673 = vmatprep.subr.mxu0 0.0
  %2674 = vmatpush1.msra.mxu0 0.0
  %2675 = vmatprep.subr.mxu0 0.0
  %2676 = vmatpush1.msra.mxu0 0.0
  %2677 = vmatprep.subr.mxu0 0.0
  %2678 = vmatpush1.msra.mxu0 0.0
  %2679 = vmatprep.subr.mxu0 0.0
  %2680 = vmatpush1.msra.mxu0 0.0
  %2681 = vmatprep.subr.mxu0 0.0
  %2682 = vmatpush1.msra.mxu0 0.0
  %2683 = vmatprep.subr.mxu0 0.0
  %2684 = vmatpush1.msra.mxu0 0.0
  %2685 = vmatprep.subr.mxu0 0.0
  %2686 = vmatpush1.msra.mxu0 0.0
  %2687 = vmatprep.subr.mxu0 0.0
  %2688 = vmatpush1.msra.mxu0 0.0
  %2689 = vmatprep.subr.mxu0 0.0
  %2690 = vmatpush1.msra.mxu0 0.0
  %2691 = vmatprep.subr.mxu0 0.0
  %2692 = vmatpush1.msra.mxu0 0.0
  %2693 = vmatprep.subr.mxu0 0.0
  %2694 = vmatpush1.msra.mxu0 0.0
  %2695 = vmatprep.mubr.f32.mxu0 0.0
  %2696 = vmatmul.mubr.f32.gmra.mrb[0].mxu0 %v2629
  %v2697 = vpop.f32.mrb[0].mxu0
  %v2698 = vadd.f32 0.0, %v2697
  %v2699 = vpop.f32.mrb[0].mxu0
  %2700 = vdwg.mxu0
  %v2701 = vadd.f32 %v1865, %v2698
  %v2702 = vtanh.pop %v2701
  %v2703 = vpack.c.bf16 %v2702, %v2702
  %v2705 = vrot.slane %v2703, 4
  %vm2707 = vcmask 1044484
  %vm2708 = vsmask.f32 4352
  %vm2709 = vmand %vm2707, %vm2708
  %v2710 = vld [vmem:[#allocation3] sm:$0x10]
  %v2711 = vsel %vm2709, %v2705, %v2710
  %2712 = vst [vmem:[#allocation3] sm:$0x10] %v2711
  %v2714 = vshrl.u32 %v2703, 16
  %v2716 = vrot.slane %v2714, 4
  %v2718 = vld [vmem:[#allocation3 + $0x8] sm:$0x10]
  %v2719 = vsel %vm2709, %v2716, %v2718
  %2720 = vst [vmem:[#allocation3 + $0x8] sm:$0x10] %v2719
  %2721 = vmatprep.subr.mxu0 0.0
  %2722 = vmatpush1.msra.mxu0 %v1871
  %2723 = vmatprep.subr.mxu0 0.0
  %2724 = vmatpush1.msra.mxu0 %v1872
  %2725 = vmatprep.subr.mxu0 0.0
  %2726 = vmatpush1.msra.mxu0 %v1873
  %2727 = vmatprep.subr.mxu0 0.0
  %2728 = vmatpush1.msra.mxu0 %v1874
  %2729 = vmatprep.subr.mxu0 0.0
  %2730 = vmatpush1.msra.mxu0 %v1875
  %2731 = vmatprep.subr.mxu0 0.0
  %2732 = vmatpush1.msra.mxu0 %v1876
  %2733 = vmatprep.subr.mxu0 0.0
  %2734 = vmatpush1.msra.mxu0 %v1877
  %2735 = vmatprep.subr.mxu0 0.0
  %2736 = vmatpush1.msra.mxu0 %v1878
  %2737 = vmatprep.subr.mxu0 0.0
  %2738 = vmatpush1.msra.mxu0 %v1879
  %2739 = vmatprep.subr.mxu0 0.0
  %2740 = vmatpush1.msra.mxu0 %v1880
  %2741 = vmatprep.subr.mxu0 0.0
  %2742 = vmatpush1.msra.mxu0 %v1881
  %2743 = vmatprep.subr.mxu0 0.0
  %2744 = vmatpush1.msra.mxu0 %v1882
  %2745 = vmatprep.subr.mxu0 0.0
  %2746 = vmatpush1.msra.mxu0 %v1883
  %2747 = vmatprep.subr.mxu0 0.0
  %2748 = vmatpush1.msra.mxu0 %v1884
  %2749 = vmatprep.subr.mxu0 0.0
  %2750 = vmatpush1.msra.mxu0 %v1885
  %2751 = vmatprep.subr.mxu0 0.0
  %2752 = vmatpush1.msra.mxu0 %v1886
  %2753 = vmatprep.subr.mxu0 0.0
  %2754 = vmatpush1.msra.mxu0 0.0
  %2755 = vmatprep.subr.mxu0 0.0
  %2756 = vmatpush1.msra.mxu0 0.0
  %2757 = vmatprep.subr.mxu0 0.0
  %2758 = vmatpush1.msra.mxu0 0.0
  %2759 = vmatprep.subr.mxu0 0.0
  %2760 = vmatpush1.msra.mxu0 0.0
  %2761 = vmatprep.subr.mxu0 0.0
  %2762 = vmatpush1.msra.mxu0 0.0
  %2763 = vmatprep.subr.mxu0 0.0
  %2764 = vmatpush1.msra.mxu0 0.0
  %2765 = vmatprep.subr.mxu0 0.0
  %2766 = vmatpush1.msra.mxu0 0.0
  %2767 = vmatprep.subr.mxu0 0.0
  %2768 = vmatpush1.msra.mxu0 0.0
  %2769 = vmatprep.subr.mxu0 0.0
  %2770 = vmatpush1.msra.mxu0 0.0
  %2771 = vmatprep.subr.mxu0 0.0
  %2772 = vmatpush1.msra.mxu0 0.0
  %2773 = vmatprep.subr.mxu0 0.0
  %2774 = vmatpush1.msra.mxu0 0.0
  %2775 = vmatprep.subr.mxu0 0.0
  %2776 = vmatpush1.msra.mxu0 0.0
  %2777 = vmatprep.subr.mxu0 0.0
  %2778 = vmatpush1.msra.mxu0 0.0
  %2779 = vmatprep.subr.mxu0 0.0
  %2780 = vmatpush1.msra.mxu0 0.0
  %2781 = vmatprep.subr.mxu0 0.0
  %2782 = vmatpush1.msra.mxu0 0.0
  %2783 = vmatprep.subr.mxu0 0.0
  %2784 = vmatpush1.msra.mxu0 0.0
  %2785 = vmatprep.mubr.f32.mxu0 0.0
  %2786 = vmatmul.mubr.f32.gmra.mrb[0].mxu0 %v2702
  %v2787 = vpop.f32.mrb[0].mxu0
  %v2788 = vadd.f32 0.0, %v2787
  %v2789 = vpop.f32.mrb[0].mxu0
  %2790 = vdwg.mxu0
  %v2792 = vrot.slane %v2788, 6
  %v2794 = vadd.f32 %v1865, %v2792
  %v2795 = vtanh.pop %v2794
  %v2796 = vpack.c.bf16 %v2795, %v2795
  %v2798 = vshll.u32 %v2796, 16
  %v2800 = vrot.slane %v2798, 5
  %vm2802 = vsmask.f32 7954
  %vm2803 = vmand %vm2707, %vm2802
  %v2804 = vld [vmem:[#allocation3] sm:$0x10]
  %v2805 = vsel %vm2803, %v2800, %v2804
  %2806 = vst [vmem:[#allocation3] sm:$0x10] %v2805
  %v2808 = vrot.slane %v2796, 5
  %v2810 = vld [vmem:[#allocation3 + $0x8] sm:$0x10]
  %v2811 = vsel %vm2803, %v2808, %v2810
  %2812 = vst [vmem:[#allocation3 + $0x8] sm:$0x10] %v2811
  %v2814 = vrot.slane %v2795, 2
  %2816 = vmatprep.subr.mxu0 0.0
  %2817 = vmatpush1.msra.mxu0 %v1871
  %2818 = vmatprep.subr.mxu0 0.0
  %2819 = vmatpush1.msra.mxu0 %v1872
  %2820 = vmatprep.subr.mxu0 0.0
  %2821 = vmatpush1.msra.mxu0 %v1873
  %2822 = vmatprep.subr.mxu0 0.0
  %2823 = vmatpush1.msra.mxu0 %v1874
  %2824 = vmatprep.subr.mxu0 0.0
  %2825 = vmatpush1.msra.mxu0 %v1875
  %2826 = vmatprep.subr.mxu0 0.0
  %2827 = vmatpush1.msra.mxu0 %v1876
  %2828 = vmatprep.subr.mxu0 0.0
  %2829 = vmatpush1.msra.mxu0 %v1877
  %2830 = vmatprep.subr.mxu0 0.0
  %2831 = vmatpush1.msra.mxu0 %v1878
  %2832 = vmatprep.subr.mxu0 0.0
  %2833 = vmatpush1.msra.mxu0 %v1879
  %2834 = vmatprep.subr.mxu0 0.0
  %2835 = vmatpush1.msra.mxu0 %v1880
  %2836 = vmatprep.subr.mxu0 0.0
  %2837 = vmatpush1.msra.mxu0 %v1881
  %2838 = vmatprep.subr.mxu0 0.0
  %2839 = vmatpush1.msra.mxu0 %v1882
  %2840 = vmatprep.subr.mxu0 0.0
  %2841 = vmatpush1.msra.mxu0 %v1883
  %2842 = vmatprep.subr.mxu0 0.0
  %2843 = vmatpush1.msra.mxu0 %v1884
  %2844 = vmatprep.subr.mxu0 0.0
  %2845 = vmatpush1.msra.mxu0 %v1885
  %2846 = vmatprep.subr.mxu0 0.0
  %2847 = vmatpush1.msra.mxu0 %v1886
  %2848 = vmatprep.subr.mxu0 0.0
  %2849 = vmatpush1.msra.mxu0 0.0
  %2850 = vmatprep.subr.mxu0 0.0
  %2851 = vmatpush1.msra.mxu0 0.0
  %2852 = vmatprep.subr.mxu0 0.0
  %2853 = vmatpush1.msra.mxu0 0.0
  %2854 = vmatprep.subr.mxu0 0.0
  %2855 = vmatpush1.msra.mxu0 0.0
  %2856 = vmatprep.subr.mxu0 0.0
  %2857 = vmatpush1.msra.mxu0 0.0
  %2858 = vmatprep.subr.mxu0 0.0
  %2859 = vmatpush1.msra.mxu0 0.0
  %2860 = vmatprep.subr.mxu0 0.0
  %2861 = vmatpush1.msra.mxu0 0.0
  %2862 = vmatprep.subr.mxu0 0.0
  %2863 = vmatpush1.msra.mxu0 0.0
  %2864 = vmatprep.subr.mxu0 0.0
  %2865 = vmatpush1.msra.mxu0 0.0
  %2866 = vmatprep.subr.mxu0 0.0
  %2867 = vmatpush1.msra.mxu0 0.0
  %2868 = vmatprep.subr.mxu0 0.0
  %2869 = vmatpush1.msra.mxu0 0.0
  %2870 = vmatprep.subr.mxu0 0.0
  %2871 = vmatpush1.msra.mxu0 0.0
  %2872 = vmatprep.subr.mxu0 0.0
  %2873 = vmatpush1.msra.mxu0 0.0
  %2874 = vmatprep.subr.mxu0 0.0
  %2875 = vmatpush1.msra.mxu0 0.0
  %2876 = vmatprep.subr.mxu0 0.0
  %2877 = vmatpush1.msra.mxu0 0.0
  %2878 = vmatprep.subr.mxu0 0.0
  %2879 = vmatpush1.msra.mxu0 0.0
  %2880 = vmatprep.mubr.f32.mxu0 0.0
  %2881 = vmatmul.mubr.f32.gmra.mrb[0].mxu0 %v2814
  %v2882 = vpop.f32.mrb[0].mxu0
  %v2883 = vadd.f32 0.0, %v2882
  %v2884 = vpop.f32.mrb[0].mxu0
  %2885 = vdwg.mxu0
  %v2887 = vrot.slane %v2883, 4
  %v2889 = vadd.f32 %v1865, %v2887
  %v2890 = vtanh.pop %v2889
  %v2891 = vpack.c.bf16 %v2890, %v2890
  %v2893 = vrot.slane %v2891, 5
  %vm2895 = vcmask 1045509
  %vm2896 = vsmask.f32 5376
  %vm2897 = vmand %vm2895, %vm2896
  %v2898 = vld [vmem:[#allocation3] sm:$0x20]
  %v2899 = vsel %vm2897, %v2893, %v2898
  %2900 = vst [vmem:[#allocation3] sm:$0x20] %v2899
  %v2902 = vshrl.u32 %v2891, 16
  %v2904 = vrot.slane %v2902, 5
  %v2906 = vld [vmem:[#allocation3 + $0x8] sm:$0x20]
  %v2907 = vsel %vm2897, %v2904, %v2906
  %2908 = vst [vmem:[#allocation3 + $0x8] sm:$0x20] %v2907
  %v2910 = vrot.slane %v2890, 4
  %2912 = vmatprep.subr.mxu0 0.0
  %2913 = vmatpush1.msra.mxu0 %v1871
  %2914 = vmatprep.subr.mxu0 0.0
  %2915 = vmatpush1.msra.mxu0 %v1872
  %2916 = vmatprep.subr.mxu0 0.0
  %2917 = vmatpush1.msra.mxu0 %v1873
  %2918 = vmatprep.subr.mxu0 0.0
  %2919 = vmatpush1.msra.mxu0 %v1874
  %2920 = vmatprep.subr.mxu0 0.0
  %2921 = vmatpush1.msra.mxu0 %v1875
  %2922 = vmatprep.subr.mxu0 0.0
  %2923 = vmatpush1.msra.mxu0 %v1876
  %2924 = vmatprep.subr.mxu0 0.0
  %2925 = vmatpush1.msra.mxu0 %v1877
  %2926 = vmatprep.subr.mxu0 0.0
  %2927 = vmatpush1.msra.mxu0 %v1878
  %2928 = vmatprep.subr.mxu0 0.0
  %2929 = vmatpush1.msra.mxu0 %v1879
  %2930 = vmatprep.subr.mxu0 0.0
  %2931 = vmatpush1.msra.mxu0 %v1880
  %2932 = vmatprep.subr.mxu0 0.0
  %2933 = vmatpush1.msra.mxu0 %v1881
  %2934 = vmatprep.subr.mxu0 0.0
  %2935 = vmatpush1.msra.mxu0 %v1882
  %2936 = vmatprep.subr.mxu0 0.0
  %2937 = vmatpush1.msra.mxu0 %v1883
  %2938 = vmatprep.subr.mxu0 0.0
  %2939 = vmatpush1.msra.mxu0 %v1884
  %2940 = vmatprep.subr.mxu0 0.0
  %2941 = vmatpush1.msra.mxu0 %v1885
  %2942 = vmatprep.subr.mxu0 0.0
  %2943 = vmatpush1.msra.mxu0 %v1886
  %2944 = vmatprep.subr.mxu0 0.0
  %2945 = vmatpush1.msra.mxu0 0.0
  %2946 = vmatprep.subr.mxu0 0.0
  %2947 = vmatpush1.msra.mxu0 0.0
  %2948 = vmatprep.subr.mxu0 0.0
  %2949 = vmatpush1.msra.mxu0 0.0
  %2950 = vmatprep.subr.mxu0 0.0
  %2951 = vmatpush1.msra.mxu0 0.0
  %2952 = vmatprep.subr.mxu0 0.0
  %2953 = vmatpush1.msra.mxu0 0.0
  %2954 = vmatprep.subr.mxu0 0.0
  %2955 = vmatpush1.msra.mxu0 0.0
  %2956 = vmatprep.subr.mxu0 0.0
  %2957 = vmatpush1.msra.mxu0 0.0
  %2958 = vmatprep.subr.mxu0 0.0
  %2959 = vmatpush1.msra.mxu0 0.0
  %2960 = vmatprep.subr.mxu0 0.0
  %2961 = vmatpush1.msra.mxu0 0.0
  %2962 = vmatprep.subr.mxu0 0.0
  %2963 = vmatpush1.msra.mxu0 0.0
  %2964 = vmatprep.subr.mxu0 0.0
  %2965 = vmatpush1.msra.mxu0 0.0
  %2966 = vmatprep.subr.mxu0 0.0
  %2967 = vmatpush1.msra.mxu0 0.0
  %2968 = vmatprep.subr.mxu0 0.0
  %2969 = vmatpush1.msra.mxu0 0.0
  %2970 = vmatprep.subr.mxu0 0.0
  %2971 = vmatpush1.msra.mxu0 0.0
  %2972 = vmatprep.subr.mxu0 0.0
  %2973 = vmatpush1.msra.mxu0 0.0
  %2974 = vmatprep.subr.mxu0 0.0
  %2975 = vmatpush1.msra.mxu0 0.0
  %2976 = vmatprep.mubr.f32.mxu0 0.0
  %2977 = vmatmul.mubr.f32.gmra.mrb[0].mxu0 %v2910
  %v2978 = vpop.f32.mrb[0].mxu0
  %v2979 = vadd.f32 0.0, %v2978
  %v2980 = vpop.f32.mrb[0].mxu0
  %2981 = vdwg.mxu0
  %v2983 = vrot.slane %v2979, 2
  %v2985 = vadd.f32 %v1865, %v2983
  %v2986 = vtanh.pop %v2985
  %v2987 = vpack.c.bf16 %v2986, %v2986
  %v2989 = vshll.u32 %v2987, 16
  %v2991 = vrot.slane %v2989, 6
  %vm2993 = vsmask.f32 7958
  %vm2994 = vmand %vm2895, %vm2993
  %v2995 = vld [vmem:[#allocation3] sm:$0x20]
  %v2996 = vsel %vm2994, %v2991, %v2995
  %2997 = vst [vmem:[#allocation3] sm:$0x20] %v2996
  %v2999 = vrot.slane %v2987, 6
  %v3001 = vld [vmem:[#allocation3 + $0x8] sm:$0x20]
  %v3002 = vsel %vm2994, %v2999, %v3001
  %3003 = vst [vmem:[#allocation3 + $0x8] sm:$0x20] %v3002
  %v3005 = vrot.slane %v2986, 6
  %3007 = vmatprep.subr.mxu0 0.0
  %3008 = vmatpush1.msra.mxu0 %v1871
  %3009 = vmatprep.subr.mxu0 0.0
  %3010 = vmatpush1.msra.mxu0 %v1872
  %3011 = vmatprep.subr.mxu0 0.0
  %3012 = vmatpush1.msra.mxu0 %v1873
  %3013 = vmatprep.subr.mxu0 0.0
  %3014 = vmatpush1.msra.mxu0 %v1874
  %3015 = vmatprep.subr.mxu0 0.0
  %3016 = vmatpush1.msra.mxu0 %v1875
  %3017 = vmatprep.subr.mxu0 0.0
  %3018 = vmatpush1.msra.mxu0 %v1876
  %3019 = vmatprep.subr.mxu0 0.0
  %3020 = vmatpush1.msra.mxu0 %v1877
  %3021 = vmatprep.subr.mxu0 0.0
  %3022 = vmatpush1.msra.mxu0 %v1878
  %3023 = vmatprep.subr.mxu0 0.0
  %3024 = vmatpush1.msra.mxu0 %v1879
  %3025 = vmatprep.subr.mxu0 0.0
  %3026 = vmatpush1.msra.mxu0 %v1880
  %3027 = vmatprep.subr.mxu0 0.0
  %3028 = vmatpush1.msra.mxu0 %v1881
  %3029 = vmatprep.subr.mxu0 0.0
  %3030 = vmatpush1.msra.mxu0 %v1882
  %3031 = vmatprep.subr.mxu0 0.0
  %3032 = vmatpush1.msra.mxu0 %v1883
  %3033 = vmatprep.subr.mxu0 0.0
  %3034 = vmatpush1.msra.mxu0 %v1884
  %3035 = vmatprep.subr.mxu0 0.0
  %3036 = vmatpush1.msra.mxu0 %v1885
  %3037 = vmatprep.subr.mxu0 0.0
  %3038 = vmatpush1.msra.mxu0 %v1886
  %3039 = vmatprep.subr.mxu0 0.0
  %3040 = vmatpush1.msra.mxu0 0.0
  %3041 = vmatprep.subr.mxu0 0.0
  %3042 = vmatpush1.msra.mxu0 0.0
  %3043 = vmatprep.subr.mxu0 0.0
  %3044 = vmatpush1.msra.mxu0 0.0
  %3045 = vmatprep.subr.mxu0 0.0
  %3046 = vmatpush1.msra.mxu0 0.0
  %3047 = vmatprep.subr.mxu0 0.0
  %3048 = vmatpush1.msra.mxu0 0.0
  %3049 = vmatprep.subr.mxu0 0.0
  %3050 = vmatpush1.msra.mxu0 0.0
  %3051 = vmatprep.subr.mxu0 0.0
  %3052 = vmatpush1.msra.mxu0 0.0
  %3053 = vmatprep.subr.mxu0 0.0
  %3054 = vmatpush1.msra.mxu0 0.0
  %3055 = vmatprep.subr.mxu0 0.0
  %3056 = vmatpush1.msra.mxu0 0.0
  %3057 = vmatprep.subr.mxu0 0.0
  %3058 = vmatpush1.msra.mxu0 0.0
  %3059 = vmatprep.subr.mxu0 0.0
  %3060 = vmatpush1.msra.mxu0 0.0
  %3061 = vmatprep.subr.mxu0 0.0
  %3062 = vmatpush1.msra.mxu0 0.0
  %3063 = vmatprep.subr.mxu0 0.0
  %3064 = vmatpush1.msra.mxu0 0.0
  %3065 = vmatprep.subr.mxu0 0.0
  %3066 = vmatpush1.msra.mxu0 0.0
  %3067 = vmatprep.subr.mxu0 0.0
  %3068 = vmatpush1.msra.mxu0 0.0
  %3069 = vmatprep.subr.mxu0 0.0
  %3070 = vmatpush1.msra.mxu0 0.0
  %3071 = vmatprep.mubr.f32.mxu0 0.0
  %3072 = vmatmul.mubr.f32.gmra.mrb[0].mxu0 %v3005
  %v3073 = vpop.f32.mrb[0].mxu0
  %v3074 = vadd.f32 0.0, %v3073
  %v3075 = vpop.f32.mrb[0].mxu0
  %3076 = vdwg.mxu0
  %v3077 = vadd.f32 %v1868, %v3074
  %v3078 = vtanh.pop %v3077
  %v3079 = vpack.c.bf16 %v3078, %v3078
  %v3081 = vrot.slane %v3079, 2
  %vm3083 = vcmask 1046534
  %vm3084 = vsmask.f32 6400
  %vm3085 = vmand %vm3083, %vm3084
  %v3086 = vld [vmem:[#allocation3] sm:$0x40]
  %v3087 = vsel %vm3085, %v3081, %v3086
  %3088 = vst [vmem:[#allocation3] sm:$0x40] %v3087
  %v3090 = vshrl.u32 %v3079, 16
  %v3092 = vrot.slane %v3090, 2
  %v3094 = vld [vmem:[#allocation3 + $0x8] sm:$0x40]
  %v3095 = vsel %vm3085, %v3092, %v3094
  %3096 = vst [vmem:[#allocation3 + $0x8] sm:$0x40] %v3095
  %3097 = vmatprep.subr.mxu0 0.0
  %3098 = vmatpush1.msra.mxu0 %v1871
  %3099 = vmatprep.subr.mxu0 0.0
  %3100 = vmatpush1.msra.mxu0 %v1872
  %3101 = vmatprep.subr.mxu0 0.0
  %3102 = vmatpush1.msra.mxu0 %v1873
  %3103 = vmatprep.subr.mxu0 0.0
  %3104 = vmatpush1.msra.mxu0 %v1874
  %3105 = vmatprep.subr.mxu0 0.0
  %3106 = vmatpush1.msra.mxu0 %v1875
  %3107 = vmatprep.subr.mxu0 0.0
  %3108 = vmatpush1.msra.mxu0 %v1876
  %3109 = vmatprep.subr.mxu0 0.0
  %3110 = vmatpush1.msra.mxu0 %v1877
  %3111 = vmatprep.subr.mxu0 0.0
  %3112 = vmatpush1.msra.mxu0 %v1878
  %3113 = vmatprep.subr.mxu0 0.0
  %3114 = vmatpush1.msra.mxu0 %v1879
  %3115 = vmatprep.subr.mxu0 0.0
  %3116 = vmatpush1.msra.mxu0 %v1880
  %3117 = vmatprep.subr.mxu0 0.0
  %3118 = vmatpush1.msra.mxu0 %v1881
  %3119 = vmatprep.subr.mxu0 0.0
  %3120 = vmatpush1.msra.mxu0 %v1882
  %3121 = vmatprep.subr.mxu0 0.0
  %3122 = vmatpush1.msra.mxu0 %v1883
  %3123 = vmatprep.subr.mxu0 0.0
  %3124 = vmatpush1.msra.mxu0 %v1884
  %3125 = vmatprep.subr.mxu0 0.0
  %3126 = vmatpush1.msra.mxu0 %v1885
  %3127 = vmatprep.subr.mxu0 0.0
  %3128 = vmatpush1.msra.mxu0 %v1886
  %3129 = vmatprep.subr.mxu0 0.0
  %3130 = vmatpush1.msra.mxu0 0.0
  %3131 = vmatprep.subr.mxu0 0.0
  %3132 = vmatpush1.msra.mxu0 0.0
  %3133 = vmatprep.subr.mxu0 0.0
  %3134 = vmatpush1.msra.mxu0 0.0
  %3135 = vmatprep.subr.mxu0 0.0
  %3136 = vmatpush1.msra.mxu0 0.0
  %3137 = vmatprep.subr.mxu0 0.0
  %3138 = vmatpush1.msra.mxu0 0.0
  %3139 = vmatprep.subr.mxu0 0.0
  %3140 = vmatpush1.msra.mxu0 0.0
  %3141 = vmatprep.subr.mxu0 0.0
  %3142 = vmatpush1.msra.mxu0 0.0
  %3143 = vmatprep.subr.mxu0 0.0
  %3144 = vmatpush1.msra.mxu0 0.0
  %3145 = vmatprep.subr.mxu0 0.0
  %3146 = vmatpush1.msra.mxu0 0.0
  %3147 = vmatprep.subr.mxu0 0.0
  %3148 = vmatpush1.msra.mxu0 0.0
  %3149 = vmatprep.subr.mxu0 0.0
  %3150 = vmatpush1.msra.mxu0 0.0
  %3151 = vmatprep.subr.mxu0 0.0
  %3152 = vmatpush1.msra.mxu0 0.0
  %3153 = vmatprep.subr.mxu0 0.0
  %3154 = vmatpush1.msra.mxu0 0.0
  %3155 = vmatprep.subr.mxu0 0.0
  %3156 = vmatpush1.msra.mxu0 0.0
  %3157 = vmatprep.subr.mxu0 0.0
  %3158 = vmatpush1.msra.mxu0 0.0
  %3159 = vmatprep.subr.mxu0 0.0
  %3160 = vmatpush1.msra.mxu0 0.0
  %3161 = vmatprep.mubr.f32.mxu0 0.0
  %3162 = vmatmul.mubr.f32.gmra.mrb[0].mxu0 %v3078
  %v3163 = vpop.f32.mrb[0].mxu0
  %v3164 = vadd.f32 0.0, %v3163
  %v3165 = vpop.f32.mrb[0].mxu0
  %3166 = vdwg.mxu0
  %v3168 = vrot.slane %v3164, 6
  %v3170 = vadd.f32 %v1868, %v3168
  %v3171 = vtanh.pop %v3170
  %v3172 = vpack.c.bf16 %v3171, %v3171
  %v3174 = vshll.u32 %v3172, 16
  %v3176 = vrot.slane %v3174, 3
  %vm3178 = vsmask.f32 7962
  %vm3179 = vmand %vm3083, %vm3178
  %v3180 = vld [vmem:[#allocation3] sm:$0x40]
  %v3181 = vsel %vm3179, %v3176, %v3180
  %3182 = vst [vmem:[#allocation3] sm:$0x40] %v3181
  %v3184 = vrot.slane %v3172, 3
  %v3186 = vld [vmem:[#allocation3 + $0x8] sm:$0x40]
  %v3187 = vsel %vm3179, %v3184, %v3186
  %3188 = vst [vmem:[#allocation3 + $0x8] sm:$0x40] %v3187
  %v3190 = vrot.slane %v3171, 2
  %3192 = vmatprep.subr.mxu0 0.0
  %3193 = vmatpush1.msra.mxu0 %v1871
  %3194 = vmatprep.subr.mxu0 0.0
  %3195 = vmatpush1.msra.mxu0 %v1872
  %3196 = vmatprep.subr.mxu0 0.0
  %3197 = vmatpush1.msra.mxu0 %v1873
  %3198 = vmatprep.subr.mxu0 0.0
  %3199 = vmatpush1.msra.mxu0 %v1874
  %3200 = vmatprep.subr.mxu0 0.0
  %3201 = vmatpush1.msra.mxu0 %v1875
  %3202 = vmatprep.subr.mxu0 0.0
  %3203 = vmatpush1.msra.mxu0 %v1876
  %3204 = vmatprep.subr.mxu0 0.0
  %3205 = vmatpush1.msra.mxu0 %v1877
  %3206 = vmatprep.subr.mxu0 0.0
  %3207 = vmatpush1.msra.mxu0 %v1878
  %3208 = vmatprep.subr.mxu0 0.0
  %3209 = vmatpush1.msra.mxu0 %v1879
  %3210 = vmatprep.subr.mxu0 0.0
  %3211 = vmatpush1.msra.mxu0 %v1880
  %3212 = vmatprep.subr.mxu0 0.0
  %3213 = vmatpush1.msra.mxu0 %v1881
  %3214 = vmatprep.subr.mxu0 0.0
  %3215 = vmatpush1.msra.mxu0 %v1882
  %3216 = vmatprep.subr.mxu0 0.0
  %3217 = vmatpush1.msra.mxu0 %v1883
  %3218 = vmatprep.subr.mxu0 0.0
  %3219 = vmatpush1.msra.mxu0 %v1884
  %3220 = vmatprep.subr.mxu0 0.0
  %3221 = vmatpush1.msra.mxu0 %v1885
  %3222 = vmatprep.subr.mxu0 0.0
  %3223 = vmatpush1.msra.mxu0 %v1886
  %3224 = vmatprep.subr.mxu0 0.0
  %3225 = vmatpush1.msra.mxu0 0.0
  %3226 = vmatprep.subr.mxu0 0.0
  %3227 = vmatpush1.msra.mxu0 0.0
  %3228 = vmatprep.subr.mxu0 0.0
  %3229 = vmatpush1.msra.mxu0 0.0
  %3230 = vmatprep.subr.mxu0 0.0
  %3231 = vmatpush1.msra.mxu0 0.0
  %3232 = vmatprep.subr.mxu0 0.0
  %3233 = vmatpush1.msra.mxu0 0.0
  %3234 = vmatprep.subr.mxu0 0.0
  %3235 = vmatpush1.msra.mxu0 0.0
  %3236 = vmatprep.subr.mxu0 0.0
  %3237 = vmatpush1.msra.mxu0 0.0
  %3238 = vmatprep.subr.mxu0 0.0
  %3239 = vmatpush1.msra.mxu0 0.0
  %3240 = vmatprep.subr.mxu0 0.0
  %3241 = vmatpush1.msra.mxu0 0.0
  %3242 = vmatprep.subr.mxu0 0.0
  %3243 = vmatpush1.msra.mxu0 0.0
  %3244 = vmatprep.subr.mxu0 0.0
  %3245 = vmatpush1.msra.mxu0 0.0
  %3246 = vmatprep.subr.mxu0 0.0
  %3247 = vmatpush1.msra.mxu0 0.0
  %3248 = vmatprep.subr.mxu0 0.0
  %3249 = vmatpush1.msra.mxu0 0.0
  %3250 = vmatprep.subr.mxu0 0.0
  %3251 = vmatpush1.msra.mxu0 0.0
  %3252 = vmatprep.subr.mxu0 0.0
  %3253 = vmatpush1.msra.mxu0 0.0
  %3254 = vmatprep.subr.mxu0 0.0
  %3255 = vmatpush1.msra.mxu0 0.0
  %3256 = vmatprep.mubr.f32.mxu0 0.0
  %3257 = vmatmul.mubr.f32.gmra.mrb[0].mxu0 %v3190
  %v3258 = vpop.f32.mrb[0].mxu0
  %v3259 = vadd.f32 0.0, %v3258
  %v3260 = vpop.f32.mrb[0].mxu0
  %3261 = vdwg.mxu0
  %v3263 = vrot.slane %v3259, 4
  %v3265 = vadd.f32 %v1868, %v3263
  %v3266 = vtanh.pop %v3265
  %v3267 = vpack.c.bf16 %v3266, %v3266
  %v3269 = vrot.slane %v3267, 3
  %vm3271 = vcmask 1047559
  %vm3272 = vsmask.f32 7424
  %vm3273 = vmand %vm3271, %vm3272
  %v3274 = vld [vmem:[#allocation3] sm:$0x80]
  %v3275 = vsel %vm3273, %v3269, %v3274
  %3276 = vst [vmem:[#allocation3] sm:$0x80] %v3275
  %v3278 = vshrl.u32 %v3267, 16
  %v3280 = vrot.slane %v3278, 3
  %v3282 = vld [vmem:[#allocation3 + $0x8] sm:$0x80]
  %v3283 = vsel %vm3273, %v3280, %v3282
  %3284 = vst [vmem:[#allocation3 + $0x8] sm:$0x80] %v3283
  %v3286 = vrot.slane %v3266, 4
  %3288 = vmatprep.subr.mxu0 0.0
  %3289 = vmatpush1.msra.mxu0 %v1871
  %3290 = vmatprep.subr.mxu0 0.0
  %3291 = vmatpush1.msra.mxu0 %v1872
  %3292 = vmatprep.subr.mxu0 0.0
  %3293 = vmatpush1.msra.mxu0 %v1873
  %3294 = vmatprep.subr.mxu0 0.0
  %3295 = vmatpush1.msra.mxu0 %v1874
  %3296 = vmatprep.subr.mxu0 0.0
  %3297 = vmatpush1.msra.mxu0 %v1875
  %3298 = vmatprep.subr.mxu0 0.0
  %3299 = vmatpush1.msra.mxu0 %v1876
  %3300 = vmatprep.subr.mxu0 0.0
  %3301 = vmatpush1.msra.mxu0 %v1877
  %3302 = vmatprep.subr.mxu0 0.0
  %3303 = vmatpush1.msra.mxu0 %v1878
  %3304 = vmatprep.subr.mxu0 0.0
  %3305 = vmatpush1.msra.mxu0 %v1879
  %3306 = vmatprep.subr.mxu0 0.0
  %3307 = vmatpush1.msra.mxu0 %v1880
  %3308 = vmatprep.subr.mxu0 0.0
  %3309 = vmatpush1.msra.mxu0 %v1881
  %3310 = vmatprep.subr.mxu0 0.0
  %3311 = vmatpush1.msra.mxu0 %v1882
  %3312 = vmatprep.subr.mxu0 0.0
  %3313 = vmatpush1.msra.mxu0 %v1883
  %3314 = vmatprep.subr.mxu0 0.0
  %3315 = vmatpush1.msra.mxu0 %v1884
  %3316 = vmatprep.subr.mxu0 0.0
  %3317 = vmatpush1.msra.mxu0 %v1885
  %3318 = vmatprep.subr.mxu0 0.0
  %3319 = vmatpush1.msra.mxu0 %v1886
  %3320 = vmatprep.subr.mxu0 0.0
  %3321 = vmatpush1.msra.mxu0 0.0
  %3322 = vmatprep.subr.mxu0 0.0
  %3323 = vmatpush1.msra.mxu0 0.0
  %3324 = vmatprep.subr.mxu0 0.0
  %3325 = vmatpush1.msra.mxu0 0.0
  %3326 = vmatprep.subr.mxu0 0.0
  %3327 = vmatpush1.msra.mxu0 0.0
  %3328 = vmatprep.subr.mxu0 0.0
  %3329 = vmatpush1.msra.mxu0 0.0
  %3330 = vmatprep.subr.mxu0 0.0
  %3331 = vmatpush1.msra.mxu0 0.0
  %3332 = vmatprep.subr.mxu0 0.0
  %3333 = vmatpush1.msra.mxu0 0.0
  %3334 = vmatprep.subr.mxu0 0.0
  %3335 = vmatpush1.msra.mxu0 0.0
  %3336 = vmatprep.subr.mxu0 0.0
  %3337 = vmatpush1.msra.mxu0 0.0
  %3338 = vmatprep.subr.mxu0 0.0
  %3339 = vmatpush1.msra.mxu0 0.0
  %3340 = vmatprep.subr.mxu0 0.0
  %3341 = vmatpush1.msra.mxu0 0.0
  %3342 = vmatprep.subr.mxu0 0.0
  %3343 = vmatpush1.msra.mxu0 0.0
  %3344 = vmatprep.subr.mxu0 0.0
  %3345 = vmatpush1.msra.mxu0 0.0
  %3346 = vmatprep.subr.mxu0 0.0
  %3347 = vmatpush1.msra.mxu0 0.0
  %3348 = vmatprep.subr.mxu0 0.0
  %3349 = vmatpush1.msra.mxu0 0.0
  %3350 = vmatprep.subr.mxu0 0.0
  %3351 = vmatpush1.msra.mxu0 0.0
  %3352 = vmatprep.mubr.f32.mxu0 0.0
  %3353 = vmatmul.mubr.f32.gmra.mrb[0].mxu0 %v3286
  %v3354 = vpop.f32.mrb[0].mxu0
  %v3355 = vadd.f32 0.0, %v3354
  %v3356 = vpop.f32.mrb[0].mxu0
  %3357 = vdwg.mxu0
  %v3359 = vrot.slane %v3355, 2
  %v3361 = vadd.f32 %v1868, %v3359
  %v3362 = vtanh.pop %v3361
  %v3363 = vpack.c.bf16 %v3362, %v3362
  %v3365 = vshll.u32 %v3363, 16
  %v3367 = vrot.slane %v3365, 4
  %vm3369 = vsmask.f32 7966
  %vm3370 = vmand %vm3271, %vm3369
  %v3371 = vld [vmem:[#allocation3] sm:$0x80]
  %v3372 = vsel %vm3370, %v3367, %v3371
  %3373 = vst [vmem:[#allocation3] sm:$0x80] %v3372
  %v3375 = vrot.slane %v3363, 4
  %v3377 = vld [vmem:[#allocation3 + $0x8] sm:$0x80]
  %v3378 = vsel %vm3370, %v3375, %v3377
  %3379 = vst [vmem:[#allocation3 + $0x8] sm:$0x80] %v3378
  %v3380 = vld [vmem:[%s10] sm:$0xf]
  %v3381 = vld [vmem:[%s10 + $0x4] sm:$0xf]
  %v3382 = vld [vmem:[%s10 + $0x8] sm:$0xf]
  %v3383 = vld [vmem:[%s10 + $0xc] sm:$0xf]
  %v3384 = vld [vmem:[#allocation3] sm:$0xff]
  %v3385 = vld [vmem:[#allocation3 + $0x8] sm:$0xff]
  %v3386 = vld [vmem:[%s11] sm:$0xff]
  %v3387 = vld [vmem:[%s11 + $0x8] sm:$0xff]
  %v3388 = vld [vmem:[%s11 + $0x10] sm:$0xff]
  %v3389 = vld [vmem:[%s11 + $0x18] sm:$0xff]
  %3391 = vset.pattern.permute.xlu0 0
  %3392 = vperm.xlu0 %3391, %v3386
  %v3393 = vpop.permute.xlu0 %3392
  %3396 = vset.pattern.permute.xlu0 0
  %3397 = vperm.xlu0 %3396, %v3387
  %v3398 = vpop.permute.xlu0 %3397
  %3401 = vset.pattern.permute.xlu0 0
  %3402 = vperm.xlu0 %3401, %v3388
  %v3403 = vpop.permute.xlu0 %3402
  %3406 = vset.pattern.permute.xlu0 0
  %3407 = vperm.xlu0 %3406, %v3389
  %v3408 = vpop.permute.xlu0 %3407
  %v3414 = vunpack.c.l.b16 %v3380
  %v3415 = vunpack.c.l.b16 %v3381
  %v3416 = vunpack.c.l.b16 %v3382
  %v3417 = vunpack.c.l.b16 %v3383
  %v3418 = vpack.c.b16 %v3415, %v3414
  %v3419 = vpack.c.b16 %v3417, %v3416
  %vm3420 = vcmask 130048
  %v3422 = vsel %vm3420, %v3418, 0
  %v3425 = vsel %vm3420, %v3419, 0
  %3427 = vmatprep.subr.bf16.mxu0 %v3385
  %3428 = vmatpush1.bf16.msra.mxu0 %v3384
  %3429 = vmatprep.subr.bf16.mxu0 0
  %3430 = vmatpush1.bf16.msra.mxu0 0
  %3431 = vmatprep.subr.bf16.mxu0 0
  %3432 = vmatpush1.bf16.msra.mxu0 0
  %3433 = vmatprep.subr.bf16.mxu0 0
  %3434 = vmatpush1.bf16.msra.mxu0 0
  %3435 = vmatprep.subr.bf16.mxu0 0
  %3436 = vmatpush1.bf16.msra.mxu0 0
  %3437 = vmatprep.subr.bf16.mxu0 0
  %3438 = vmatpush1.bf16.msra.mxu0 0
  %3439 = vmatprep.subr.bf16.mxu0 0
  %3440 = vmatpush1.bf16.msra.mxu0 0
  %3441 = vmatprep.subr.bf16.mxu0 0
  %3442 = vmatpush1.bf16.msra.mxu0 0
  %3443 = vmatprep.subr.bf16.mxu0 0
  %3444 = vmatpush1.bf16.msra.mxu0 0
  %3445 = vmatprep.subr.bf16.mxu0 0
  %3446 = vmatpush1.bf16.msra.mxu0 0
  %3447 = vmatprep.subr.bf16.mxu0 0
  %3448 = vmatpush1.bf16.msra.mxu0 0
  %3449 = vmatprep.subr.bf16.mxu0 0
  %3450 = vmatpush1.bf16.msra.mxu0 0
  %3451 = vmatprep.subr.bf16.mxu0 0
  %3452 = vmatpush1.bf16.msra.mxu0 0
  %3453 = vmatprep.subr.bf16.mxu0 0
  %3454 = vmatpush1.bf16.msra.mxu0 0
  %3455 = vmatprep.subr.bf16.mxu0 0
  %3456 = vmatpush1.bf16.msra.mxu0 0
  %3457 = vmatprep.subr.bf16.mxu0 0
  %3458 = vmatpush1.bf16.msra.mxu0 0
  %3459 = vmatprep.mubr.bf16.mxu0 0
  %3460 = vmatmul.mubr.bf16.gmra.mrb[0].mxu0 %v3422
  %v3461 = vpop.f32.mrb[0].mxu0
  %v3462 = vadd.f32 %v3393, %v3461
  %v3463 = vpop.f32.mrb[0].mxu0
  %v3464 = vadd.f32 %v3393, %v3463
  %v3465 = vpop.f32.mrb[0].mxu0
  %v3466 = vadd.f32 %v3398, %v3465
  %v3467 = vpop.f32.mrb[0].mxu0
  %v3468 = vadd.f32 %v3398, %v3467
  %3469 = vmatprep.mubr.bf16.mxu0 0
  %3470 = vmatmul.mubr.bf16.gmra.mrb[0].mxu0 %v3425
  %v3471 = vpop.f32.mrb[0].mxu0
  %v3472 = vadd.f32 %v3403, %v3471
  %v3473 = vpop.f32.mrb[0].mxu0
  %v3474 = vadd.f32 %v3403, %v3473
  %v3475 = vpop.f32.mrb[0].mxu0
  %v3476 = vadd.f32 %v3408, %v3475
  %v3477 = vpop.f32.mrb[0].mxu0
  %v3478 = vadd.f32 %v3408, %v3477
  %3479 = vdwg.mxu0
  %3480 = vst [vmem:[%s12] sm:$0xff] %v3462
  %3481 = vst [vmem:[%s12 + $0x8] sm:$0xff] %v3464
  %3482 = vst [vmem:[%s12 + $0x10] sm:$0xff] %v3466
  %3483 = vst [vmem:[%s12 + $0x18] sm:$0xff] %v3468
  %3484 = vst [vmem:[%s12 + $0x20] sm:$0xff] %v3472
  %3485 = vst [vmem:[%s12 + $0x28] sm:$0xff] %v3474
  %3486 = vst [vmem:[%s12 + $0x30] sm:$0xff] %v3476
  %3487 = vst [vmem:[%s12 + $0x38] sm:$0xff] %v3478
  // Predicated region
  $region50: #{query_block_forward.1} parent=0 // pred_check
    _
  $region51: #{query_block_forward.1} parent=0 // pred_check_branch
    %3489 = sbr.rel (0) target = $region53
  $region52: #{query_block_forward.1} parent=0 // pred_region
    _
  $region53: #{query_block_forward.1} parent=0 // pred_fallthru
    _
  // Predicated region
  $region54: #{query_block_forward.1} parent=0 // pred_check
    _
  $region55: #{query_block_forward.1} parent=0 // pred_check_branch
    %3491 = sbr.rel (0) target = $region57
  $region56: #{query_block_forward.1} parent=0 // pred_region
    _
  $region57: #{query_block_forward.1} parent=0 // pred_fallthru
    _

</llo_original>
